<compile_context>
chip_gen: v5e
topology: v5e:2x2
jax: 0.10.0
libtpu: 0.0.40
codegen_flags: <defaults>
</compile_context>

<pallas_src>
import functools

import jax
import jax.numpy as jnp
from jax.experimental import pallas as pl
from jax.experimental.pallas import tpu as pltpu

EPS = 1e-5  # torch nn.LayerNorm default eps


# ----------------------------- in-kernel helpers -----------------------------

def _layernorm(x, g, b):
    mu = jnp.mean(x, axis=-1, keepdims=True)
    var = jnp.mean((x - mu) ** 2, axis=-1, keepdims=True)
    return (x - mu) * jax.lax.rsqrt(var + EPS) * g + b


def _gelu(x):
    # TODO(synk): the `Activation` class is not provided in the source module;
    # assuming GELU (tanh approximation) for the default 'gelu' activation.
    c = 0.7978845608028654  # sqrt(2/pi)
    return 0.5 * x * (1.0 + jnp.tanh(c * (x + 0.044715 * x * x * x)))


def _dot_bf16(a, b):
    # bf16 MXU inputs, f32 accumulation.
    return jnp.dot(a.astype(jnp.bfloat16), b.astype(jnp.bfloat16),
                   preferred_element_type=jnp.float32)


# --------------------------------- fused kernel -------------------------------

def _vit_fused_kernel(xp_ref, tb_ref, pw_ref,
                      ln1g_ref, ln1b_ref, wqkv_ref, wo_ref, bo_ref,
                      ln2g_ref, ln2b_ref, w1_ref, b1_ref, w2_ref, b2_ref,
                      hg_ref, hb_ref, hw_ref, hbias_ref,
                      o_ref, *, batch, n_tok, n_pad, heads, dim_head, depth):
    inner = heads * dim_head
    rows = batch * n_pad
    scale = 1.0 / (dim_head ** 0.5)

    # Patch embedding for all batch elements at once.  xp has a zero row at
    # every cls/pad position; tb carries (cls + pos) for cls rows and
    # (pos + patch_bias) for patch rows, so this single matmul+add assembles
    # the full (B*n_pad, D) token tensor.
    x = _dot_bf16(xp_ref[...], pw_ref[...]) + tb_ref[...]          # (rows, D) f32

    # Key-padding mask, shared by every layer / head, broadcast over batch.
    key_ok = jax.lax.broadcasted_iota(jnp.int32, (1, n_pad, n_pad), 2) < n_tok

    for l in range(depth):                       # static unroll over layers
        # --- PreNorm + multi-head self-attention + residual ---
        xn = _layernorm(x, ln1g_ref[l], ln1b_ref[l])
        qkv = _dot_bf16(xn, wqkv_ref[l])                           # (rows, 3*inner)

        head_outs = []
        for h in range(heads):                   # static unroll over heads
            s0 = h * dim_head
            qh = qkv[:, s0:s0 + dim_head]
            kh = qkv[:, inner + s0:inner + s0 + dim_head]
            vh = qkv[:, 2 * inner + s0:2 * inner + s0 + dim_head]
            # (rows, dh) -> (B, n_pad, dh); leading-dim split is layout
            # preserving because n_pad is a multiple of 8.
            qh = qh.reshape(batch, n_pad, dim_head).astype(jnp.bfloat16)
            kh = kh.reshape(batch, n_pad, dim_head).astype(jnp.bfloat16)
            vh = vh.reshape(batch, n_pad, dim_head).astype(jnp.bfloat16)

            s = jax.lax.dot_general(
                qh, kh, (((2,), (2,)), ((0,), (0,))),
                preferred_element_type=jnp.float32) * scale        # (B, N, N)
            s = jnp.where(key_ok, s, -1e30)
            s = s - jnp.max(s, axis=-1, keepdims=True)
            p = jnp.exp(s)
            p = p * pl.reciprocal(jnp.sum(p, axis=-1, keepdims=True),
                                  approx=True)
            oh = jax.lax.dot_general(
                p.astype(jnp.bfloat16), vh, (((2,), (1,)), ((0,), (0,))),
                preferred_element_type=jnp.float32)                # (B, N, dh)
            head_outs.append(oh.reshape(rows, dim_head))
        attn = jnp.concatenate(head_outs, axis=-1)                 # (rows, inner)
        x = x + _dot_bf16(attn, wo_ref[l]) + bo_ref[l]

        # --- PreNorm + MLP + residual ---
        xn2 = _layernorm(x, ln2g_ref[l], ln2b_ref[l])
        h1 = _gelu(_dot_bf16(xn2, w1_ref[l]) + b1_ref[l])
        x = x + _dot_bf16(h1, w2_ref[l]) + b2_ref[l]

    # --- cls pooling + LayerNorm + linear head (only the B cls rows) ---
    cls = jnp.concatenate(
        [x[b * n_pad:b * n_pad + 1, :] for b in range(batch)], axis=0)  # (B, D)
    featn = _layernorm(cls, hg_ref[...], hb_ref[...])
    o_ref[...] = _dot_bf16(featn, hw_ref[...]) + hbias_ref[...]         # (B, nc)


# --------------------------------- wrapper ------------------------------------

@functools.partial(jax.jit, static_argnames=("patch", "heads", "dim_head"))
def vit_forward(img, params, *, patch, heads, dim_head):
    B, C, H, W = img.shape
    hp, wp = H // patch, W // patch
    n_patches = hp * wp
    n_tok = n_patches + 1
    n_pad = ((n_tok + 7) // 8) * 8          # sublane-aligned tokens per batch elem
    patch_dim = C * patch * patch
    D = params['patch_w'].shape[1]
    nc = params['head_w'].shape[1]
    depth = len(params['layers'])

    # --- layout glue (plain JAX): rearrange patches + insert zero cls/pad rows
    xp = img.reshape(B, C, hp, patch, wp, patch)
    xp = jnp.transpose(xp, (0, 2, 4, 3, 5, 1)).reshape(B, n_patches, patch_dim)
    xp_full = jnp.zeros((B, n_pad, patch_dim), jnp.float32).at[:, 1:n_tok, :].set(xp)
    xp_full = xp_full.reshape(B * n_pad, patch_dim).astype(jnp.bfloat16)

    # additive token bias: cls+pos for row 0, pos+patch_bias for patch rows, 0 pad
    tb = jnp.zeros((n_pad, D), jnp.float32)
    tb = tb.at[0, :].set(params['cls'][0, 0] + params['pos'][0, 0])
    tb = tb.at[1:n_tok, :].set(params['pos'][0, 1:n_tok] + params['patch_b'][0])
    tb = jnp.broadcast_to(tb[None], (B, n_pad, D)).reshape(B * n_pad, D)

    # stack per-layer params into (depth, ...) arrays; matmul weights in bf16
    st = {k: jnp.stack([lp[k] for lp in params['layers']])
          for k in params['layers'][0]}
    bf16 = lambda a: a.astype(jnp.bfloat16)

    kernel = functools.partial(_vit_fused_kernel, batch=B, n_tok=n_tok,
                               n_pad=n_pad, heads=heads, dim_head=dim_head,
                               depth=depth)
    vmem = pl.BlockSpec(memory_space=pltpu.MemorySpace.VMEM)
    return pl.pallas_call(
        kernel,
        out_shape=jax.ShapeDtypeStruct((B, nc), jnp.float32),
        in_specs=[vmem] * 18,
        out_specs=vmem,
    )(xp_full, tb, bf16(params['patch_w']),
      st['ln1_g'], st['ln1_b'], bf16(st['w_qkv']), bf16(st['w_out']), st['b_out'],
      st['ln2_g'], st['ln2_b'], bf16(st['w1']), st['b1'], bf16(st['w2']), st['b2'],
      params['head_g'], params['head_b'], bf16(params['head_w']),
      params['head_bias'])


# -------------------------- deterministic parameters --------------------------

def init_params(key, *, channels, patch, dim, depth, heads, dim_head, mlp_dim,
                num_classes, num_patches):
    patch_dim = channels * patch * patch
    inner = heads * dim_head
    keys = jax.random.split(key, 4 + depth)

    def nrm(k, shape, scale=0.02):
        return (scale * jax.random.normal(k, shape)).astype(jnp.float32)

    params = {
        'patch_w': nrm(keys[0], (patch_dim, dim)),
        'patch_b': jnp.zeros((1, dim), jnp.float32),
        'pos': nrm(keys[1], (1, num_patches + 1, dim), 1.0),
        'cls': nrm(keys[2], (1, 1, dim), 1.0),
        'head_g': jnp.ones((1, dim), jnp.float32),
        'head_b': jnp.zeros((1, dim), jnp.float32),
        'head_w': nrm(keys[3], (dim, num_classes)),
        'head_bias': jnp.zeros((1, num_classes), jnp.float32),
        'layers': [],
    }
    for i in range(depth):
        lk = jax.random.split(keys[4 + i], 4)
        params['layers'].append({
            'ln1_g': jnp.ones((1, dim), jnp.float32),
            'ln1_b': jnp.zeros((1, dim), jnp.float32),
            'w_qkv': nrm(lk[0], (dim, 3 * inner)),
            'w_out': nrm(lk[1], (inner, dim)),
            'b_out': jnp.zeros((1, dim), jnp.float32),
            'ln2_g': jnp.ones((1, dim), jnp.float32),
            'ln2_b': jnp.zeros((1, dim), jnp.float32),
            'w1': nrm(lk[2], (dim, mlp_dim)),
            'b1': jnp.zeros((1, mlp_dim), jnp.float32),
            'w2': nrm(lk[3], (mlp_dim, dim)),
            'b2': jnp.zeros((1, dim), jnp.float32),
        })
    return params


# ------------------------------ pure-JAX reference -----------------------------

def vit_reference(img, params, *, patch, heads, dim_head):
    B, C, H, W = img.shape
    hp, wp = H // patch, W // patch
    xp = img.reshape(B, C, hp, patch, wp, patch)
    xp = jnp.transpose(xp, (0, 2, 4, 3, 5, 1)).reshape(B, hp * wp, patch * patch * C)
    x = xp @ params['patch_w'] + params['patch_b'][0]
    D = x.shape[-1]
    cls = jnp.broadcast_to(params['cls'], (B, 1, D))
    x = jnp.concatenate([cls, x], axis=1) + params['pos'][:, :hp * wp + 1]

    def ln(t, g, b):
        mu = t.mean(-1, keepdims=True)
        var = ((t - mu) ** 2).mean(-1, keepdims=True)
        return (t - mu) / jnp.sqrt(var + EPS) * g + b

    inner = heads * dim_head
    for lp in params['layers']:
        xn = ln(x, lp['ln1_g'][0], lp['ln1_b'][0])
        qkv = xn @ lp['w_qkv']
        q, k, v = qkv[..., :inner], qkv[..., inner:2 * inner], qkv[..., 2 * inner:]
        sp = lambda t: t.reshape(B, -1, heads, dim_head).transpose(0, 2, 1, 3)
        q, k, v = sp(q), sp(k), sp(v)
        s = jnp.einsum('bhnd,bhmd->bhnm', q, k) / jnp.sqrt(jnp.float32(dim_head))
        p = jax.nn.softmax(s, axis=-1)
        o = jnp.einsum('bhnm,bhmd->bhnd', p, v).transpose(0, 2, 1, 3).reshape(B, -1, inner)
        x = x + o @ lp['w_out'] + lp['b_out'][0]
        xn2 = ln(x, lp['ln2_g'][0], lp['ln2_b'][0])
        h1 = _gelu(xn2 @ lp['w1'] + lp['b1'][0])
        x = x + h1 @ lp['w2'] + lp['b2'][0]
    feat = x[:, 0]
    featn = ln(feat, params['head_g'][0], params['head_b'][0])
    return featn @ params['head_w'] + params['head_bias'][0]


# ----------------------------------- main --------------------------------------

if __name__ == "__main__":
    # Small ViT: image 16x16, patch 4, channels 3 (module default), dim 32,
    # depth 2, heads 4, dim_head 8, mlp_dim 64, num_classes 10, pool='cls'.
    IMG, PATCH, CH = 16, 4, 3
    DIM, DEPTH, HEADS, DIM_HEAD, MLP_DIM, NUM_CLASSES = 32, 2, 4, 8, 64, 10
    NUM_PATCHES = (IMG // PATCH) ** 2

    key = jax.random.PRNGKey(0)
    k_img, k_par = jax.random.split(key)
    img = jax.random.normal(k_img, (2, CH, IMG, IMG), jnp.float32)
    params = init_params(k_par, channels=CH, patch=PATCH, dim=DIM, depth=DEPTH,
                         heads=HEADS, dim_head=DIM_HEAD, mlp_dim=MLP_DIM,
                         num_classes=NUM_CLASSES, num_patches=NUM_PATCHES)

    out = vit_forward(img, params, patch=PATCH, heads=HEADS, dim_head=DIM_HEAD)
    out = jax.block_until_ready(out)

    with jax.default_matmul_precision("highest"):
        ref = vit_reference(img, params, patch=PATCH, heads=HEADS, dim_head=DIM_HEAD)

    assert out.shape == (2, NUM_CLASSES)
    err = float(jnp.max(jnp.abs(out - ref)))
    assert err < 3e-2, f"max abs err vs reference: {err}"

    print("KERNEL_OK")
</pallas_src>

<mosaic_0001>
module attributes {stable_mosaic.version = 11 : i64} {
  func.func @_vit_fused_kernel(%arg0: memref<48x48xbf16, #tpu.memory_space<vmem>>, %arg1: memref<48x32xf32, #tpu.memory_space<vmem>>, %arg2: memref<48x32xbf16, #tpu.memory_space<vmem>>, %arg3: memref<2x1x32xf32, #tpu.memory_space<vmem>>, %arg4: memref<2x1x32xf32, #tpu.memory_space<vmem>>, %arg5: memref<2x32x96xbf16, #tpu.memory_space<vmem>>, %arg6: memref<2x32x32xbf16, #tpu.memory_space<vmem>>, %arg7: memref<2x1x32xf32, #tpu.memory_space<vmem>>, %arg8: memref<2x1x32xf32, #tpu.memory_space<vmem>>, %arg9: memref<2x1x32xf32, #tpu.memory_space<vmem>>, %arg10: memref<2x32x64xbf16, #tpu.memory_space<vmem>>, %arg11: memref<2x1x64xf32, #tpu.memory_space<vmem>>, %arg12: memref<2x64x32xbf16, #tpu.memory_space<vmem>>, %arg13: memref<2x1x32xf32, #tpu.memory_space<vmem>>, %arg14: memref<1x32xf32, #tpu.memory_space<vmem>>, %arg15: memref<1x32xf32, #tpu.memory_space<vmem>>, %arg16: memref<32x10xbf16, #tpu.memory_space<vmem>>, %arg17: memref<1x10xf32, #tpu.memory_space<vmem>>, %arg18: memref<2x10xf32, #tpu.memory_space<vmem>>) attributes {dimension_semantics = [], scalar_prefetch = 0 : i64, scratch_operands = 0 : i64, tpu.core_type = #tpu.core_type<tc>} {
    %c0 = arith.constant 0 : index
    %c0_0 = arith.constant 0 : index
    %0 = vector.load %arg0[%c0, %c0_0] : memref<48x48xbf16, #tpu.memory_space<vmem>>, vector<48x48xbf16>
    %c0_1 = arith.constant 0 : index
    %c0_2 = arith.constant 0 : index
    %1 = vector.load %arg2[%c0_1, %c0_2] : memref<48x32xbf16, #tpu.memory_space<vmem>>, vector<48x32xbf16>
    %cst = arith.constant dense<0.000000e+00> : vector<48x32xf32>
    %2 = tpu.matmul %0, %1, %cst {dimension_numbers = #tpu.dot_dimension_numbers<[1], [0], [0], [1], [0, 0, 1, 1], [], []>} : vector<48x48xbf16>, vector<48x32xbf16>, vector<48x32xf32> -> vector<48x32xf32>
    %c0_3 = arith.constant 0 : index
    %c0_4 = arith.constant 0 : index
    %3 = vector.load %arg1[%c0_3, %c0_4] : memref<48x32xf32, #tpu.memory_space<vmem>>, vector<48x32xf32>
    %4 = arith.addf %2, %3 : vector<48x32xf32>
    %5 = tpu.iota {dimensions = array<i32: 2>} : vector<1x24x24xi32>
    %c17_i32 = arith.constant 17 : i32
    %6 = vector.broadcast %c17_i32 : i32 to vector<1x24x24xi32>
    %7 = arith.cmpi slt, %5, %6 : vector<1x24x24xi32>
    %c0_5 = arith.constant 0 : index
    %c0_6 = arith.constant 0 : index
    %c0_7 = arith.constant 0 : index
    %8 = vector.load %arg3[%c0_5, %c0_6, %c0_7] : memref<2x1x32xf32, #tpu.memory_space<vmem>>, vector<1x1x32xf32>
    %9 = vector.shape_cast %8 : vector<1x1x32xf32> to vector<1x32xf32>
    %c0_8 = arith.constant 0 : index
    %c0_9 = arith.constant 0 : index
    %c0_10 = arith.constant 0 : index
    %10 = vector.load %arg4[%c0_8, %c0_9, %c0_10] : memref<2x1x32xf32, #tpu.memory_space<vmem>>, vector<1x1x32xf32>
    %11 = vector.shape_cast %10 : vector<1x1x32xf32> to vector<1x32xf32>
    %cst_11 = arith.constant dense<0.000000e+00> : vector<48xf32>
    %12 = vector.multi_reduction <add>, %4, %cst_11 [1] : vector<48x32xf32> to vector<48xf32>
    %13 = vector.shape_cast %12 : vector<48xf32> to vector<48x1xf32>
    %cst_12 = arith.constant 3.200000e+01 : f32
    %14 = vector.broadcast %cst_12 : f32 to vector<48x1xf32>
    %15 = arith.divf %13, %14 : vector<48x1xf32>
    %16 = vector.broadcast %15 : vector<48x1xf32> to vector<48x32xf32>
    %17 = arith.subf %4, %16 : vector<48x32xf32>
    %18 = arith.mulf %17, %17 : vector<48x32xf32>
    %cst_13 = arith.constant dense<0.000000e+00> : vector<48xf32>
    %19 = vector.multi_reduction <add>, %18, %cst_13 [1] : vector<48x32xf32> to vector<48xf32>
    %20 = vector.shape_cast %19 : vector<48xf32> to vector<48x1xf32>
    %cst_14 = arith.constant 3.200000e+01 : f32
    %21 = vector.broadcast %cst_14 : f32 to vector<48x1xf32>
    %22 = arith.divf %20, %21 : vector<48x1xf32>
    %23 = vector.broadcast %15 : vector<48x1xf32> to vector<48x32xf32>
    %24 = arith.subf %4, %23 : vector<48x32xf32>
    %cst_15 = arith.constant 9.99999974E-6 : f32
    %25 = vector.broadcast %cst_15 : f32 to vector<48x1xf32>
    %26 = arith.addf %22, %25 : vector<48x1xf32>
    %27 = math.rsqrt %26 : vector<48x1xf32>
    %28 = vector.broadcast %27 : vector<48x1xf32> to vector<48x32xf32>
    %29 = arith.mulf %24, %28 : vector<48x32xf32>
    %30 = vector.broadcast %9 : vector<1x32xf32> to vector<48x32xf32>
    %31 = arith.mulf %29, %30 : vector<48x32xf32>
    %32 = vector.broadcast %11 : vector<1x32xf32> to vector<48x32xf32>
    %33 = arith.addf %31, %32 : vector<48x32xf32>
    %c0_16 = arith.constant 0 : index
    %c0_17 = arith.constant 0 : index
    %c0_18 = arith.constant 0 : index
    %34 = vector.load %arg5[%c0_16, %c0_17, %c0_18] : memref<2x32x96xbf16, #tpu.memory_space<vmem>>, vector<1x32x96xbf16>
    %35 = vector.shape_cast %34 : vector<1x32x96xbf16> to vector<32x96xbf16>
    %36 = arith.truncf %33 : vector<48x32xf32> to vector<48x32xbf16>
    %cst_19 = arith.constant dense<0.000000e+00> : vector<48x96xf32>
    %37 = tpu.matmul %36, %35, %cst_19 {dimension_numbers = #tpu.dot_dimension_numbers<[1], [0], [0], [1], [0, 0, 1, 1], [], []>} : vector<48x32xbf16>, vector<32x96xbf16>, vector<48x96xf32> -> vector<48x96xf32>
    %38 = vector.extract_strided_slice %37 {offsets = [0, 0], sizes = [48, 8], strides = [1, 1]} : vector<48x96xf32> to vector<48x8xf32>
    %39 = vector.extract_strided_slice %37 {offsets = [0, 32], sizes = [48, 8], strides = [1, 1]} : vector<48x96xf32> to vector<48x8xf32>
    %40 = vector.extract_strided_slice %37 {offsets = [0, 64], sizes = [48, 8], strides = [1, 1]} : vector<48x96xf32> to vector<48x8xf32>
    %41 = vector.shape_cast %38 : vector<48x8xf32> to vector<2x24x8xf32>
    %42 = arith.truncf %41 : vector<2x24x8xf32> to vector<2x24x8xbf16>
    %43 = vector.shape_cast %39 : vector<48x8xf32> to vector<2x24x8xf32>
    %44 = arith.truncf %43 : vector<2x24x8xf32> to vector<2x24x8xbf16>
    %45 = vector.shape_cast %40 : vector<48x8xf32> to vector<2x24x8xf32>
    %46 = arith.truncf %45 : vector<2x24x8xf32> to vector<2x24x8xbf16>
    %cst_20 = arith.constant dense<0.000000e+00> : vector<2x24x24xf32>
    %47 = tpu.matmul %42, %44, %cst_20 {dimension_numbers = #tpu.dot_dimension_numbers<[2], [2], [1], [1], [0, 0, 0, 1, 1, 1], [0], [0]>} : vector<2x24x8xbf16>, vector<2x24x8xbf16>, vector<2x24x24xf32> -> vector<2x24x24xf32>
    %cst_21 = arith.constant 0.353553385 : f32
    %48 = vector.broadcast %cst_21 : f32 to vector<2x24x24xf32>
    %49 = arith.mulf %47, %48 : vector<2x24x24xf32>
    %cst_22 = arith.constant -1.000000e+30 : f32
    %50 = vector.shape_cast %7 : vector<1x24x24xi1> to vector<1x24x24xi1>
    %51 = vector.broadcast %50 : vector<1x24x24xi1> to vector<2x24x24xi1>
    %52 = vector.broadcast %cst_22 : f32 to vector<2x24x24xf32>
    %53 = arith.select %51, %49, %52 : vector<2x24x24xi1>, vector<2x24x24xf32>
    %cst_23 = arith.constant dense<0xFF800000> : vector<2x24xf32>
    %54 = vector.multi_reduction <maximumf>, %53, %cst_23 [2] : vector<2x24x24xf32> to vector<2x24xf32>
    %55 = vector.shape_cast %54 : vector<2x24xf32> to vector<2x24x1xf32>
    %56 = vector.broadcast %55 : vector<2x24x1xf32> to vector<2x24x24xf32>
    %57 = arith.subf %53, %56 : vector<2x24x24xf32>
    %58 = math.exp %57 : vector<2x24x24xf32>
    %cst_24 = arith.constant dense<0.000000e+00> : vector<2x24xf32>
    %59 = vector.multi_reduction <add>, %58, %cst_24 [2] : vector<2x24x24xf32> to vector<2x24xf32>
    %60 = vector.shape_cast %59 : vector<2x24xf32> to vector<2x24x1xf32>
    %61 = tpu.reciprocal %60 {approx = true} : vector<2x24x1xf32> -> vector<2x24x1xf32>
    %62 = vector.broadcast %61 : vector<2x24x1xf32> to vector<2x24x24xf32>
    %63 = arith.mulf %58, %62 : vector<2x24x24xf32>
    %64 = arith.truncf %63 : vector<2x24x24xf32> to vector<2x24x24xbf16>
    %cst_25 = arith.constant dense<0.000000e+00> : vector<2x24x8xf32>
    %65 = tpu.matmul %64, %46, %cst_25 {dimension_numbers = #tpu.dot_dimension_numbers<[2], [1], [1], [2], [0, 0, 0, 1, 1, 2], [0], [0]>} : vector<2x24x24xbf16>, vector<2x24x8xbf16>, vector<2x24x8xf32> -> vector<2x24x8xf32>
    %66 = vector.shape_cast %65 : vector<2x24x8xf32> to vector<48x8xf32>
    %67 = vector.extract_strided_slice %37 {offsets = [0, 8], sizes = [48, 8], strides = [1, 1]} : vector<48x96xf32> to vector<48x8xf32>
    %68 = vector.extract_strided_slice %37 {offsets = [0, 40], sizes = [48, 8], strides = [1, 1]} : vector<48x96xf32> to vector<48x8xf32>
    %69 = vector.extract_strided_slice %37 {offsets = [0, 72], sizes = [48, 8], strides = [1, 1]} : vector<48x96xf32> to vector<48x8xf32>
    %70 = vector.shape_cast %67 : vector<48x8xf32> to vector<2x24x8xf32>
    %71 = arith.truncf %70 : vector<2x24x8xf32> to vector<2x24x8xbf16>
    %72 = vector.shape_cast %68 : vector<48x8xf32> to vector<2x24x8xf32>
    %73 = arith.truncf %72 : vector<2x24x8xf32> to vector<2x24x8xbf16>
    %74 = vector.shape_cast %69 : vector<48x8xf32> to vector<2x24x8xf32>
    %75 = arith.truncf %74 : vector<2x24x8xf32> to vector<2x24x8xbf16>
    %cst_26 = arith.constant dense<0.000000e+00> : vector<2x24x24xf32>
    %76 = tpu.matmul %71, %73, %cst_26 {dimension_numbers = #tpu.dot_dimension_numbers<[2], [2], [1], [1], [0, 0, 0, 1, 1, 1], [0], [0]>} : vector<2x24x8xbf16>, vector<2x24x8xbf16>, vector<2x24x24xf32> -> vector<2x24x24xf32>
    %cst_27 = arith.constant 0.353553385 : f32
    %77 = vector.broadcast %cst_27 : f32 to vector<2x24x24xf32>
    %78 = arith.mulf %76, %77 : vector<2x24x24xf32>
    %cst_28 = arith.constant -1.000000e+30 : f32
    %79 = vector.shape_cast %7 : vector<1x24x24xi1> to vector<1x24x24xi1>
    %80 = vector.broadcast %79 : vector<1x24x24xi1> to vector<2x24x24xi1>
    %81 = vector.broadcast %cst_28 : f32 to vector<2x24x24xf32>
    %82 = arith.select %80, %78, %81 : vector<2x24x24xi1>, vector<2x24x24xf32>
    %cst_29 = arith.constant dense<0xFF800000> : vector<2x24xf32>
    %83 = vector.multi_reduction <maximumf>, %82, %cst_29 [2] : vector<2x24x24xf32> to vector<2x24xf32>
    %84 = vector.shape_cast %83 : vector<2x24xf32> to vector<2x24x1xf32>
    %85 = vector.broadcast %84 : vector<2x24x1xf32> to vector<2x24x24xf32>
    %86 = arith.subf %82, %85 : vector<2x24x24xf32>
    %87 = math.exp %86 : vector<2x24x24xf32>
    %cst_30 = arith.constant dense<0.000000e+00> : vector<2x24xf32>
    %88 = vector.multi_reduction <add>, %87, %cst_30 [2] : vector<2x24x24xf32> to vector<2x24xf32>
    %89 = vector.shape_cast %88 : vector<2x24xf32> to vector<2x24x1xf32>
    %90 = tpu.reciprocal %89 {approx = true} : vector<2x24x1xf32> -> vector<2x24x1xf32>
    %91 = vector.broadcast %90 : vector<2x24x1xf32> to vector<2x24x24xf32>
    %92 = arith.mulf %87, %91 : vector<2x24x24xf32>
    %93 = arith.truncf %92 : vector<2x24x24xf32> to vector<2x24x24xbf16>
    %cst_31 = arith.constant dense<0.000000e+00> : vector<2x24x8xf32>
    %94 = tpu.matmul %93, %75, %cst_31 {dimension_numbers = #tpu.dot_dimension_numbers<[2], [1], [1], [2], [0, 0, 0, 1, 1, 2], [0], [0]>} : vector<2x24x24xbf16>, vector<2x24x8xbf16>, vector<2x24x8xf32> -> vector<2x24x8xf32>
    %95 = vector.shape_cast %94 : vector<2x24x8xf32> to vector<48x8xf32>
    %96 = vector.extract_strided_slice %37 {offsets = [0, 16], sizes = [48, 8], strides = [1, 1]} : vector<48x96xf32> to vector<48x8xf32>
    %97 = vector.extract_strided_slice %37 {offsets = [0, 48], sizes = [48, 8], strides = [1, 1]} : vector<48x96xf32> to vector<48x8xf32>
    %98 = vector.extract_strided_slice %37 {offsets = [0, 80], sizes = [48, 8], strides = [1, 1]} : vector<48x96xf32> to vector<48x8xf32>
    %99 = vector.shape_cast %96 : vector<48x8xf32> to vector<2x24x8xf32>
    %100 = arith.truncf %99 : vector<2x24x8xf32> to vector<2x24x8xbf16>
    %101 = vector.shape_cast %97 : vector<48x8xf32> to vector<2x24x8xf32>
    %102 = arith.truncf %101 : vector<2x24x8xf32> to vector<2x24x8xbf16>
    %103 = vector.shape_cast %98 : vector<48x8xf32> to vector<2x24x8xf32>
    %104 = arith.truncf %103 : vector<2x24x8xf32> to vector<2x24x8xbf16>
    %cst_32 = arith.constant dense<0.000000e+00> : vector<2x24x24xf32>
    %105 = tpu.matmul %100, %102, %cst_32 {dimension_numbers = #tpu.dot_dimension_numbers<[2], [2], [1], [1], [0, 0, 0, 1, 1, 1], [0], [0]>} : vector<2x24x8xbf16>, vector<2x24x8xbf16>, vector<2x24x24xf32> -> vector<2x24x24xf32>
    %cst_33 = arith.constant 0.353553385 : f32
    %106 = vector.broadcast %cst_33 : f32 to vector<2x24x24xf32>
    %107 = arith.mulf %105, %106 : vector<2x24x24xf32>
    %cst_34 = arith.constant -1.000000e+30 : f32
    %108 = vector.shape_cast %7 : vector<1x24x24xi1> to vector<1x24x24xi1>
    %109 = vector.broadcast %108 : vector<1x24x24xi1> to vector<2x24x24xi1>
    %110 = vector.broadcast %cst_34 : f32 to vector<2x24x24xf32>
    %111 = arith.select %109, %107, %110 : vector<2x24x24xi1>, vector<2x24x24xf32>
    %cst_35 = arith.constant dense<0xFF800000> : vector<2x24xf32>
    %112 = vector.multi_reduction <maximumf>, %111, %cst_35 [2] : vector<2x24x24xf32> to vector<2x24xf32>
    %113 = vector.shape_cast %112 : vector<2x24xf32> to vector<2x24x1xf32>
    %114 = vector.broadcast %113 : vector<2x24x1xf32> to vector<2x24x24xf32>
    %115 = arith.subf %111, %114 : vector<2x24x24xf32>
    %116 = math.exp %115 : vector<2x24x24xf32>
    %cst_36 = arith.constant dense<0.000000e+00> : vector<2x24xf32>
    %117 = vector.multi_reduction <add>, %116, %cst_36 [2] : vector<2x24x24xf32> to vector<2x24xf32>
    %118 = vector.shape_cast %117 : vector<2x24xf32> to vector<2x24x1xf32>
    %119 = tpu.reciprocal %118 {approx = true} : vector<2x24x1xf32> -> vector<2x24x1xf32>
    %120 = vector.broadcast %119 : vector<2x24x1xf32> to vector<2x24x24xf32>
    %121 = arith.mulf %116, %120 : vector<2x24x24xf32>
    %122 = arith.truncf %121 : vector<2x24x24xf32> to vector<2x24x24xbf16>
    %cst_37 = arith.constant dense<0.000000e+00> : vector<2x24x8xf32>
    %123 = tpu.matmul %122, %104, %cst_37 {dimension_numbers = #tpu.dot_dimension_numbers<[2], [1], [1], [2], [0, 0, 0, 1, 1, 2], [0], [0]>} : vector<2x24x24xbf16>, vector<2x24x8xbf16>, vector<2x24x8xf32> -> vector<2x24x8xf32>
    %124 = vector.shape_cast %123 : vector<2x24x8xf32> to vector<48x8xf32>
    %125 = vector.extract_strided_slice %37 {offsets = [0, 24], sizes = [48, 8], strides = [1, 1]} : vector<48x96xf32> to vector<48x8xf32>
    %126 = vector.extract_strided_slice %37 {offsets = [0, 56], sizes = [48, 8], strides = [1, 1]} : vector<48x96xf32> to vector<48x8xf32>
    %127 = vector.extract_strided_slice %37 {offsets = [0, 88], sizes = [48, 8], strides = [1, 1]} : vector<48x96xf32> to vector<48x8xf32>
    %128 = vector.shape_cast %125 : vector<48x8xf32> to vector<2x24x8xf32>
    %129 = arith.truncf %128 : vector<2x24x8xf32> to vector<2x24x8xbf16>
    %130 = vector.shape_cast %126 : vector<48x8xf32> to vector<2x24x8xf32>
    %131 = arith.truncf %130 : vector<2x24x8xf32> to vector<2x24x8xbf16>
    %132 = vector.shape_cast %127 : vector<48x8xf32> to vector<2x24x8xf32>
    %133 = arith.truncf %132 : vector<2x24x8xf32> to vector<2x24x8xbf16>
    %cst_38 = arith.constant dense<0.000000e+00> : vector<2x24x24xf32>
    %134 = tpu.matmul %129, %131, %cst_38 {dimension_numbers = #tpu.dot_dimension_numbers<[2], [2], [1], [1], [0, 0, 0, 1, 1, 1], [0], [0]>} : vector<2x24x8xbf16>, vector<2x24x8xbf16>, vector<2x24x24xf32> -> vector<2x24x24xf32>
    %cst_39 = arith.constant 0.353553385 : f32
    %135 = vector.broadcast %cst_39 : f32 to vector<2x24x24xf32>
    %136 = arith.mulf %134, %135 : vector<2x24x24xf32>
    %cst_40 = arith.constant -1.000000e+30 : f32
    %137 = vector.shape_cast %7 : vector<1x24x24xi1> to vector<1x24x24xi1>
    %138 = vector.broadcast %137 : vector<1x24x24xi1> to vector<2x24x24xi1>
    %139 = vector.broadcast %cst_40 : f32 to vector<2x24x24xf32>
    %140 = arith.select %138, %136, %139 : vector<2x24x24xi1>, vector<2x24x24xf32>
    %cst_41 = arith.constant dense<0xFF800000> : vector<2x24xf32>
    %141 = vector.multi_reduction <maximumf>, %140, %cst_41 [2] : vector<2x24x24xf32> to vector<2x24xf32>
    %142 = vector.shape_cast %141 : vector<2x24xf32> to vector<2x24x1xf32>
    %143 = vector.broadcast %142 : vector<2x24x1xf32> to vector<2x24x24xf32>
    %144 = arith.subf %140, %143 : vector<2x24x24xf32>
    %145 = math.exp %144 : vector<2x24x24xf32>
    %cst_42 = arith.constant dense<0.000000e+00> : vector<2x24xf32>
    %146 = vector.multi_reduction <add>, %145, %cst_42 [2] : vector<2x24x24xf32> to vector<2x24xf32>
    %147 = vector.shape_cast %146 : vector<2x24xf32> to vector<2x24x1xf32>
    %148 = tpu.reciprocal %147 {approx = true} : vector<2x24x1xf32> -> vector<2x24x1xf32>
    %149 = vector.broadcast %148 : vector<2x24x1xf32> to vector<2x24x24xf32>
    %150 = arith.mulf %145, %149 : vector<2x24x24xf32>
    %151 = arith.truncf %150 : vector<2x24x24xf32> to vector<2x24x24xbf16>
    %cst_43 = arith.constant dense<0.000000e+00> : vector<2x24x8xf32>
    %152 = tpu.matmul %151, %133, %cst_43 {dimension_numbers = #tpu.dot_dimension_numbers<[2], [1], [1], [2], [0, 0, 0, 1, 1, 2], [0], [0]>} : vector<2x24x24xbf16>, vector<2x24x8xbf16>, vector<2x24x8xf32> -> vector<2x24x8xf32>
    %153 = vector.shape_cast %152 : vector<2x24x8xf32> to vector<48x8xf32>
    %154 = tpu.concatenate %66, %95, %124, %153 in 1 : vector<48x8xf32>, vector<48x8xf32>, vector<48x8xf32>, vector<48x8xf32> -> vector<48x32xf32>
    %c0_44 = arith.constant 0 : index
    %c0_45 = arith.constant 0 : index
    %c0_46 = arith.constant 0 : index
    %155 = vector.load %arg6[%c0_44, %c0_45, %c0_46] : memref<2x32x32xbf16, #tpu.memory_space<vmem>>, vector<1x32x32xbf16>
    %156 = vector.shape_cast %155 : vector<1x32x32xbf16> to vector<32x32xbf16>
    %157 = arith.truncf %154 : vector<48x32xf32> to vector<48x32xbf16>
    %cst_47 = arith.constant dense<0.000000e+00> : vector<48x32xf32>
    %158 = tpu.matmul %157, %156, %cst_47 {dimension_numbers = #tpu.dot_dimension_numbers<[1], [0], [0], [1], [0, 0, 1, 1], [], []>} : vector<48x32xbf16>, vector<32x32xbf16>, vector<48x32xf32> -> vector<48x32xf32>
    %159 = arith.addf %4, %158 : vector<48x32xf32>
    %c0_48 = arith.constant 0 : index
    %c0_49 = arith.constant 0 : index
    %c0_50 = arith.constant 0 : index
    %160 = vector.load %arg7[%c0_48, %c0_49, %c0_50] : memref<2x1x32xf32, #tpu.memory_space<vmem>>, vector<1x1x32xf32>
    %161 = vector.shape_cast %160 : vector<1x1x32xf32> to vector<1x32xf32>
    %162 = vector.broadcast %161 : vector<1x32xf32> to vector<48x32xf32>
    %163 = arith.addf %159, %162 : vector<48x32xf32>
    %c0_51 = arith.constant 0 : index
    %c0_52 = arith.constant 0 : index
    %c0_53 = arith.constant 0 : index
    %164 = vector.load %arg8[%c0_51, %c0_52, %c0_53] : memref<2x1x32xf32, #tpu.memory_space<vmem>>, vector<1x1x32xf32>
    %165 = vector.shape_cast %164 : vector<1x1x32xf32> to vector<1x32xf32>
    %c0_54 = arith.constant 0 : index
    %c0_55 = arith.constant 0 : index
    %c0_56 = arith.constant 0 : index
    %166 = vector.load %arg9[%c0_54, %c0_55, %c0_56] : memref<2x1x32xf32, #tpu.memory_space<vmem>>, vector<1x1x32xf32>
    %167 = vector.shape_cast %166 : vector<1x1x32xf32> to vector<1x32xf32>
    %cst_57 = arith.constant dense<0.000000e+00> : vector<48xf32>
    %168 = vector.multi_reduction <add>, %163, %cst_57 [1] : vector<48x32xf32> to vector<48xf32>
    %169 = vector.shape_cast %168 : vector<48xf32> to vector<48x1xf32>
    %cst_58 = arith.constant 3.200000e+01 : f32
    %170 = vector.broadcast %cst_58 : f32 to vector<48x1xf32>
    %171 = arith.divf %169, %170 : vector<48x1xf32>
    %172 = vector.broadcast %171 : vector<48x1xf32> to vector<48x32xf32>
    %173 = arith.subf %163, %172 : vector<48x32xf32>
    %174 = arith.mulf %173, %173 : vector<48x32xf32>
    %cst_59 = arith.constant dense<0.000000e+00> : vector<48xf32>
    %175 = vector.multi_reduction <add>, %174, %cst_59 [1] : vector<48x32xf32> to vector<48xf32>
    %176 = vector.shape_cast %175 : vector<48xf32> to vector<48x1xf32>
    %cst_60 = arith.constant 3.200000e+01 : f32
    %177 = vector.broadcast %cst_60 : f32 to vector<48x1xf32>
    %178 = arith.divf %176, %177 : vector<48x1xf32>
    %179 = vector.broadcast %171 : vector<48x1xf32> to vector<48x32xf32>
    %180 = arith.subf %163, %179 : vector<48x32xf32>
    %cst_61 = arith.constant 9.99999974E-6 : f32
    %181 = vector.broadcast %cst_61 : f32 to vector<48x1xf32>
    %182 = arith.addf %178, %181 : vector<48x1xf32>
    %183 = math.rsqrt %182 : vector<48x1xf32>
    %184 = vector.broadcast %183 : vector<48x1xf32> to vector<48x32xf32>
    %185 = arith.mulf %180, %184 : vector<48x32xf32>
    %186 = vector.broadcast %165 : vector<1x32xf32> to vector<48x32xf32>
    %187 = arith.mulf %185, %186 : vector<48x32xf32>
    %188 = vector.broadcast %167 : vector<1x32xf32> to vector<48x32xf32>
    %189 = arith.addf %187, %188 : vector<48x32xf32>
    %c0_62 = arith.constant 0 : index
    %c0_63 = arith.constant 0 : index
    %c0_64 = arith.constant 0 : index
    %190 = vector.load %arg10[%c0_62, %c0_63, %c0_64] : memref<2x32x64xbf16, #tpu.memory_space<vmem>>, vector<1x32x64xbf16>
    %191 = vector.shape_cast %190 : vector<1x32x64xbf16> to vector<32x64xbf16>
    %192 = arith.truncf %189 : vector<48x32xf32> to vector<48x32xbf16>
    %cst_65 = arith.constant dense<0.000000e+00> : vector<48x64xf32>
    %193 = tpu.matmul %192, %191, %cst_65 {dimension_numbers = #tpu.dot_dimension_numbers<[1], [0], [0], [1], [0, 0, 1, 1], [], []>} : vector<48x32xbf16>, vector<32x64xbf16>, vector<48x64xf32> -> vector<48x64xf32>
    %c0_66 = arith.constant 0 : index
    %c0_67 = arith.constant 0 : index
    %c0_68 = arith.constant 0 : index
    %194 = vector.load %arg11[%c0_66, %c0_67, %c0_68] : memref<2x1x64xf32, #tpu.memory_space<vmem>>, vector<1x1x64xf32>
    %195 = vector.shape_cast %194 : vector<1x1x64xf32> to vector<1x64xf32>
    %196 = vector.broadcast %195 : vector<1x64xf32> to vector<48x64xf32>
    %197 = arith.addf %193, %196 : vector<48x64xf32>
    %cst_69 = arith.constant 5.000000e-01 : f32
    %198 = vector.broadcast %cst_69 : f32 to vector<48x64xf32>
    %199 = arith.mulf %198, %197 : vector<48x64xf32>
    %cst_70 = arith.constant 4.471500e-02 : f32
    %200 = vector.broadcast %cst_70 : f32 to vector<48x64xf32>
    %201 = arith.mulf %200, %197 : vector<48x64xf32>
    %202 = arith.mulf %201, %197 : vector<48x64xf32>
    %203 = arith.mulf %202, %197 : vector<48x64xf32>
    %204 = arith.addf %197, %203 : vector<48x64xf32>
    %cst_71 = arith.constant 0.797884583 : f32
    %205 = vector.broadcast %cst_71 : f32 to vector<48x64xf32>
    %206 = arith.mulf %205, %204 : vector<48x64xf32>
    %207 = math.tanh %206 : vector<48x64xf32>
    %cst_72 = arith.constant 1.000000e+00 : f32
    %208 = vector.broadcast %cst_72 : f32 to vector<48x64xf32>
    %209 = arith.addf %208, %207 : vector<48x64xf32>
    %210 = arith.mulf %199, %209 : vector<48x64xf32>
    %c0_73 = arith.constant 0 : index
    %c0_74 = arith.constant 0 : index
    %c0_75 = arith.constant 0 : index
    %211 = vector.load %arg12[%c0_73, %c0_74, %c0_75] : memref<2x64x32xbf16, #tpu.memory_space<vmem>>, vector<1x64x32xbf16>
    %212 = vector.shape_cast %211 : vector<1x64x32xbf16> to vector<64x32xbf16>
    %213 = arith.truncf %210 : vector<48x64xf32> to vector<48x64xbf16>
    %cst_76 = arith.constant dense<0.000000e+00> : vector<48x32xf32>
    %214 = tpu.matmul %213, %212, %cst_76 {dimension_numbers = #tpu.dot_dimension_numbers<[1], [0], [0], [1], [0, 0, 1, 1], [], []>} : vector<48x64xbf16>, vector<64x32xbf16>, vector<48x32xf32> -> vector<48x32xf32>
    %215 = arith.addf %163, %214 : vector<48x32xf32>
    %c0_77 = arith.constant 0 : index
    %c0_78 = arith.constant 0 : index
    %c0_79 = arith.constant 0 : index
    %216 = vector.load %arg13[%c0_77, %c0_78, %c0_79] : memref<2x1x32xf32, #tpu.memory_space<vmem>>, vector<1x1x32xf32>
    %217 = vector.shape_cast %216 : vector<1x1x32xf32> to vector<1x32xf32>
    %218 = vector.broadcast %217 : vector<1x32xf32> to vector<48x32xf32>
    %219 = arith.addf %215, %218 : vector<48x32xf32>
    %c1 = arith.constant 1 : index
    %c0_80 = arith.constant 0 : index
    %c0_81 = arith.constant 0 : index
    %220 = vector.load %arg3[%c1, %c0_80, %c0_81] : memref<2x1x32xf32, #tpu.memory_space<vmem>>, vector<1x1x32xf32>
    %221 = vector.shape_cast %220 : vector<1x1x32xf32> to vector<1x32xf32>
    %c1_82 = arith.constant 1 : index
    %c0_83 = arith.constant 0 : index
    %c0_84 = arith.constant 0 : index
    %222 = vector.load %arg4[%c1_82, %c0_83, %c0_84] : memref<2x1x32xf32, #tpu.memory_space<vmem>>, vector<1x1x32xf32>
    %223 = vector.shape_cast %222 : vector<1x1x32xf32> to vector<1x32xf32>
    %cst_85 = arith.constant dense<0.000000e+00> : vector<48xf32>
    %224 = vector.multi_reduction <add>, %219, %cst_85 [1] : vector<48x32xf32> to vector<48xf32>
    %225 = vector.shape_cast %224 : vector<48xf32> to vector<48x1xf32>
    %cst_86 = arith.constant 3.200000e+01 : f32
    %226 = vector.broadcast %cst_86 : f32 to vector<48x1xf32>
    %227 = arith.divf %225, %226 : vector<48x1xf32>
    %228 = vector.broadcast %227 : vector<48x1xf32> to vector<48x32xf32>
    %229 = arith.subf %219, %228 : vector<48x32xf32>
    %230 = arith.mulf %229, %229 : vector<48x32xf32>
    %cst_87 = arith.constant dense<0.000000e+00> : vector<48xf32>
    %231 = vector.multi_reduction <add>, %230, %cst_87 [1] : vector<48x32xf32> to vector<48xf32>
    %232 = vector.shape_cast %231 : vector<48xf32> to vector<48x1xf32>
    %cst_88 = arith.constant 3.200000e+01 : f32
    %233 = vector.broadcast %cst_88 : f32 to vector<48x1xf32>
    %234 = arith.divf %232, %233 : vector<48x1xf32>
    %235 = vector.broadcast %227 : vector<48x1xf32> to vector<48x32xf32>
    %236 = arith.subf %219, %235 : vector<48x32xf32>
    %cst_89 = arith.constant 9.99999974E-6 : f32
    %237 = vector.broadcast %cst_89 : f32 to vector<48x1xf32>
    %238 = arith.addf %234, %237 : vector<48x1xf32>
    %239 = math.rsqrt %238 : vector<48x1xf32>
    %240 = vector.broadcast %239 : vector<48x1xf32> to vector<48x32xf32>
    %241 = arith.mulf %236, %240 : vector<48x32xf32>
    %242 = vector.broadcast %221 : vector<1x32xf32> to vector<48x32xf32>
    %243 = arith.mulf %241, %242 : vector<48x32xf32>
    %244 = vector.broadcast %223 : vector<1x32xf32> to vector<48x32xf32>
    %245 = arith.addf %243, %244 : vector<48x32xf32>
    %c1_90 = arith.constant 1 : index
    %c0_91 = arith.constant 0 : index
    %c0_92 = arith.constant 0 : index
    %246 = vector.load %arg5[%c1_90, %c0_91, %c0_92] : memref<2x32x96xbf16, #tpu.memory_space<vmem>>, vector<1x32x96xbf16>
    %247 = vector.shape_cast %246 : vector<1x32x96xbf16> to vector<32x96xbf16>
    %248 = arith.truncf %245 : vector<48x32xf32> to vector<48x32xbf16>
    %cst_93 = arith.constant dense<0.000000e+00> : vector<48x96xf32>
    %249 = tpu.matmul %248, %247, %cst_93 {dimension_numbers = #tpu.dot_dimension_numbers<[1], [0], [0], [1], [0, 0, 1, 1], [], []>} : vector<48x32xbf16>, vector<32x96xbf16>, vector<48x96xf32> -> vector<48x96xf32>
    %250 = vector.extract_strided_slice %249 {offsets = [0, 0], sizes = [48, 8], strides = [1, 1]} : vector<48x96xf32> to vector<48x8xf32>
    %251 = vector.extract_strided_slice %249 {offsets = [0, 32], sizes = [48, 8], strides = [1, 1]} : vector<48x96xf32> to vector<48x8xf32>
    %252 = vector.extract_strided_slice %249 {offsets = [0, 64], sizes = [48, 8], strides = [1, 1]} : vector<48x96xf32> to vector<48x8xf32>
    %253 = vector.shape_cast %250 : vector<48x8xf32> to vector<2x24x8xf32>
    %254 = arith.truncf %253 : vector<2x24x8xf32> to vector<2x24x8xbf16>
    %255 = vector.shape_cast %251 : vector<48x8xf32> to vector<2x24x8xf32>
    %256 = arith.truncf %255 : vector<2x24x8xf32> to vector<2x24x8xbf16>
    %257 = vector.shape_cast %252 : vector<48x8xf32> to vector<2x24x8xf32>
    %258 = arith.truncf %257 : vector<2x24x8xf32> to vector<2x24x8xbf16>
    %cst_94 = arith.constant dense<0.000000e+00> : vector<2x24x24xf32>
    %259 = tpu.matmul %254, %256, %cst_94 {dimension_numbers = #tpu.dot_dimension_numbers<[2], [2], [1], [1], [0, 0, 0, 1, 1, 1], [0], [0]>} : vector<2x24x8xbf16>, vector<2x24x8xbf16>, vector<2x24x24xf32> -> vector<2x24x24xf32>
    %cst_95 = arith.constant 0.353553385 : f32
    %260 = vector.broadcast %cst_95 : f32 to vector<2x24x24xf32>
    %261 = arith.mulf %259, %260 : vector<2x24x24xf32>
    %cst_96 = arith.constant -1.000000e+30 : f32
    %262 = vector.shape_cast %7 : vector<1x24x24xi1> to vector<1x24x24xi1>
    %263 = vector.broadcast %262 : vector<1x24x24xi1> to vector<2x24x24xi1>
    %264 = vector.broadcast %cst_96 : f32 to vector<2x24x24xf32>
    %265 = arith.select %263, %261, %264 : vector<2x24x24xi1>, vector<2x24x24xf32>
    %cst_97 = arith.constant dense<0xFF800000> : vector<2x24xf32>
    %266 = vector.multi_reduction <maximumf>, %265, %cst_97 [2] : vector<2x24x24xf32> to vector<2x24xf32>
    %267 = vector.shape_cast %266 : vector<2x24xf32> to vector<2x24x1xf32>
    %268 = vector.broadcast %267 : vector<2x24x1xf32> to vector<2x24x24xf32>
    %269 = arith.subf %265, %268 : vector<2x24x24xf32>
    %270 = math.exp %269 : vector<2x24x24xf32>
    %cst_98 = arith.constant dense<0.000000e+00> : vector<2x24xf32>
    %271 = vector.multi_reduction <add>, %270, %cst_98 [2] : vector<2x24x24xf32> to vector<2x24xf32>
    %272 = vector.shape_cast %271 : vector<2x24xf32> to vector<2x24x1xf32>
    %273 = tpu.reciprocal %272 {approx = true} : vector<2x24x1xf32> -> vector<2x24x1xf32>
    %274 = vector.broadcast %273 : vector<2x24x1xf32> to vector<2x24x24xf32>
    %275 = arith.mulf %270, %274 : vector<2x24x24xf32>
    %276 = arith.truncf %275 : vector<2x24x24xf32> to vector<2x24x24xbf16>
    %cst_99 = arith.constant dense<0.000000e+00> : vector<2x24x8xf32>
    %277 = tpu.matmul %276, %258, %cst_99 {dimension_numbers = #tpu.dot_dimension_numbers<[2], [1], [1], [2], [0, 0, 0, 1, 1, 2], [0], [0]>} : vector<2x24x24xbf16>, vector<2x24x8xbf16>, vector<2x24x8xf32> -> vector<2x24x8xf32>
    %278 = vector.shape_cast %277 : vector<2x24x8xf32> to vector<48x8xf32>
    %279 = vector.extract_strided_slice %249 {offsets = [0, 8], sizes = [48, 8], strides = [1, 1]} : vector<48x96xf32> to vector<48x8xf32>
    %280 = vector.extract_strided_slice %249 {offsets = [0, 40], sizes = [48, 8], strides = [1, 1]} : vector<48x96xf32> to vector<48x8xf32>
    %281 = vector.extract_strided_slice %249 {offsets = [0, 72], sizes = [48, 8], strides = [1, 1]} : vector<48x96xf32> to vector<48x8xf32>
    %282 = vector.shape_cast %279 : vector<48x8xf32> to vector<2x24x8xf32>
    %283 = arith.truncf %282 : vector<2x24x8xf32> to vector<2x24x8xbf16>
    %284 = vector.shape_cast %280 : vector<48x8xf32> to vector<2x24x8xf32>
    %285 = arith.truncf %284 : vector<2x24x8xf32> to vector<2x24x8xbf16>
    %286 = vector.shape_cast %281 : vector<48x8xf32> to vector<2x24x8xf32>
    %287 = arith.truncf %286 : vector<2x24x8xf32> to vector<2x24x8xbf16>
    %cst_100 = arith.constant dense<0.000000e+00> : vector<2x24x24xf32>
    %288 = tpu.matmul %283, %285, %cst_100 {dimension_numbers = #tpu.dot_dimension_numbers<[2], [2], [1], [1], [0, 0, 0, 1, 1, 1], [0], [0]>} : vector<2x24x8xbf16>, vector<2x24x8xbf16>, vector<2x24x24xf32> -> vector<2x24x24xf32>
    %cst_101 = arith.constant 0.353553385 : f32
    %289 = vector.broadcast %cst_101 : f32 to vector<2x24x24xf32>
    %290 = arith.mulf %288, %289 : vector<2x24x24xf32>
    %cst_102 = arith.constant -1.000000e+30 : f32
    %291 = vector.shape_cast %7 : vector<1x24x24xi1> to vector<1x24x24xi1>
    %292 = vector.broadcast %291 : vector<1x24x24xi1> to vector<2x24x24xi1>
    %293 = vector.broadcast %cst_102 : f32 to vector<2x24x24xf32>
    %294 = arith.select %292, %290, %293 : vector<2x24x24xi1>, vector<2x24x24xf32>
    %cst_103 = arith.constant dense<0xFF800000> : vector<2x24xf32>
    %295 = vector.multi_reduction <maximumf>, %294, %cst_103 [2] : vector<2x24x24xf32> to vector<2x24xf32>
    %296 = vector.shape_cast %295 : vector<2x24xf32> to vector<2x24x1xf32>
    %297 = vector.broadcast %296 : vector<2x24x1xf32> to vector<2x24x24xf32>
    %298 = arith.subf %294, %297 : vector<2x24x24xf32>
    %299 = math.exp %298 : vector<2x24x24xf32>
    %cst_104 = arith.constant dense<0.000000e+00> : vector<2x24xf32>
    %300 = vector.multi_reduction <add>, %299, %cst_104 [2] : vector<2x24x24xf32> to vector<2x24xf32>
    %301 = vector.shape_cast %300 : vector<2x24xf32> to vector<2x24x1xf32>
    %302 = tpu.reciprocal %301 {approx = true} : vector<2x24x1xf32> -> vector<2x24x1xf32>
    %303 = vector.broadcast %302 : vector<2x24x1xf32> to vector<2x24x24xf32>
    %304 = arith.mulf %299, %303 : vector<2x24x24xf32>
    %305 = arith.truncf %304 : vector<2x24x24xf32> to vector<2x24x24xbf16>
    %cst_105 = arith.constant dense<0.000000e+00> : vector<2x24x8xf32>
    %306 = tpu.matmul %305, %287, %cst_105 {dimension_numbers = #tpu.dot_dimension_numbers<[2], [1], [1], [2], [0, 0, 0, 1, 1, 2], [0], [0]>} : vector<2x24x24xbf16>, vector<2x24x8xbf16>, vector<2x24x8xf32> -> vector<2x24x8xf32>
    %307 = vector.shape_cast %306 : vector<2x24x8xf32> to vector<48x8xf32>
    %308 = vector.extract_strided_slice %249 {offsets = [0, 16], sizes = [48, 8], strides = [1, 1]} : vector<48x96xf32> to vector<48x8xf32>
    %309 = vector.extract_strided_slice %249 {offsets = [0, 48], sizes = [48, 8], strides = [1, 1]} : vector<48x96xf32> to vector<48x8xf32>
    %310 = vector.extract_strided_slice %249 {offsets = [0, 80], sizes = [48, 8], strides = [1, 1]} : vector<48x96xf32> to vector<48x8xf32>
    %311 = vector.shape_cast %308 : vector<48x8xf32> to vector<2x24x8xf32>
    %312 = arith.truncf %311 : vector<2x24x8xf32> to vector<2x24x8xbf16>
    %313 = vector.shape_cast %309 : vector<48x8xf32> to vector<2x24x8xf32>
    %314 = arith.truncf %313 : vector<2x24x8xf32> to vector<2x24x8xbf16>
    %315 = vector.shape_cast %310 : vector<48x8xf32> to vector<2x24x8xf32>
    %316 = arith.truncf %315 : vector<2x24x8xf32> to vector<2x24x8xbf16>
    %cst_106 = arith.constant dense<0.000000e+00> : vector<2x24x24xf32>
    %317 = tpu.matmul %312, %314, %cst_106 {dimension_numbers = #tpu.dot_dimension_numbers<[2], [2], [1], [1], [0, 0, 0, 1, 1, 1], [0], [0]>} : vector<2x24x8xbf16>, vector<2x24x8xbf16>, vector<2x24x24xf32> -> vector<2x24x24xf32>
    %cst_107 = arith.constant 0.353553385 : f32
    %318 = vector.broadcast %cst_107 : f32 to vector<2x24x24xf32>
    %319 = arith.mulf %317, %318 : vector<2x24x24xf32>
    %cst_108 = arith.constant -1.000000e+30 : f32
    %320 = vector.shape_cast %7 : vector<1x24x24xi1> to vector<1x24x24xi1>
    %321 = vector.broadcast %320 : vector<1x24x24xi1> to vector<2x24x24xi1>
    %322 = vector.broadcast %cst_108 : f32 to vector<2x24x24xf32>
    %323 = arith.select %321, %319, %322 : vector<2x24x24xi1>, vector<2x24x24xf32>
    %cst_109 = arith.constant dense<0xFF800000> : vector<2x24xf32>
    %324 = vector.multi_reduction <maximumf>, %323, %cst_109 [2] : vector<2x24x24xf32> to vector<2x24xf32>
    %325 = vector.shape_cast %324 : vector<2x24xf32> to vector<2x24x1xf32>
    %326 = vector.broadcast %325 : vector<2x24x1xf32> to vector<2x24x24xf32>
    %327 = arith.subf %323, %326 : vector<2x24x24xf32>
    %328 = math.exp %327 : vector<2x24x24xf32>
    %cst_110 = arith.constant dense<0.000000e+00> : vector<2x24xf32>
    %329 = vector.multi_reduction <add>, %328, %cst_110 [2] : vector<2x24x24xf32> to vector<2x24xf32>
    %330 = vector.shape_cast %329 : vector<2x24xf32> to vector<2x24x1xf32>
    %331 = tpu.reciprocal %330 {approx = true} : vector<2x24x1xf32> -> vector<2x24x1xf32>
    %332 = vector.broadcast %331 : vector<2x24x1xf32> to vector<2x24x24xf32>
    %333 = arith.mulf %328, %332 : vector<2x24x24xf32>
    %334 = arith.truncf %333 : vector<2x24x24xf32> to vector<2x24x24xbf16>
    %cst_111 = arith.constant dense<0.000000e+00> : vector<2x24x8xf32>
    %335 = tpu.matmul %334, %316, %cst_111 {dimension_numbers = #tpu.dot_dimension_numbers<[2], [1], [1], [2], [0, 0, 0, 1, 1, 2], [0], [0]>} : vector<2x24x24xbf16>, vector<2x24x8xbf16>, vector<2x24x8xf32> -> vector<2x24x8xf32>
    %336 = vector.shape_cast %335 : vector<2x24x8xf32> to vector<48x8xf32>
    %337 = vector.extract_strided_slice %249 {offsets = [0, 24], sizes = [48, 8], strides = [1, 1]} : vector<48x96xf32> to vector<48x8xf32>
    %338 = vector.extract_strided_slice %249 {offsets = [0, 56], sizes = [48, 8], strides = [1, 1]} : vector<48x96xf32> to vector<48x8xf32>
    %339 = vector.extract_strided_slice %249 {offsets = [0, 88], sizes = [48, 8], strides = [1, 1]} : vector<48x96xf32> to vector<48x8xf32>
    %340 = vector.shape_cast %337 : vector<48x8xf32> to vector<2x24x8xf32>
    %341 = arith.truncf %340 : vector<2x24x8xf32> to vector<2x24x8xbf16>
    %342 = vector.shape_cast %338 : vector<48x8xf32> to vector<2x24x8xf32>
    %343 = arith.truncf %342 : vector<2x24x8xf32> to vector<2x24x8xbf16>
    %344 = vector.shape_cast %339 : vector<48x8xf32> to vector<2x24x8xf32>
    %345 = arith.truncf %344 : vector<2x24x8xf32> to vector<2x24x8xbf16>
    %cst_112 = arith.constant dense<0.000000e+00> : vector<2x24x24xf32>
    %346 = tpu.matmul %341, %343, %cst_112 {dimension_numbers = #tpu.dot_dimension_numbers<[2], [2], [1], [1], [0, 0, 0, 1, 1, 1], [0], [0]>} : vector<2x24x8xbf16>, vector<2x24x8xbf16>, vector<2x24x24xf32> -> vector<2x24x24xf32>
    %cst_113 = arith.constant 0.353553385 : f32
    %347 = vector.broadcast %cst_113 : f32 to vector<2x24x24xf32>
    %348 = arith.mulf %346, %347 : vector<2x24x24xf32>
    %cst_114 = arith.constant -1.000000e+30 : f32
    %349 = vector.shape_cast %7 : vector<1x24x24xi1> to vector<1x24x24xi1>
    %350 = vector.broadcast %349 : vector<1x24x24xi1> to vector<2x24x24xi1>
    %351 = vector.broadcast %cst_114 : f32 to vector<2x24x24xf32>
    %352 = arith.select %350, %348, %351 : vector<2x24x24xi1>, vector<2x24x24xf32>
    %cst_115 = arith.constant dense<0xFF800000> : vector<2x24xf32>
    %353 = vector.multi_reduction <maximumf>, %352, %cst_115 [2] : vector<2x24x24xf32> to vector<2x24xf32>
    %354 = vector.shape_cast %353 : vector<2x24xf32> to vector<2x24x1xf32>
    %355 = vector.broadcast %354 : vector<2x24x1xf32> to vector<2x24x24xf32>
    %356 = arith.subf %352, %355 : vector<2x24x24xf32>
    %357 = math.exp %356 : vector<2x24x24xf32>
    %cst_116 = arith.constant dense<0.000000e+00> : vector<2x24xf32>
    %358 = vector.multi_reduction <add>, %357, %cst_116 [2] : vector<2x24x24xf32> to vector<2x24xf32>
    %359 = vector.shape_cast %358 : vector<2x24xf32> to vector<2x24x1xf32>
    %360 = tpu.reciprocal %359 {approx = true} : vector<2x24x1xf32> -> vector<2x24x1xf32>
    %361 = vector.broadcast %360 : vector<2x24x1xf32> to vector<2x24x24xf32>
    %362 = arith.mulf %357, %361 : vector<2x24x24xf32>
    %363 = arith.truncf %362 : vector<2x24x24xf32> to vector<2x24x24xbf16>
    %cst_117 = arith.constant dense<0.000000e+00> : vector<2x24x8xf32>
    %364 = tpu.matmul %363, %345, %cst_117 {dimension_numbers = #tpu.dot_dimension_numbers<[2], [1], [1], [2], [0, 0, 0, 1, 1, 2], [0], [0]>} : vector<2x24x24xbf16>, vector<2x24x8xbf16>, vector<2x24x8xf32> -> vector<2x24x8xf32>
    %365 = vector.shape_cast %364 : vector<2x24x8xf32> to vector<48x8xf32>
    %366 = tpu.concatenate %278, %307, %336, %365 in 1 : vector<48x8xf32>, vector<48x8xf32>, vector<48x8xf32>, vector<48x8xf32> -> vector<48x32xf32>
    %c1_118 = arith.constant 1 : index
    %c0_119 = arith.constant 0 : index
    %c0_120 = arith.constant 0 : index
    %367 = vector.load %arg6[%c1_118, %c0_119, %c0_120] : memref<2x32x32xbf16, #tpu.memory_space<vmem>>, vector<1x32x32xbf16>
    %368 = vector.shape_cast %367 : vector<1x32x32xbf16> to vector<32x32xbf16>
    %369 = arith.truncf %366 : vector<48x32xf32> to vector<48x32xbf16>
    %cst_121 = arith.constant dense<0.000000e+00> : vector<48x32xf32>
    %370 = tpu.matmul %369, %368, %cst_121 {dimension_numbers = #tpu.dot_dimension_numbers<[1], [0], [0], [1], [0, 0, 1, 1], [], []>} : vector<48x32xbf16>, vector<32x32xbf16>, vector<48x32xf32> -> vector<48x32xf32>
    %371 = arith.addf %219, %370 : vector<48x32xf32>
    %c1_122 = arith.constant 1 : index
    %c0_123 = arith.constant 0 : index
    %c0_124 = arith.constant 0 : index
    %372 = vector.load %arg7[%c1_122, %c0_123, %c0_124] : memref<2x1x32xf32, #tpu.memory_space<vmem>>, vector<1x1x32xf32>
    %373 = vector.shape_cast %372 : vector<1x1x32xf32> to vector<1x32xf32>
    %374 = vector.broadcast %373 : vector<1x32xf32> to vector<48x32xf32>
    %375 = arith.addf %371, %374 : vector<48x32xf32>
    %c1_125 = arith.constant 1 : index
    %c0_126 = arith.constant 0 : index
    %c0_127 = arith.constant 0 : index
    %376 = vector.load %arg8[%c1_125, %c0_126, %c0_127] : memref<2x1x32xf32, #tpu.memory_space<vmem>>, vector<1x1x32xf32>
    %377 = vector.shape_cast %376 : vector<1x1x32xf32> to vector<1x32xf32>
    %c1_128 = arith.constant 1 : index
    %c0_129 = arith.constant 0 : index
    %c0_130 = arith.constant 0 : index
    %378 = vector.load %arg9[%c1_128, %c0_129, %c0_130] : memref<2x1x32xf32, #tpu.memory_space<vmem>>, vector<1x1x32xf32>
    %379 = vector.shape_cast %378 : vector<1x1x32xf32> to vector<1x32xf32>
    %cst_131 = arith.constant dense<0.000000e+00> : vector<48xf32>
    %380 = vector.multi_reduction <add>, %375, %cst_131 [1] : vector<48x32xf32> to vector<48xf32>
    %381 = vector.shape_cast %380 : vector<48xf32> to vector<48x1xf32>
    %cst_132 = arith.constant 3.200000e+01 : f32
    %382 = vector.broadcast %cst_132 : f32 to vector<48x1xf32>
    %383 = arith.divf %381, %382 : vector<48x1xf32>
    %384 = vector.broadcast %383 : vector<48x1xf32> to vector<48x32xf32>
    %385 = arith.subf %375, %384 : vector<48x32xf32>
    %386 = arith.mulf %385, %385 : vector<48x32xf32>
    %cst_133 = arith.constant dense<0.000000e+00> : vector<48xf32>
    %387 = vector.multi_reduction <add>, %386, %cst_133 [1] : vector<48x32xf32> to vector<48xf32>
    %388 = vector.shape_cast %387 : vector<48xf32> to vector<48x1xf32>
    %cst_134 = arith.constant 3.200000e+01 : f32
    %389 = vector.broadcast %cst_134 : f32 to vector<48x1xf32>
    %390 = arith.divf %388, %389 : vector<48x1xf32>
    %391 = vector.broadcast %383 : vector<48x1xf32> to vector<48x32xf32>
    %392 = arith.subf %375, %391 : vector<48x32xf32>
    %cst_135 = arith.constant 9.99999974E-6 : f32
    %393 = vector.broadcast %cst_135 : f32 to vector<48x1xf32>
    %394 = arith.addf %390, %393 : vector<48x1xf32>
    %395 = math.rsqrt %394 : vector<48x1xf32>
    %396 = vector.broadcast %395 : vector<48x1xf32> to vector<48x32xf32>
    %397 = arith.mulf %392, %396 : vector<48x32xf32>
    %398 = vector.broadcast %377 : vector<1x32xf32> to vector<48x32xf32>
    %399 = arith.mulf %397, %398 : vector<48x32xf32>
    %400 = vector.broadcast %379 : vector<1x32xf32> to vector<48x32xf32>
    %401 = arith.addf %399, %400 : vector<48x32xf32>
    %c1_136 = arith.constant 1 : index
    %c0_137 = arith.constant 0 : index
    %c0_138 = arith.constant 0 : index
    %402 = vector.load %arg10[%c1_136, %c0_137, %c0_138] : memref<2x32x64xbf16, #tpu.memory_space<vmem>>, vector<1x32x64xbf16>
    %403 = vector.shape_cast %402 : vector<1x32x64xbf16> to vector<32x64xbf16>
    %404 = arith.truncf %401 : vector<48x32xf32> to vector<48x32xbf16>
    %cst_139 = arith.constant dense<0.000000e+00> : vector<48x64xf32>
    %405 = tpu.matmul %404, %403, %cst_139 {dimension_numbers = #tpu.dot_dimension_numbers<[1], [0], [0], [1], [0, 0, 1, 1], [], []>} : vector<48x32xbf16>, vector<32x64xbf16>, vector<48x64xf32> -> vector<48x64xf32>
    %c1_140 = arith.constant 1 : index
    %c0_141 = arith.constant 0 : index
    %c0_142 = arith.constant 0 : index
    %406 = vector.load %arg11[%c1_140, %c0_141, %c0_142] : memref<2x1x64xf32, #tpu.memory_space<vmem>>, vector<1x1x64xf32>
    %407 = vector.shape_cast %406 : vector<1x1x64xf32> to vector<1x64xf32>
    %408 = vector.broadcast %407 : vector<1x64xf32> to vector<48x64xf32>
    %409 = arith.addf %405, %408 : vector<48x64xf32>
    %cst_143 = arith.constant 5.000000e-01 : f32
    %410 = vector.broadcast %cst_143 : f32 to vector<48x64xf32>
    %411 = arith.mulf %410, %409 : vector<48x64xf32>
    %cst_144 = arith.constant 4.471500e-02 : f32
    %412 = vector.broadcast %cst_144 : f32 to vector<48x64xf32>
    %413 = arith.mulf %412, %409 : vector<48x64xf32>
    %414 = arith.mulf %413, %409 : vector<48x64xf32>
    %415 = arith.mulf %414, %409 : vector<48x64xf32>
    %416 = arith.addf %409, %415 : vector<48x64xf32>
    %cst_145 = arith.constant 0.797884583 : f32
    %417 = vector.broadcast %cst_145 : f32 to vector<48x64xf32>
    %418 = arith.mulf %417, %416 : vector<48x64xf32>
    %419 = math.tanh %418 : vector<48x64xf32>
    %cst_146 = arith.constant 1.000000e+00 : f32
    %420 = vector.broadcast %cst_146 : f32 to vector<48x64xf32>
    %421 = arith.addf %420, %419 : vector<48x64xf32>
    %422 = arith.mulf %411, %421 : vector<48x64xf32>
    %c1_147 = arith.constant 1 : index
    %c0_148 = arith.constant 0 : index
    %c0_149 = arith.constant 0 : index
    %423 = vector.load %arg12[%c1_147, %c0_148, %c0_149] : memref<2x64x32xbf16, #tpu.memory_space<vmem>>, vector<1x64x32xbf16>
    %424 = vector.shape_cast %423 : vector<1x64x32xbf16> to vector<64x32xbf16>
    %425 = arith.truncf %422 : vector<48x64xf32> to vector<48x64xbf16>
    %cst_150 = arith.constant dense<0.000000e+00> : vector<48x32xf32>
    %426 = tpu.matmul %425, %424, %cst_150 {dimension_numbers = #tpu.dot_dimension_numbers<[1], [0], [0], [1], [0, 0, 1, 1], [], []>} : vector<48x64xbf16>, vector<64x32xbf16>, vector<48x32xf32> -> vector<48x32xf32>
    %427 = arith.addf %375, %426 : vector<48x32xf32>
    %c1_151 = arith.constant 1 : index
    %c0_152 = arith.constant 0 : index
    %c0_153 = arith.constant 0 : index
    %428 = vector.load %arg13[%c1_151, %c0_152, %c0_153] : memref<2x1x32xf32, #tpu.memory_space<vmem>>, vector<1x1x32xf32>
    %429 = vector.shape_cast %428 : vector<1x1x32xf32> to vector<1x32xf32>
    %430 = vector.broadcast %429 : vector<1x32xf32> to vector<48x32xf32>
    %431 = arith.addf %427, %430 : vector<48x32xf32>
    %432 = vector.extract_strided_slice %431 {offsets = [0, 0], sizes = [1, 32], strides = [1, 1]} : vector<48x32xf32> to vector<1x32xf32>
    %433 = vector.extract_strided_slice %431 {offsets = [24, 0], sizes = [1, 32], strides = [1, 1]} : vector<48x32xf32> to vector<1x32xf32>
    %434 = tpu.concatenate %432, %433 in 0 : vector<1x32xf32>, vector<1x32xf32> -> vector<2x32xf32>
    %c0_154 = arith.constant 0 : index
    %c0_155 = arith.constant 0 : index
    %435 = vector.load %arg14[%c0_154, %c0_155] : memref<1x32xf32, #tpu.memory_space<vmem>>, vector<1x32xf32>
    %c0_156 = arith.constant 0 : index
    %c0_157 = arith.constant 0 : index
    %436 = vector.load %arg15[%c0_156, %c0_157] : memref<1x32xf32, #tpu.memory_space<vmem>>, vector<1x32xf32>
    %cst_158 = arith.constant dense<0.000000e+00> : vector<2xf32>
    %437 = vector.multi_reduction <add>, %434, %cst_158 [1] : vector<2x32xf32> to vector<2xf32>
    %438 = vector.shape_cast %437 : vector<2xf32> to vector<2x1xf32>
    %cst_159 = arith.constant 3.200000e+01 : f32
    %439 = vector.broadcast %cst_159 : f32 to vector<2x1xf32>
    %440 = arith.divf %438, %439 : vector<2x1xf32>
    %441 = vector.broadcast %440 : vector<2x1xf32> to vector<2x32xf32>
    %442 = arith.subf %434, %441 : vector<2x32xf32>
    %443 = arith.mulf %442, %442 : vector<2x32xf32>
    %cst_160 = arith.constant dense<0.000000e+00> : vector<2xf32>
    %444 = vector.multi_reduction <add>, %443, %cst_160 [1] : vector<2x32xf32> to vector<2xf32>
    %445 = vector.shape_cast %444 : vector<2xf32> to vector<2x1xf32>
    %cst_161 = arith.constant 3.200000e+01 : f32
    %446 = vector.broadcast %cst_161 : f32 to vector<2x1xf32>
    %447 = arith.divf %445, %446 : vector<2x1xf32>
    %448 = vector.broadcast %440 : vector<2x1xf32> to vector<2x32xf32>
    %449 = arith.subf %434, %448 : vector<2x32xf32>
    %cst_162 = arith.constant 9.99999974E-6 : f32
    %450 = vector.broadcast %cst_162 : f32 to vector<2x1xf32>
    %451 = arith.addf %447, %450 : vector<2x1xf32>
    %452 = math.rsqrt %451 : vector<2x1xf32>
    %453 = vector.broadcast %452 : vector<2x1xf32> to vector<2x32xf32>
    %454 = arith.mulf %449, %453 : vector<2x32xf32>
    %455 = vector.broadcast %435 : vector<1x32xf32> to vector<2x32xf32>
    %456 = arith.mulf %454, %455 : vector<2x32xf32>
    %457 = vector.broadcast %436 : vector<1x32xf32> to vector<2x32xf32>
    %458 = arith.addf %456, %457 : vector<2x32xf32>
    %c0_163 = arith.constant 0 : index
    %c0_164 = arith.constant 0 : index
    %459 = vector.load %arg16[%c0_163, %c0_164] : memref<32x10xbf16, #tpu.memory_space<vmem>>, vector<32x10xbf16>
    %460 = arith.truncf %458 : vector<2x32xf32> to vector<2x32xbf16>
    %cst_165 = arith.constant dense<0.000000e+00> : vector<2x10xf32>
    %461 = tpu.matmul %460, %459, %cst_165 {dimension_numbers = #tpu.dot_dimension_numbers<[1], [0], [0], [1], [0, 0, 1, 1], [], []>} : vector<2x32xbf16>, vector<32x10xbf16>, vector<2x10xf32> -> vector<2x10xf32>
    %c0_166 = arith.constant 0 : index
    %c0_167 = arith.constant 0 : index
    %462 = vector.load %arg17[%c0_166, %c0_167] : memref<1x10xf32, #tpu.memory_space<vmem>>, vector<1x10xf32>
    %463 = vector.broadcast %462 : vector<1x10xf32> to vector<2x10xf32>
    %464 = arith.addf %461, %463 : vector<2x10xf32>
    %c0_168 = arith.constant 0 : index
    %c0_169 = arith.constant 0 : index
    %465 = vector.load %arg18[%c0_168, %c0_169] : memref<2x10xf32, #tpu.memory_space<vmem>>, vector<2x10xf32>
    tpu.vector_store %arg18[%c0_168, %c0_169], %464 {strides = array<i32>} : memref<2x10xf32, #tpu.memory_space<vmem>>, vector<2x10xf32>,
    return
  }
}

</mosaic_0001>

<llo_original>
// kernel: vit_forward.1
$region0: #{vit_forward.1}
  #allocation0 [shape = 'u32[]', space=smem, size = 0x4, offset = 0x4, fixed_abs, tag = 'smem constant byte address 0x4 - core index']
  #allocation1 [shape = 'u32[72,128]{1,0:T(1,128)}', space=vmem, size = 0x9000, scoped, tag = 'internal scratch']
  %s0 = inlined_call_operand.vmem [shape: bf16[48,48], index: 0, kind: input, shape index: {}]
  %s1 = inlined_call_operand.vmem [shape: f32[48,32], index: 1, kind: input, shape index: {}]
  %s2 = inlined_call_operand.vmem [shape: bf16[48,32], index: 2, kind: input, shape index: {}]
  %s3 = inlined_call_operand.vmem [shape: f32[2,1,32], index: 3, kind: input, shape index: {}]
  %s4 = inlined_call_operand.vmem [shape: f32[2,1,32], index: 4, kind: input, shape index: {}]
  %s5 = inlined_call_operand.vmem [shape: bf16[2,32,96], index: 5, kind: input, shape index: {}]
  %s6 = inlined_call_operand.vmem [shape: bf16[2,32,32], index: 6, kind: input, shape index: {}]
  %s7 = inlined_call_operand.vmem [shape: f32[2,1,32], index: 7, kind: input, shape index: {}]
  %s8 = inlined_call_operand.vmem [shape: f32[2,1,32], index: 8, kind: input, shape index: {}]
  %s9 = inlined_call_operand.vmem [shape: f32[2,1,32], index: 9, kind: input, shape index: {}]
  %s10 = inlined_call_operand.vmem [shape: bf16[2,32,64], index: 10, kind: input, shape index: {}]
  %s11 = inlined_call_operand.vmem [shape: f32[2,1,64], index: 11, kind: input, shape index: {}]
  %s12 = inlined_call_operand.vmem [shape: bf16[2,64,32], index: 12, kind: input, shape index: {}]
  %s13 = inlined_call_operand.vmem [shape: f32[2,1,32], index: 13, kind: input, shape index: {}]
  %s14 = inlined_call_operand.vmem [shape: f32[1,32], index: 14, kind: input, shape index: {}]
  %s15 = inlined_call_operand.vmem [shape: f32[1,32], index: 15, kind: input, shape index: {}]
  %s16 = inlined_call_operand.vmem [shape: bf16[32,10], index: 16, kind: input, shape index: {}]
  %s17 = inlined_call_operand.vmem [shape: f32[1,10], index: 17, kind: input, shape index: {}]
  %s18 = inlined_call_operand.hbm [shape: f32[2,10], index: 18, kind: output, shape index: {}]
  %s19 = sld [smem:[#allocation0]]
  $region82: #{vit_forward.1} parent=0
    _
  %s21 = ssub.s32 1, %s19
  %s22 = scalar_select 0, %s21, %s19
  $region1: #{vit_forward.1} parent=0
    #allocation2 [shape = 'u8[1024]{0}', space=vmem, size = 0x400, scoped, tag = 'output window, operand 0, single buffered']
    #allocation3 [shape = 's32[1]{0}', space=sflag, size = 0x4, scoped, tag = 'scoped memory for vit_forward.1']
    %23 = vsyncpa [#allocation3], 0
    // Predicated region
    $region2: #{vit_forward.1} parent=1 // pred_check
      _
    $region3: #{vit_forward.1} parent=1 // pred_check_branch
      %25 = sbr.rel (0) target = $region5
    $region4: #{vit_forward.1} parent=1 // pred_region
      _
    $region5: #{vit_forward.1} parent=1 // pred_fallthru
      _
    // Predicated region
    $region6: #{vit_forward.1} parent=1 // pred_check
      _
    $region7: #{vit_forward.1} parent=1 // pred_check_branch
      %27 = sbr.rel (0) target = $region9
    $region8: #{vit_forward.1} parent=1 // pred_region
      _
    $region9: #{vit_forward.1} parent=1 // pred_fallthru
      _
    // Predicated region
    $region10: #{vit_forward.1} parent=1 // pred_check
      _
    $region11: #{vit_forward.1} parent=1 // pred_check_branch
      %29 = sbr.rel (0) target = $region13
    $region12: #{vit_forward.1} parent=1 // pred_region
      _
    $region13: #{vit_forward.1} parent=1 // pred_fallthru
      _
    // Predicated region
    $region14: #{vit_forward.1} parent=1 // pred_check
      _
    $region15: #{vit_forward.1} parent=1 // pred_check_branch
      %31 = sbr.rel (0) target = $region17
    $region16: #{vit_forward.1} parent=1 // pred_region
      _
    $region17: #{vit_forward.1} parent=1 // pred_fallthru
      _
    // Predicated region
    $region18: #{vit_forward.1} parent=1 // pred_check
      _
    $region19: #{vit_forward.1} parent=1 // pred_check_branch
      %33 = sbr.rel (0) target = $region21
    $region20: #{vit_forward.1} parent=1 // pred_region
      _
    $region21: #{vit_forward.1} parent=1 // pred_fallthru
      _
    // Predicated region
    $region22: #{vit_forward.1} parent=1 // pred_check
      _
    $region23: #{vit_forward.1} parent=1 // pred_check_branch
      %35 = sbr.rel (0) target = $region25
    $region24: #{vit_forward.1} parent=1 // pred_region
      _
    $region25: #{vit_forward.1} parent=1 // pred_fallthru
      _
    // Predicated region
    $region26: #{vit_forward.1} parent=1 // pred_check
      _
    $region27: #{vit_forward.1} parent=1 // pred_check_branch
      %37 = sbr.rel (0) target = $region29
    $region28: #{vit_forward.1} parent=1 // pred_region
      _
    $region29: #{vit_forward.1} parent=1 // pred_fallthru
      _
    // Predicated region
    $region30: #{vit_forward.1} parent=1 // pred_check
      _
    $region31: #{vit_forward.1} parent=1 // pred_check_branch
      %39 = sbr.rel (0) target = $region33
    $region32: #{vit_forward.1} parent=1 // pred_region
      _
    $region33: #{vit_forward.1} parent=1 // pred_fallthru
      _
    // Predicated region
    $region34: #{vit_forward.1} parent=1 // pred_check
      _
    $region35: #{vit_forward.1} parent=1 // pred_check_branch
      %41 = sbr.rel (0) target = $region37
    $region36: #{vit_forward.1} parent=1 // pred_region
      _
    $region37: #{vit_forward.1} parent=1 // pred_fallthru
      _
    // Predicated region
    $region38: #{vit_forward.1} parent=1 // pred_check
      _
    $region39: #{vit_forward.1} parent=1 // pred_check_branch
      %43 = sbr.rel (0) target = $region41
    $region40: #{vit_forward.1} parent=1 // pred_region
      _
    $region41: #{vit_forward.1} parent=1 // pred_fallthru
      _
    // Predicated region
    $region42: #{vit_forward.1} parent=1 // pred_check
      _
    $region43: #{vit_forward.1} parent=1 // pred_check_branch
      %45 = sbr.rel (0) target = $region45
    $region44: #{vit_forward.1} parent=1 // pred_region
      _
    $region45: #{vit_forward.1} parent=1 // pred_fallthru
      _
    // Predicated region
    $region46: #{vit_forward.1} parent=1 // pred_check
      _
    $region47: #{vit_forward.1} parent=1 // pred_check_branch
      %47 = sbr.rel (0) target = $region49
    $region48: #{vit_forward.1} parent=1 // pred_region
      _
    $region49: #{vit_forward.1} parent=1 // pred_fallthru
      _
    // Predicated region
    $region50: #{vit_forward.1} parent=1 // pred_check
      _
    $region51: #{vit_forward.1} parent=1 // pred_check_branch
      %49 = sbr.rel (0) target = $region53
    $region52: #{vit_forward.1} parent=1 // pred_region
      _
    $region53: #{vit_forward.1} parent=1 // pred_fallthru
      _
    // Predicated region
    $region54: #{vit_forward.1} parent=1 // pred_check
      _
    $region55: #{vit_forward.1} parent=1 // pred_check_branch
      %51 = sbr.rel (0) target = $region57
    $region56: #{vit_forward.1} parent=1 // pred_region
      _
    $region57: #{vit_forward.1} parent=1 // pred_fallthru
      _
    // Predicated region
    $region58: #{vit_forward.1} parent=1 // pred_check
      _
    $region59: #{vit_forward.1} parent=1 // pred_check_branch
      %53 = sbr.rel (0) target = $region61
    $region60: #{vit_forward.1} parent=1 // pred_region
      _
    $region61: #{vit_forward.1} parent=1 // pred_fallthru
      _
    // Predicated region
    $region62: #{vit_forward.1} parent=1 // pred_check
      _
    $region63: #{vit_forward.1} parent=1 // pred_check_branch
      %55 = sbr.rel (0) target = $region65
    $region64: #{vit_forward.1} parent=1 // pred_region
      _
    $region65: #{vit_forward.1} parent=1 // pred_fallthru
      _
    // Predicated region
    $region66: #{vit_forward.1} parent=1 // pred_check
      _
    $region67: #{vit_forward.1} parent=1 // pred_check_branch
      %57 = sbr.rel (0) target = $region69
    $region68: #{vit_forward.1} parent=1 // pred_region
      _
    $region69: #{vit_forward.1} parent=1 // pred_fallthru
      _
    // Predicated region
    $region70: #{vit_forward.1} parent=1 // pred_check
      _
    $region71: #{vit_forward.1} parent=1 // pred_check_branch
      %59 = sbr.rel (0) target = $region73
    $region72: #{vit_forward.1} parent=1 // pred_region
      _
    $region73: #{vit_forward.1} parent=1 // pred_fallthru
      _
    %v61 = vld [vmem:[%s0] sm:$0xf]
    %v62 = vld [vmem:[%s0 + $0x4] sm:$0xf]
    %v63 = vld [vmem:[%s0 + $0x8] sm:$0xf]
    %v64 = vld [vmem:[%s0 + $0xc] sm:$0xf]
    %v65 = vld [vmem:[%s0 + $0x10] sm:$0xf]
    %v66 = vld [vmem:[%s0 + $0x14] sm:$0xf]
    %v67 = vld [vmem:[%s2] sm:$0xf]
    %v68 = vld [vmem:[%s2 + $0x4] sm:$0xf]
    %v69 = vld [vmem:[%s2 + $0x8] sm:$0xf]
    %v70 = vld [vmem:[%s2 + $0xc] sm:$0xf]
    %v71 = vld [vmem:[%s2 + $0x10] sm:$0xf]
    %v72 = vld [vmem:[%s2 + $0x14] sm:$0xf]
    %v73 = vld [vmem:[%s1] sm:$0xff]
    %v74 = vld [vmem:[%s1 + $0x8] sm:$0xff]
    %v75 = vld [vmem:[%s1 + $0x10] sm:$0xff]
    %v76 = vld [vmem:[%s1 + $0x18] sm:$0xff]
    %v77 = vld [vmem:[%s1 + $0x20] sm:$0xff]
    %v78 = vld [vmem:[%s1 + $0x28] sm:$0xff]
    %v85 = vunpack.c.l.b16 %v61
    %v86 = vunpack.c.l.b16 %v62
    %v87 = vunpack.c.l.b16 %v63
    %v88 = vunpack.c.l.b16 %v64
    %v89 = vunpack.c.l.b16 %v65
    %v90 = vunpack.c.l.b16 %v66
    %v91 = vpack.c.b16 %v86, %v85
    %v92 = vpack.c.b16 %v88, %v87
    %v93 = vpack.c.b16 %v90, %v89
    %v100 = vunpack.c.l.b16 %v67
    %v101 = vunpack.c.l.b16 %v68
    %v102 = vunpack.c.l.b16 %v69
    %v103 = vunpack.c.l.b16 %v70
    %v104 = vunpack.c.l.b16 %v71
    %v105 = vunpack.c.l.b16 %v72
    %v106 = vpack.c.b16 %v101, %v100
    %v107 = vpack.c.b16 %v103, %v102
    %v108 = vpack.c.b16 %v105, %v104
    %vm112 = vcmask 392192
    %v114 = vsel %vm112, %v91, 0
    %v117 = vsel %vm112, %v92, 0
    %v120 = vsel %vm112, %v93, 0
    %122 = vmatpush.bf16.msra.mxu0 0
    %123 = vmatpush.bf16.msra.mxu0 0
    %124 = vmatpush.bf16.msra.mxu0 0
    %125 = vmatpush.bf16.msra.mxu0 0
    %126 = vmatpush.bf16.msra.mxu0 0
    %127 = vmatpush.bf16.msra.mxu0 %v108
    %128 = vmatpush.bf16.msra.mxu0 %v107
    %129 = vmatpush.bf16.msra.mxu0 %v106
    %130 = vmatmul.bf16.gmra.mxu0 %v114
    %v131 = vpop.f32.mrf.mxu0
    %v132 = vadd.f32 %v73, %v131
    %v133 = vpop.f32.mrf.mxu0
    %v134 = vadd.f32 %v74, %v133
    %135 = vmatmul.bf16.gmra.mxu0 %v117
    %v136 = vpop.f32.mrf.mxu0
    %v137 = vadd.f32 %v75, %v136
    %v138 = vpop.f32.mrf.mxu0
    %v139 = vadd.f32 %v76, %v138
    %140 = vmatmul.bf16.gmra.mxu0 %v120
    %v141 = vpop.f32.mrf.mxu0
    %v142 = vadd.f32 %v77, %v141
    %v143 = vpop.f32.mrf.mxu0
    %v144 = vadd.f32 %v78, %v143
    %145 = vdwg.mxu0
    %v146 = vlaneseq
    %v147 = vand.u32 %v146, 127
    %vm148 = vcmp.lt.s32.totalorder %v147, 17
    %v149 = vld [vmem:[%s3] sm:$0x1]
    %v150 = vld [vmem:[%s4] sm:$0x1]
    %vm151 = vcmask 261120
    %v152 = vsel %vm151, %v132, 0.0
    %153 = vadd.xlane.f32.xlu0 %v152
    %v154 = vpop.xlane.xlu0 %153
    %v155 = vsel %vm151, %v134, 0.0
    %156 = vadd.xlane.f32.xlu0 %v155
    %v157 = vpop.xlane.xlu0 %156
    %v158 = vsel %vm151, %v137, 0.0
    %159 = vadd.xlane.f32.xlu0 %v158
    %v160 = vpop.xlane.xlu0 %159
    %v161 = vsel %vm151, %v139, 0.0
    %162 = vadd.xlane.f32.xlu0 %v161
    %v163 = vpop.xlane.xlu0 %162
    %v164 = vsel %vm151, %v142, 0.0
    %165 = vadd.xlane.f32.xlu0 %v164
    %v166 = vpop.xlane.xlu0 %165
    %v167 = vsel %vm151, %v144, 0.0
    %168 = vadd.xlane.f32.xlu0 %v167
    %v169 = vpop.xlane.xlu0 %168
    %v170 = vrcp.pop 32.0
    %v171 = vmul.f32 32.0, %v170
    %v172 = vsub.f32 1.0, %v171
    %v173 = vmul.f32 %v170, %v172
    %v174 = vadd.f32 %v170, %v173
    %vm175 = vweird.f32 %v170
    %v176 = vsel %vm175, %v170, %v174
    %v177 = vmul.f32 %v154, %v176
    %v178 = vmul.f32 %v157, %v176
    %v179 = vmul.f32 %v160, %v176
    %v180 = vmul.f32 %v163, %v176
    %v181 = vmul.f32 %v166, %v176
    %v182 = vmul.f32 %v169, %v176
    %v183 = vsub.f32 %v132, %v177
    %v184 = vsub.f32 %v134, %v178
    %v185 = vsub.f32 %v137, %v179
    %v186 = vsub.f32 %v139, %v180
    %v187 = vsub.f32 %v142, %v181
    %v188 = vsub.f32 %v144, %v182
    %v189 = vmul.f32 %v183, %v183
    %v190 = vmul.f32 %v184, %v184
    %v191 = vmul.f32 %v185, %v185
    %v192 = vmul.f32 %v186, %v186
    %v193 = vmul.f32 %v187, %v187
    %v194 = vmul.f32 %v188, %v188
    %v195 = vsel %vm151, %v189, 0.0
    %196 = vadd.xlane.f32.xlu0 %v195
    %v197 = vpop.xlane.xlu0 %196
    %v198 = vsel %vm151, %v190, 0.0
    %199 = vadd.xlane.f32.xlu0 %v198
    %v200 = vpop.xlane.xlu0 %199
    %v201 = vsel %vm151, %v191, 0.0
    %202 = vadd.xlane.f32.xlu0 %v201
    %v203 = vpop.xlane.xlu0 %202
    %v204 = vsel %vm151, %v192, 0.0
    %205 = vadd.xlane.f32.xlu0 %v204
    %v206 = vpop.xlane.xlu0 %205
    %v207 = vsel %vm151, %v193, 0.0
    %208 = vadd.xlane.f32.xlu0 %v207
    %v209 = vpop.xlane.xlu0 %208
    %v210 = vsel %vm151, %v194, 0.0
    %211 = vadd.xlane.f32.xlu0 %v210
    %v212 = vpop.xlane.xlu0 %211
    %v213 = vmul.f32 %v197, %v176
    %v214 = vmul.f32 %v200, %v176
    %v215 = vmul.f32 %v203, %v176
    %v216 = vmul.f32 %v206, %v176
    %v217 = vmul.f32 %v209, %v176
    %v218 = vmul.f32 %v212, %v176
    %v219 = vadd.f32 %v213, 1e-05
    %v220 = vadd.f32 %v214, 1e-05
    %v221 = vadd.f32 %v215, 1e-05
    %v222 = vadd.f32 %v216, 1e-05
    %v223 = vadd.f32 %v217, 1e-05
    %v224 = vadd.f32 %v218, 1e-05
    %v225 = vrsqrt.pop %v219
    %v226 = vmul.f32 %v225, %v219
    %v227 = vmul.f32 %v226, %v225
    %v228 = vmul.f32 0.5, %v227
    %v229 = vsub.f32 1.5, %v228
    %v230 = vmul.f32 %v225, %v229
    %vm231 = vweird.f32 %v219
    %vm232 = vweird.f32 %v225
    %vm233 = vmor %vm231, %vm232
    %v234 = vsel %vm233, %v225, %v230
    %v235 = vrsqrt.pop %v220
    %v236 = vmul.f32 %v235, %v220
    %v237 = vmul.f32 %v236, %v235
    %v238 = vmul.f32 0.5, %v237
    %v239 = vsub.f32 1.5, %v238
    %v240 = vmul.f32 %v235, %v239
    %vm241 = vweird.f32 %v220
    %vm242 = vweird.f32 %v235
    %vm243 = vmor %vm241, %vm242
    %v244 = vsel %vm243, %v235, %v240
    %v245 = vrsqrt.pop %v221
    %v246 = vmul.f32 %v245, %v221
    %v247 = vmul.f32 %v246, %v245
    %v248 = vmul.f32 0.5, %v247
    %v249 = vsub.f32 1.5, %v248
    %v250 = vmul.f32 %v245, %v249
    %vm251 = vweird.f32 %v221
    %vm252 = vweird.f32 %v245
    %vm253 = vmor %vm251, %vm252
    %v254 = vsel %vm253, %v245, %v250
    %v255 = vrsqrt.pop %v222
    %v256 = vmul.f32 %v255, %v222
    %v257 = vmul.f32 %v256, %v255
    %v258 = vmul.f32 0.5, %v257
    %v259 = vsub.f32 1.5, %v258
    %v260 = vmul.f32 %v255, %v259
    %vm261 = vweird.f32 %v222
    %vm262 = vweird.f32 %v255
    %vm263 = vmor %vm261, %vm262
    %v264 = vsel %vm263, %v255, %v260
    %v265 = vrsqrt.pop %v223
    %v266 = vmul.f32 %v265, %v223
    %v267 = vmul.f32 %v266, %v265
    %v268 = vmul.f32 0.5, %v267
    %v269 = vsub.f32 1.5, %v268
    %v270 = vmul.f32 %v265, %v269
    %vm271 = vweird.f32 %v223
    %vm272 = vweird.f32 %v265
    %vm273 = vmor %vm271, %vm272
    %v274 = vsel %vm273, %v265, %v270
    %v275 = vrsqrt.pop %v224
    %v276 = vmul.f32 %v275, %v224
    %v277 = vmul.f32 %v276, %v275
    %v278 = vmul.f32 0.5, %v277
    %v279 = vsub.f32 1.5, %v278
    %v280 = vmul.f32 %v275, %v279
    %vm281 = vweird.f32 %v224
    %vm282 = vweird.f32 %v275
    %vm283 = vmor %vm281, %vm282
    %v284 = vsel %vm283, %v275, %v280
    %v285 = vmul.f32 %v183, %v234
    %v286 = vmul.f32 %v184, %v244
    %v287 = vmul.f32 %v185, %v254
    %v288 = vmul.f32 %v186, %v264
    %v289 = vmul.f32 %v187, %v274
    %v290 = vmul.f32 %v188, %v284
    %v292 = vperm.slane %v149, 0
    %v294 = vmul.f32 %v285, %v292
    %v295 = vmul.f32 %v286, %v292
    %v296 = vmul.f32 %v287, %v292
    %v297 = vmul.f32 %v288, %v292
    %v298 = vmul.f32 %v289, %v292
    %v299 = vmul.f32 %v290, %v292
    %v301 = vperm.slane %v150, 0
    %v303 = vadd.f32 %v294, %v301
    %v304 = vadd.f32 %v295, %v301
    %v305 = vadd.f32 %v296, %v301
    %v306 = vadd.f32 %v297, %v301
    %v307 = vadd.f32 %v298, %v301
    %v308 = vadd.f32 %v299, %v301
    %v309 = vld [vmem:[%s5] sm:$0xf]
    %v310 = vld [vmem:[%s5 + $0x4] sm:$0xf]
    %v311 = vld [vmem:[%s5 + $0x8] sm:$0xf]
    %v312 = vld [vmem:[%s5 + $0xc] sm:$0xf]
    %v313 = vpack.c.bf16 %v304, %v303
    %v314 = vpack.c.bf16 %v306, %v305
    %v315 = vpack.c.bf16 %v308, %v307
    %v320 = vunpack.c.l.b16 %v309
    %v321 = vunpack.c.l.b16 %v310
    %v322 = vunpack.c.l.b16 %v311
    %v323 = vunpack.c.l.b16 %v312
    %v324 = vpack.c.b16 %v321, %v320
    %v325 = vpack.c.b16 %v323, %v322
    %v329 = vsel %vm151, %v313, 0
    %v332 = vsel %vm151, %v314, 0
    %v335 = vsel %vm151, %v315, 0
    %337 = vmatpush.bf16.msra.mxu0 0
    %338 = vmatpush.bf16.msra.mxu0 0
    %339 = vmatpush.bf16.msra.mxu0 0
    %340 = vmatpush.bf16.msra.mxu0 0
    %341 = vmatpush.bf16.msra.mxu0 0
    %342 = vmatpush.bf16.msra.mxu0 0
    %343 = vmatpush.bf16.msra.mxu0 %v325
    %344 = vmatpush.bf16.msra.mxu0 %v324
    %345 = vmatmul.bf16.gmra.mxu0 %v329
    %v346 = vpop.f32.mrf.mxu0
    %v347 = vadd.f32 0.0, %v346
    %v348 = vpop.f32.mrf.mxu0
    %v349 = vadd.f32 0.0, %v348
    %350 = vmatmul.bf16.gmra.mxu0 %v332
    %v351 = vpop.f32.mrf.mxu0
    %v352 = vadd.f32 0.0, %v351
    %v353 = vpop.f32.mrf.mxu0
    %v354 = vadd.f32 0.0, %v353
    %355 = vmatmul.bf16.gmra.mxu0 %v335
    %v356 = vpop.f32.mrf.mxu0
    %v357 = vadd.f32 0.0, %v356
    %v358 = vpop.f32.mrf.mxu0
    %v359 = vadd.f32 0.0, %v358
    %360 = vdwg.mxu0
    %v361 = vpack.c.bf16 %v347, %v347
    %v362 = vpack.c.bf16 %v349, %v349
    %v363 = vpack.c.bf16 %v352, %v352
    %v364 = vpack.c.bf16 %v354, %v354
    %v365 = vpack.c.bf16 %v357, %v357
    %v366 = vpack.c.bf16 %v359, %v359
    %v370 = vunpack.c.l.b16 %v361
    %v371 = vunpack.c.l.b16 %v362
    %v372 = vunpack.c.l.b16 %v363
    %v373 = vpack.c.b16 %v371, %v370
    %v374 = vpack.c.b16 %v372, %v372
    %375 = vrot.lane.b32.xlu0 %v373, 96
    %v376 = vpop.permute.xlu0 %375
    %377 = vrot.lane.b32.xlu0 %v374, 96
    %v378 = vpop.permute.xlu0 %377
    %vm379 = vcmask 64512
    %v381 = vsel %vm379, %v373, 0
    %v384 = vsel %vm379, %v374, 0
    %v387 = vsel %vm379, %v376, 0
    %v390 = vsel %vm379, %v378, 0
    %392 = vmatpush.bf16.xpose.msra.mxu0 0
    %393 = vmatpush.bf16.xpose.msra.mxu0 0
    %394 = vmatpush.bf16.xpose.msra.mxu0 0
    %395 = vmatpush.bf16.xpose.msra.mxu0 0
    %396 = vmatpush.bf16.xpose.msra.mxu0 0
    %397 = vmatpush.bf16.xpose.msra.mxu0 0
    %398 = vmatpush.bf16.xpose.msra.mxu0 %v390
    %399 = vmatpush.bf16.xpose.msra.mxu0 %v387
    %400 = vmatmul.bf16.gmra.mxu0 %v381
    %v401 = vpop.f32.mrf.mxu0
    %v402 = vadd.f32 0.0, %v401
    %v403 = vpop.f32.mrf.mxu0
    %v404 = vadd.f32 0.0, %v403
    %405 = vmatmul.bf16.gmra.mxu0 %v384
    %v406 = vpop.f32.mrf.mxu0
    %v407 = vadd.f32 0.0, %v406
    %v408 = vpop.f32.mrf.mxu0
    %409 = vdwg.mxu0
    %v413 = vunpack.c.l.b16 %v364
    %v414 = vunpack.c.l.b16 %v365
    %v415 = vunpack.c.l.b16 %v366
    %v416 = vpack.c.b16 %v414, %v413
    %v417 = vpack.c.b16 %v415, %v415
    %418 = vrot.lane.b32.xlu0 %v416, 96
    %v419 = vpop.permute.xlu0 %418
    %420 = vrot.lane.b32.xlu0 %v417, 96
    %v421 = vpop.permute.xlu0 %420
    %v423 = vsel %vm379, %v416, 0
    %v426 = vsel %vm379, %v417, 0
    %v429 = vsel %vm379, %v419, 0
    %v432 = vsel %vm379, %v421, 0
    %434 = vmatpush.bf16.xpose.msra.mxu0 0
    %435 = vmatpush.bf16.xpose.msra.mxu0 0
    %436 = vmatpush.bf16.xpose.msra.mxu0 0
    %437 = vmatpush.bf16.xpose.msra.mxu0 0
    %438 = vmatpush.bf16.xpose.msra.mxu0 0
    %439 = vmatpush.bf16.xpose.msra.mxu0 0
    %440 = vmatpush.bf16.xpose.msra.mxu0 %v432
    %441 = vmatpush.bf16.xpose.msra.mxu0 %v429
    %442 = vmatmul.bf16.gmra.mxu0 %v423
    %v443 = vpop.f32.mrf.mxu0
    %v444 = vadd.f32 0.0, %v443
    %v445 = vpop.f32.mrf.mxu0
    %v446 = vadd.f32 0.0, %v445
    %447 = vmatmul.bf16.gmra.mxu0 %v426
    %v448 = vpop.f32.mrf.mxu0
    %v449 = vadd.f32 0.0, %v448
    %v450 = vpop.f32.mrf.mxu0
    %451 = vdwg.mxu0
    %v452 = vmul.f32 %v402, 0.35355338
    %v453 = vmul.f32 %v404, 0.35355338
    %v454 = vmul.f32 %v407, 0.35355338
    %v455 = vmul.f32 %v444, 0.35355338
    %v456 = vmul.f32 %v446, 0.35355338
    %v457 = vmul.f32 %v449, 0.35355338
    %v458 = vsel %vm148, 1, 0
    %vm459 = vcmp.eq.s32.totalorder %v458, 1
    %v460 = vsel %vm459, %v452, -1e+30
    %v461 = vsel %vm459, %v453, -1e+30
    %v462 = vsel %vm459, %v454, -1e+30
    %v463 = vsel %vm459, %v455, -1e+30
    %v464 = vsel %vm459, %v456, -1e+30
    %v465 = vsel %vm459, %v457, -1e+30
    %vm466 = vcmask 195584
    %v467 = vsel %vm466, %v460, -inf
    %468 = vmax.xlane.f32.xlu0 %v467
    %v469 = vpop.xlane.xlu0 %468
    %v470 = vsel %vm466, %v461, -inf
    %471 = vmax.xlane.f32.xlu0 %v470
    %v472 = vpop.xlane.xlu0 %471
    %v473 = vsel %vm466, %v462, -inf
    %474 = vmax.xlane.f32.xlu0 %v473
    %v475 = vpop.xlane.xlu0 %474
    %v476 = vsel %vm466, %v463, -inf
    %477 = vmax.xlane.f32.xlu0 %v476
    %v478 = vpop.xlane.xlu0 %477
    %v479 = vsel %vm466, %v464, -inf
    %480 = vmax.xlane.f32.xlu0 %v479
    %v481 = vpop.xlane.xlu0 %480
    %v482 = vsel %vm466, %v465, -inf
    %483 = vmax.xlane.f32.xlu0 %v482
    %v484 = vpop.xlane.xlu0 %483
    %v485 = vsub.f32 %v460, %v469
    %v486 = vsub.f32 %v461, %v472
    %v487 = vsub.f32 %v462, %v475
    %v488 = vsub.f32 %v463, %v478
    %v489 = vsub.f32 %v464, %v481
    %v490 = vsub.f32 %v465, %v484
    %v491 = vmul.f32 %v485, 1.442695
    %v492 = vpow.pop %v491
    %v493 = vmul.f32 %v486, 1.442695
    %v494 = vpow.pop %v493
    %v495 = vmul.f32 %v487, 1.442695
    %v496 = vpow.pop %v495
    %v497 = vmul.f32 %v488, 1.442695
    %v498 = vpow.pop %v497
    %v499 = vmul.f32 %v489, 1.442695
    %v500 = vpow.pop %v499
    %v501 = vmul.f32 %v490, 1.442695
    %v502 = vpow.pop %v501
    %v503 = vsel %vm466, %v492, 0.0
    %504 = vadd.xlane.f32.xlu0 %v503
    %v505 = vpop.xlane.xlu0 %504
    %v506 = vsel %vm466, %v494, 0.0
    %507 = vadd.xlane.f32.xlu0 %v506
    %v508 = vpop.xlane.xlu0 %507
    %v509 = vsel %vm466, %v496, 0.0
    %510 = vadd.xlane.f32.xlu0 %v509
    %v511 = vpop.xlane.xlu0 %510
    %v512 = vsel %vm466, %v498, 0.0
    %513 = vadd.xlane.f32.xlu0 %v512
    %v514 = vpop.xlane.xlu0 %513
    %v515 = vsel %vm466, %v500, 0.0
    %516 = vadd.xlane.f32.xlu0 %v515
    %v517 = vpop.xlane.xlu0 %516
    %v518 = vsel %vm466, %v502, 0.0
    %519 = vadd.xlane.f32.xlu0 %v518
    %v520 = vpop.xlane.xlu0 %519
    %v521 = vrcp.pop %v505
    %v522 = vrcp.pop %v508
    %v523 = vrcp.pop %v511
    %v524 = vrcp.pop %v514
    %v525 = vrcp.pop %v517
    %v526 = vrcp.pop %v520
    %v527 = vmul.f32 %v492, %v521
    %v528 = vmul.f32 %v494, %v522
    %v529 = vmul.f32 %v496, %v523
    %v530 = vmul.f32 %v498, %v524
    %v531 = vmul.f32 %v500, %v525
    %v532 = vmul.f32 %v502, %v526
    %v533 = vpack.c.bf16 %v527, %v527
    %v534 = vpack.c.bf16 %v528, %v528
    %v535 = vpack.c.bf16 %v529, %v529
    %v536 = vpack.c.bf16 %v530, %v530
    %v537 = vpack.c.bf16 %v531, %v531
    %v538 = vpack.c.bf16 %v532, %v532
    %v542 = vunpack.c.l.b16 %v533
    %v543 = vunpack.c.l.b16 %v534
    %v544 = vunpack.c.l.b16 %v535
    %v545 = vpack.c.b16 %v543, %v542
    %v546 = vpack.c.b16 %v544, %v544
    %547 = vrot.lane.b32.xlu0 %v373, 64
    %v548 = vpop.permute.xlu0 %547
    %549 = vrot.lane.b32.xlu0 %v374, 64
    %v550 = vpop.permute.xlu0 %549
    %v553 = vsel %vm466, %v545, 0
    %v556 = vsel %vm466, %v546, 0
    %vm558 = vcmask 1043456
    %v560 = vsel %vm558, %v550, 0
    %562 = vmatpush.bf16.msra.mxu0 0
    %563 = vmatpush.bf16.msra.mxu0 0
    %564 = vmatpush.bf16.msra.mxu0 0
    %565 = vmatpush.bf16.msra.mxu0 0
    %566 = vmatpush.bf16.msra.mxu0 0
    %567 = vmatpush.bf16.msra.mxu0 0
    %568 = vmatpush.bf16.msra.mxu0 %v560
    %569 = vmatpush.bf16.msra.mxu0 %v548
    %570 = vmatmul.bf16.gmra.mxu0 %v553
    %v571 = vpop.f32.mrf.mxu0
    %v572 = vadd.f32 0.0, %v571
    %v573 = vpop.f32.mrf.mxu0
    %v574 = vadd.f32 0.0, %v573
    %575 = vmatmul.bf16.gmra.mxu0 %v556
    %v576 = vpop.f32.mrf.mxu0
    %v577 = vadd.f32 0.0, %v576
    %v578 = vpop.f32.mrf.mxu0
    %579 = vdwg.mxu0
    %v583 = vunpack.c.l.b16 %v536
    %v584 = vunpack.c.l.b16 %v537
    %v585 = vunpack.c.l.b16 %v538
    %v586 = vpack.c.b16 %v584, %v583
    %v587 = vpack.c.b16 %v585, %v585
    %588 = vrot.lane.b32.xlu0 %v416, 64
    %v589 = vpop.permute.xlu0 %588
    %590 = vrot.lane.b32.xlu0 %v417, 64
    %v591 = vpop.permute.xlu0 %590
    %v594 = vsel %vm466, %v586, 0
    %v597 = vsel %vm466, %v587, 0
    %v600 = vsel %vm558, %v591, 0
    %602 = vmatpush.bf16.msra.mxu0 0
    %603 = vmatpush.bf16.msra.mxu0 0
    %604 = vmatpush.bf16.msra.mxu0 0
    %605 = vmatpush.bf16.msra.mxu0 0
    %606 = vmatpush.bf16.msra.mxu0 0
    %607 = vmatpush.bf16.msra.mxu0 0
    %608 = vmatpush.bf16.msra.mxu0 %v600
    %609 = vmatpush.bf16.msra.mxu0 %v589
    %610 = vmatmul.bf16.gmra.mxu0 %v594
    %v611 = vpop.f32.mrf.mxu0
    %v612 = vadd.f32 0.0, %v611
    %v613 = vpop.f32.mrf.mxu0
    %v614 = vadd.f32 0.0, %v613
    %615 = vmatmul.bf16.gmra.mxu0 %v597
    %v616 = vpop.f32.mrf.mxu0
    %v617 = vadd.f32 0.0, %v616
    %v618 = vpop.f32.mrf.mxu0
    %619 = vdwg.mxu0
    %620 = vrot.lane.b32.xlu0 %v373, 120
    %v621 = vpop.permute.xlu0 %620
    %622 = vrot.lane.b32.xlu0 %v374, 120
    %v623 = vpop.permute.xlu0 %622
    %624 = vrot.lane.b32.xlu0 %v373, 88
    %v625 = vpop.permute.xlu0 %624
    %626 = vrot.lane.b32.xlu0 %v374, 88
    %v627 = vpop.permute.xlu0 %626
    %v629 = vsel %vm379, %v621, 0
    %v632 = vsel %vm379, %v623, 0
    %v635 = vsel %vm379, %v625, 0
    %v638 = vsel %vm379, %v627, 0
    %640 = vmatpush.bf16.xpose.msra.mxu0 0
    %641 = vmatpush.bf16.xpose.msra.mxu0 0
    %642 = vmatpush.bf16.xpose.msra.mxu0 0
    %643 = vmatpush.bf16.xpose.msra.mxu0 0
    %644 = vmatpush.bf16.xpose.msra.mxu0 0
    %645 = vmatpush.bf16.xpose.msra.mxu0 0
    %646 = vmatpush.bf16.xpose.msra.mxu0 %v638
    %647 = vmatpush.bf16.xpose.msra.mxu0 %v635
    %648 = vmatmul.bf16.gmra.mxu0 %v629
    %v649 = vpop.f32.mrf.mxu0
    %v650 = vadd.f32 0.0, %v649
    %v651 = vpop.f32.mrf.mxu0
    %v652 = vadd.f32 0.0, %v651
    %653 = vmatmul.bf16.gmra.mxu0 %v632
    %v654 = vpop.f32.mrf.mxu0
    %v655 = vadd.f32 0.0, %v654
    %v656 = vpop.f32.mrf.mxu0
    %657 = vdwg.mxu0
    %658 = vrot.lane.b32.xlu0 %v416, 120
    %v659 = vpop.permute.xlu0 %658
    %660 = vrot.lane.b32.xlu0 %v417, 120
    %v661 = vpop.permute.xlu0 %660
    %662 = vrot.lane.b32.xlu0 %v416, 88
    %v663 = vpop.permute.xlu0 %662
    %664 = vrot.lane.b32.xlu0 %v417, 88
    %v665 = vpop.permute.xlu0 %664
    %v667 = vsel %vm379, %v659, 0
    %v670 = vsel %vm379, %v661, 0
    %v673 = vsel %vm379, %v663, 0
    %v676 = vsel %vm379, %v665, 0
    %678 = vmatpush.bf16.xpose.msra.mxu0 0
    %679 = vmatpush.bf16.xpose.msra.mxu0 0
    %680 = vmatpush.bf16.xpose.msra.mxu0 0
    %681 = vmatpush.bf16.xpose.msra.mxu0 0
    %682 = vmatpush.bf16.xpose.msra.mxu0 0
    %683 = vmatpush.bf16.xpose.msra.mxu0 0
    %684 = vmatpush.bf16.xpose.msra.mxu0 %v676
    %685 = vmatpush.bf16.xpose.msra.mxu0 %v673
    %686 = vmatmul.bf16.gmra.mxu0 %v667
    %v687 = vpop.f32.mrf.mxu0
    %v688 = vadd.f32 0.0, %v687
    %v689 = vpop.f32.mrf.mxu0
    %v690 = vadd.f32 0.0, %v689
    %691 = vmatmul.bf16.gmra.mxu0 %v670
    %v692 = vpop.f32.mrf.mxu0
    %v693 = vadd.f32 0.0, %v692
    %v694 = vpop.f32.mrf.mxu0
    %695 = vdwg.mxu0
    %v696 = vmul.f32 %v650, 0.35355338
    %v697 = vmul.f32 %v652, 0.35355338
    %v698 = vmul.f32 %v655, 0.35355338
    %v699 = vmul.f32 %v688, 0.35355338
    %v700 = vmul.f32 %v690, 0.35355338
    %v701 = vmul.f32 %v693, 0.35355338
    %v702 = vsel %vm459, %v696, -1e+30
    %v703 = vsel %vm459, %v697, -1e+30
    %v704 = vsel %vm459, %v698, -1e+30
    %v705 = vsel %vm459, %v699, -1e+30
    %v706 = vsel %vm459, %v700, -1e+30
    %v707 = vsel %vm459, %v701, -1e+30
    %v708 = vsel %vm466, %v702, -inf
    %709 = vmax.xlane.f32.xlu0 %v708
    %v710 = vpop.xlane.xlu0 %709
    %v711 = vsel %vm466, %v703, -inf
    %712 = vmax.xlane.f32.xlu0 %v711
    %v713 = vpop.xlane.xlu0 %712
    %v714 = vsel %vm466, %v704, -inf
    %715 = vmax.xlane.f32.xlu0 %v714
    %v716 = vpop.xlane.xlu0 %715
    %v717 = vsel %vm466, %v705, -inf
    %718 = vmax.xlane.f32.xlu0 %v717
    %v719 = vpop.xlane.xlu0 %718
    %v720 = vsel %vm466, %v706, -inf
    %721 = vmax.xlane.f32.xlu0 %v720
    %v722 = vpop.xlane.xlu0 %721
    %v723 = vsel %vm466, %v707, -inf
    %724 = vmax.xlane.f32.xlu0 %v723
    %v725 = vpop.xlane.xlu0 %724
    %v726 = vsub.f32 %v702, %v710
    %v727 = vsub.f32 %v703, %v713
    %v728 = vsub.f32 %v704, %v716
    %v729 = vsub.f32 %v705, %v719
    %v730 = vsub.f32 %v706, %v722
    %v731 = vsub.f32 %v707, %v725
    %v732 = vmul.f32 %v726, 1.442695
    %v733 = vpow.pop %v732
    %v734 = vmul.f32 %v727, 1.442695
    %v735 = vpow.pop %v734
    %v736 = vmul.f32 %v728, 1.442695
    %v737 = vpow.pop %v736
    %v738 = vmul.f32 %v729, 1.442695
    %v739 = vpow.pop %v738
    %v740 = vmul.f32 %v730, 1.442695
    %v741 = vpow.pop %v740
    %v742 = vmul.f32 %v731, 1.442695
    %v743 = vpow.pop %v742
    %v744 = vsel %vm466, %v733, 0.0
    %745 = vadd.xlane.f32.xlu0 %v744
    %v746 = vpop.xlane.xlu0 %745
    %v747 = vsel %vm466, %v735, 0.0
    %748 = vadd.xlane.f32.xlu0 %v747
    %v749 = vpop.xlane.xlu0 %748
    %v750 = vsel %vm466, %v737, 0.0
    %751 = vadd.xlane.f32.xlu0 %v750
    %v752 = vpop.xlane.xlu0 %751
    %v753 = vsel %vm466, %v739, 0.0
    %754 = vadd.xlane.f32.xlu0 %v753
    %v755 = vpop.xlane.xlu0 %754
    %v756 = vsel %vm466, %v741, 0.0
    %757 = vadd.xlane.f32.xlu0 %v756
    %v758 = vpop.xlane.xlu0 %757
    %v759 = vsel %vm466, %v743, 0.0
    %760 = vadd.xlane.f32.xlu0 %v759
    %v761 = vpop.xlane.xlu0 %760
    %v762 = vrcp.pop %v746
    %v763 = vrcp.pop %v749
    %v764 = vrcp.pop %v752
    %v765 = vrcp.pop %v755
    %v766 = vrcp.pop %v758
    %v767 = vrcp.pop %v761
    %v768 = vmul.f32 %v733, %v762
    %v769 = vmul.f32 %v735, %v763
    %v770 = vmul.f32 %v737, %v764
    %v771 = vmul.f32 %v739, %v765
    %v772 = vmul.f32 %v741, %v766
    %v773 = vmul.f32 %v743, %v767
    %v774 = vpack.c.bf16 %v768, %v768
    %v775 = vpack.c.bf16 %v769, %v769
    %v776 = vpack.c.bf16 %v770, %v770
    %v777 = vpack.c.bf16 %v771, %v771
    %v778 = vpack.c.bf16 %v772, %v772
    %v779 = vpack.c.bf16 %v773, %v773
    %v783 = vunpack.c.l.b16 %v774
    %v784 = vunpack.c.l.b16 %v775
    %v785 = vunpack.c.l.b16 %v776
    %v786 = vpack.c.b16 %v784, %v783
    %v787 = vpack.c.b16 %v785, %v785
    %788 = vrot.lane.b32.xlu0 %v373, 56
    %v789 = vpop.permute.xlu0 %788
    %790 = vrot.lane.b32.xlu0 %v374, 56
    %v791 = vpop.permute.xlu0 %790
    %v794 = vsel %vm466, %v786, 0
    %v797 = vsel %vm466, %v787, 0
    %v800 = vsel %vm558, %v791, 0
    %802 = vmatpush.bf16.msra.mxu0 0
    %803 = vmatpush.bf16.msra.mxu0 0
    %804 = vmatpush.bf16.msra.mxu0 0
    %805 = vmatpush.bf16.msra.mxu0 0
    %806 = vmatpush.bf16.msra.mxu0 0
    %807 = vmatpush.bf16.msra.mxu0 0
    %808 = vmatpush.bf16.msra.mxu0 %v800
    %809 = vmatpush.bf16.msra.mxu0 %v789
    %810 = vmatmul.bf16.gmra.mxu0 %v794
    %v811 = vpop.f32.mrf.mxu0
    %v812 = vadd.f32 0.0, %v811
    %v813 = vpop.f32.mrf.mxu0
    %v814 = vadd.f32 0.0, %v813
    %815 = vmatmul.bf16.gmra.mxu0 %v797
    %v816 = vpop.f32.mrf.mxu0
    %v817 = vadd.f32 0.0, %v816
    %v818 = vpop.f32.mrf.mxu0
    %819 = vdwg.mxu0
    %v823 = vunpack.c.l.b16 %v777
    %v824 = vunpack.c.l.b16 %v778
    %v825 = vunpack.c.l.b16 %v779
    %v826 = vpack.c.b16 %v824, %v823
    %v827 = vpack.c.b16 %v825, %v825
    %828 = vrot.lane.b32.xlu0 %v416, 56
    %v829 = vpop.permute.xlu0 %828
    %830 = vrot.lane.b32.xlu0 %v417, 56
    %v831 = vpop.permute.xlu0 %830
    %v834 = vsel %vm466, %v826, 0
    %v837 = vsel %vm466, %v827, 0
    %v840 = vsel %vm558, %v831, 0
    %842 = vmatpush.bf16.msra.mxu0 0
    %843 = vmatpush.bf16.msra.mxu0 0
    %844 = vmatpush.bf16.msra.mxu0 0
    %845 = vmatpush.bf16.msra.mxu0 0
    %846 = vmatpush.bf16.msra.mxu0 0
    %847 = vmatpush.bf16.msra.mxu0 0
    %848 = vmatpush.bf16.msra.mxu0 %v840
    %849 = vmatpush.bf16.msra.mxu0 %v829
    %850 = vmatmul.bf16.gmra.mxu0 %v834
    %v851 = vpop.f32.mrf.mxu0
    %v852 = vadd.f32 0.0, %v851
    %v853 = vpop.f32.mrf.mxu0
    %v854 = vadd.f32 0.0, %v853
    %855 = vmatmul.bf16.gmra.mxu0 %v837
    %v856 = vpop.f32.mrf.mxu0
    %v857 = vadd.f32 0.0, %v856
    %v858 = vpop.f32.mrf.mxu0
    %859 = vdwg.mxu0
    %860 = vrot.lane.b32.xlu0 %v373, 112
    %v861 = vpop.permute.xlu0 %860
    %862 = vrot.lane.b32.xlu0 %v374, 112
    %v863 = vpop.permute.xlu0 %862
    %864 = vrot.lane.b32.xlu0 %v373, 80
    %v865 = vpop.permute.xlu0 %864
    %866 = vrot.lane.b32.xlu0 %v374, 80
    %v867 = vpop.permute.xlu0 %866
    %v869 = vsel %vm379, %v861, 0
    %v872 = vsel %vm379, %v863, 0
    %v875 = vsel %vm379, %v865, 0
    %v878 = vsel %vm379, %v867, 0
    %880 = vmatpush.bf16.xpose.msra.mxu0 0
    %881 = vmatpush.bf16.xpose.msra.mxu0 0
    %882 = vmatpush.bf16.xpose.msra.mxu0 0
    %883 = vmatpush.bf16.xpose.msra.mxu0 0
    %884 = vmatpush.bf16.xpose.msra.mxu0 0
    %885 = vmatpush.bf16.xpose.msra.mxu0 0
    %886 = vmatpush.bf16.xpose.msra.mxu0 %v878
    %887 = vmatpush.bf16.xpose.msra.mxu0 %v875
    %888 = vmatmul.bf16.gmra.mxu0 %v869
    %v889 = vpop.f32.mrf.mxu0
    %v890 = vadd.f32 0.0, %v889
    %v891 = vpop.f32.mrf.mxu0
    %v892 = vadd.f32 0.0, %v891
    %893 = vmatmul.bf16.gmra.mxu0 %v872
    %v894 = vpop.f32.mrf.mxu0
    %v895 = vadd.f32 0.0, %v894
    %v896 = vpop.f32.mrf.mxu0
    %897 = vdwg.mxu0
    %898 = vrot.lane.b32.xlu0 %v416, 112
    %v899 = vpop.permute.xlu0 %898
    %900 = vrot.lane.b32.xlu0 %v417, 112
    %v901 = vpop.permute.xlu0 %900
    %902 = vrot.lane.b32.xlu0 %v416, 80
    %v903 = vpop.permute.xlu0 %902
    %904 = vrot.lane.b32.xlu0 %v417, 80
    %v905 = vpop.permute.xlu0 %904
    %v907 = vsel %vm379, %v899, 0
    %v910 = vsel %vm379, %v901, 0
    %v913 = vsel %vm379, %v903, 0
    %v916 = vsel %vm379, %v905, 0
    %918 = vmatpush.bf16.xpose.msra.mxu0 0
    %919 = vmatpush.bf16.xpose.msra.mxu0 0
    %920 = vmatpush.bf16.xpose.msra.mxu0 0
    %921 = vmatpush.bf16.xpose.msra.mxu0 0
    %922 = vmatpush.bf16.xpose.msra.mxu0 0
    %923 = vmatpush.bf16.xpose.msra.mxu0 0
    %924 = vmatpush.bf16.xpose.msra.mxu0 %v916
    %925 = vmatpush.bf16.xpose.msra.mxu0 %v913
    %926 = vmatmul.bf16.gmra.mxu0 %v907
    %v927 = vpop.f32.mrf.mxu0
    %v928 = vadd.f32 0.0, %v927
    %v929 = vpop.f32.mrf.mxu0
    %v930 = vadd.f32 0.0, %v929
    %931 = vmatmul.bf16.gmra.mxu0 %v910
    %v932 = vpop.f32.mrf.mxu0
    %v933 = vadd.f32 0.0, %v932
    %v934 = vpop.f32.mrf.mxu0
    %935 = vdwg.mxu0
    %v936 = vmul.f32 %v890, 0.35355338
    %v937 = vmul.f32 %v892, 0.35355338
    %v938 = vmul.f32 %v895, 0.35355338
    %v939 = vmul.f32 %v928, 0.35355338
    %v940 = vmul.f32 %v930, 0.35355338
    %v941 = vmul.f32 %v933, 0.35355338
    %v942 = vsel %vm459, %v936, -1e+30
    %v943 = vsel %vm459, %v937, -1e+30
    %v944 = vsel %vm459, %v938, -1e+30
    %v945 = vsel %vm459, %v939, -1e+30
    %v946 = vsel %vm459, %v940, -1e+30
    %v947 = vsel %vm459, %v941, -1e+30
    %v948 = vsel %vm466, %v942, -inf
    %949 = vmax.xlane.f32.xlu0 %v948
    %v950 = vpop.xlane.xlu0 %949
    %v951 = vsel %vm466, %v943, -inf
    %952 = vmax.xlane.f32.xlu0 %v951
    %v953 = vpop.xlane.xlu0 %952
    %v954 = vsel %vm466, %v944, -inf
    %955 = vmax.xlane.f32.xlu0 %v954
    %v956 = vpop.xlane.xlu0 %955
    %v957 = vsel %vm466, %v945, -inf
    %958 = vmax.xlane.f32.xlu0 %v957
    %v959 = vpop.xlane.xlu0 %958
    %v960 = vsel %vm466, %v946, -inf
    %961 = vmax.xlane.f32.xlu0 %v960
    %v962 = vpop.xlane.xlu0 %961
    %v963 = vsel %vm466, %v947, -inf
    %964 = vmax.xlane.f32.xlu0 %v963
    %v965 = vpop.xlane.xlu0 %964
    %v966 = vsub.f32 %v942, %v950
    %v967 = vsub.f32 %v943, %v953
    %v968 = vsub.f32 %v944, %v956
    %v969 = vsub.f32 %v945, %v959
    %v970 = vsub.f32 %v946, %v962
    %v971 = vsub.f32 %v947, %v965
    %v972 = vmul.f32 %v966, 1.442695
    %v973 = vpow.pop %v972
    %v974 = vmul.f32 %v967, 1.442695
    %v975 = vpow.pop %v974
    %v976 = vmul.f32 %v968, 1.442695
    %v977 = vpow.pop %v976
    %v978 = vmul.f32 %v969, 1.442695
    %v979 = vpow.pop %v978
    %v980 = vmul.f32 %v970, 1.442695
    %v981 = vpow.pop %v980
    %v982 = vmul.f32 %v971, 1.442695
    %v983 = vpow.pop %v982
    %v984 = vsel %vm466, %v973, 0.0
    %985 = vadd.xlane.f32.xlu0 %v984
    %v986 = vpop.xlane.xlu0 %985
    %v987 = vsel %vm466, %v975, 0.0
    %988 = vadd.xlane.f32.xlu0 %v987
    %v989 = vpop.xlane.xlu0 %988
    %v990 = vsel %vm466, %v977, 0.0
    %991 = vadd.xlane.f32.xlu0 %v990
    %v992 = vpop.xlane.xlu0 %991
    %v993 = vsel %vm466, %v979, 0.0
    %994 = vadd.xlane.f32.xlu0 %v993
    %v995 = vpop.xlane.xlu0 %994
    %v996 = vsel %vm466, %v981, 0.0
    %997 = vadd.xlane.f32.xlu0 %v996
    %v998 = vpop.xlane.xlu0 %997
    %v999 = vsel %vm466, %v983, 0.0
    %1000 = vadd.xlane.f32.xlu0 %v999
    %v1001 = vpop.xlane.xlu0 %1000
    %v1002 = vrcp.pop %v986
    %v1003 = vrcp.pop %v989
    %v1004 = vrcp.pop %v992
    %v1005 = vrcp.pop %v995
    %v1006 = vrcp.pop %v998
    %v1007 = vrcp.pop %v1001
    %v1008 = vmul.f32 %v973, %v1002
    %v1009 = vmul.f32 %v975, %v1003
    %v1010 = vmul.f32 %v977, %v1004
    %v1011 = vmul.f32 %v979, %v1005
    %v1012 = vmul.f32 %v981, %v1006
    %v1013 = vmul.f32 %v983, %v1007
    %v1014 = vpack.c.bf16 %v1008, %v1008
    %v1015 = vpack.c.bf16 %v1009, %v1009
    %v1016 = vpack.c.bf16 %v1010, %v1010
    %v1017 = vpack.c.bf16 %v1011, %v1011
    %v1018 = vpack.c.bf16 %v1012, %v1012
    %v1019 = vpack.c.bf16 %v1013, %v1013
    %v1023 = vunpack.c.l.b16 %v1014
    %v1024 = vunpack.c.l.b16 %v1015
    %v1025 = vunpack.c.l.b16 %v1016
    %v1026 = vpack.c.b16 %v1024, %v1023
    %v1027 = vpack.c.b16 %v1025, %v1025
    %1028 = vrot.lane.b32.xlu0 %v373, 48
    %v1029 = vpop.permute.xlu0 %1028
    %1030 = vrot.lane.b32.xlu0 %v374, 48
    %v1031 = vpop.permute.xlu0 %1030
    %v1034 = vsel %vm466, %v1026, 0
    %v1037 = vsel %vm466, %v1027, 0
    %v1040 = vsel %vm558, %v1031, 0
    %1042 = vmatpush.bf16.msra.mxu0 0
    %1043 = vmatpush.bf16.msra.mxu0 0
    %1044 = vmatpush.bf16.msra.mxu0 0
    %1045 = vmatpush.bf16.msra.mxu0 0
    %1046 = vmatpush.bf16.msra.mxu0 0
    %1047 = vmatpush.bf16.msra.mxu0 0
    %1048 = vmatpush.bf16.msra.mxu0 %v1040
    %1049 = vmatpush.bf16.msra.mxu0 %v1029
    %1050 = vmatmul.bf16.gmra.mxu0 %v1034
    %v1051 = vpop.f32.mrf.mxu0
    %v1052 = vadd.f32 0.0, %v1051
    %v1053 = vpop.f32.mrf.mxu0
    %v1054 = vadd.f32 0.0, %v1053
    %1055 = vmatmul.bf16.gmra.mxu0 %v1037
    %v1056 = vpop.f32.mrf.mxu0
    %v1057 = vadd.f32 0.0, %v1056
    %v1058 = vpop.f32.mrf.mxu0
    %1059 = vdwg.mxu0
    %v1063 = vunpack.c.l.b16 %v1017
    %v1064 = vunpack.c.l.b16 %v1018
    %v1065 = vunpack.c.l.b16 %v1019
    %v1066 = vpack.c.b16 %v1064, %v1063
    %v1067 = vpack.c.b16 %v1065, %v1065
    %1068 = vrot.lane.b32.xlu0 %v416, 48
    %v1069 = vpop.permute.xlu0 %1068
    %1070 = vrot.lane.b32.xlu0 %v417, 48
    %v1071 = vpop.permute.xlu0 %1070
    %v1074 = vsel %vm466, %v1066, 0
    %v1077 = vsel %vm466, %v1067, 0
    %v1080 = vsel %vm558, %v1071, 0
    %1082 = vmatpush.bf16.msra.mxu0 0
    %1083 = vmatpush.bf16.msra.mxu0 0
    %1084 = vmatpush.bf16.msra.mxu0 0
    %1085 = vmatpush.bf16.msra.mxu0 0
    %1086 = vmatpush.bf16.msra.mxu0 0
    %1087 = vmatpush.bf16.msra.mxu0 0
    %1088 = vmatpush.bf16.msra.mxu0 %v1080
    %1089 = vmatpush.bf16.msra.mxu0 %v1069
    %1090 = vmatmul.bf16.gmra.mxu0 %v1074
    %v1091 = vpop.f32.mrf.mxu0
    %v1092 = vadd.f32 0.0, %v1091
    %v1093 = vpop.f32.mrf.mxu0
    %v1094 = vadd.f32 0.0, %v1093
    %1095 = vmatmul.bf16.gmra.mxu0 %v1077
    %v1096 = vpop.f32.mrf.mxu0
    %v1097 = vadd.f32 0.0, %v1096
    %v1098 = vpop.f32.mrf.mxu0
    %1099 = vdwg.mxu0
    %1100 = vrot.lane.b32.xlu0 %v373, 104
    %v1101 = vpop.permute.xlu0 %1100
    %1102 = vrot.lane.b32.xlu0 %v374, 104
    %v1103 = vpop.permute.xlu0 %1102
    %1104 = vrot.lane.b32.xlu0 %v373, 72
    %v1105 = vpop.permute.xlu0 %1104
    %1106 = vrot.lane.b32.xlu0 %v374, 72
    %v1107 = vpop.permute.xlu0 %1106
    %v1109 = vsel %vm379, %v1101, 0
    %v1112 = vsel %vm379, %v1103, 0
    %v1115 = vsel %vm379, %v1105, 0
    %v1118 = vsel %vm379, %v1107, 0
    %1120 = vmatpush.bf16.xpose.msra.mxu0 0
    %1121 = vmatpush.bf16.xpose.msra.mxu0 0
    %1122 = vmatpush.bf16.xpose.msra.mxu0 0
    %1123 = vmatpush.bf16.xpose.msra.mxu0 0
    %1124 = vmatpush.bf16.xpose.msra.mxu0 0
    %1125 = vmatpush.bf16.xpose.msra.mxu0 0
    %1126 = vmatpush.bf16.xpose.msra.mxu0 %v1118
    %1127 = vmatpush.bf16.xpose.msra.mxu0 %v1115
    %1128 = vmatmul.bf16.gmra.mxu0 %v1109
    %v1129 = vpop.f32.mrf.mxu0
    %v1130 = vadd.f32 0.0, %v1129
    %v1131 = vpop.f32.mrf.mxu0
    %v1132 = vadd.f32 0.0, %v1131
    %1133 = vmatmul.bf16.gmra.mxu0 %v1112
    %v1134 = vpop.f32.mrf.mxu0
    %v1135 = vadd.f32 0.0, %v1134
    %v1136 = vpop.f32.mrf.mxu0
    %1137 = vdwg.mxu0
    %1138 = vrot.lane.b32.xlu0 %v416, 104
    %v1139 = vpop.permute.xlu0 %1138
    %1140 = vrot.lane.b32.xlu0 %v417, 104
    %v1141 = vpop.permute.xlu0 %1140
    %1142 = vrot.lane.b32.xlu0 %v416, 72
    %v1143 = vpop.permute.xlu0 %1142
    %1144 = vrot.lane.b32.xlu0 %v417, 72
    %v1145 = vpop.permute.xlu0 %1144
    %v1147 = vsel %vm379, %v1139, 0
    %v1150 = vsel %vm379, %v1141, 0
    %v1153 = vsel %vm379, %v1143, 0
    %v1156 = vsel %vm379, %v1145, 0
    %1158 = vmatpush.bf16.xpose.msra.mxu0 0
    %1159 = vmatpush.bf16.xpose.msra.mxu0 0
    %1160 = vmatpush.bf16.xpose.msra.mxu0 0
    %1161 = vmatpush.bf16.xpose.msra.mxu0 0
    %1162 = vmatpush.bf16.xpose.msra.mxu0 0
    %1163 = vmatpush.bf16.xpose.msra.mxu0 0
    %1164 = vmatpush.bf16.xpose.msra.mxu0 %v1156
    %1165 = vmatpush.bf16.xpose.msra.mxu0 %v1153
    %1166 = vmatmul.bf16.gmra.mxu0 %v1147
    %v1167 = vpop.f32.mrf.mxu0
    %v1168 = vadd.f32 0.0, %v1167
    %v1169 = vpop.f32.mrf.mxu0
    %v1170 = vadd.f32 0.0, %v1169
    %1171 = vmatmul.bf16.gmra.mxu0 %v1150
    %v1172 = vpop.f32.mrf.mxu0
    %v1173 = vadd.f32 0.0, %v1172
    %v1174 = vpop.f32.mrf.mxu0
    %1175 = vdwg.mxu0
    %v1176 = vmul.f32 %v1130, 0.35355338
    %v1177 = vmul.f32 %v1132, 0.35355338
    %v1178 = vmul.f32 %v1135, 0.35355338
    %v1179 = vmul.f32 %v1168, 0.35355338
    %v1180 = vmul.f32 %v1170, 0.35355338
    %v1181 = vmul.f32 %v1173, 0.35355338
    %v1182 = vsel %vm459, %v1176, -1e+30
    %v1183 = vsel %vm459, %v1177, -1e+30
    %v1184 = vsel %vm459, %v1178, -1e+30
    %v1185 = vsel %vm459, %v1179, -1e+30
    %v1186 = vsel %vm459, %v1180, -1e+30
    %v1187 = vsel %vm459, %v1181, -1e+30
    %v1188 = vsel %vm466, %v1182, -inf
    %1189 = vmax.xlane.f32.xlu0 %v1188
    %v1190 = vpop.xlane.xlu0 %1189
    %v1191 = vsel %vm466, %v1183, -inf
    %1192 = vmax.xlane.f32.xlu0 %v1191
    %v1193 = vpop.xlane.xlu0 %1192
    %v1194 = vsel %vm466, %v1184, -inf
    %1195 = vmax.xlane.f32.xlu0 %v1194
    %v1196 = vpop.xlane.xlu0 %1195
    %v1197 = vsel %vm466, %v1185, -inf
    %1198 = vmax.xlane.f32.xlu0 %v1197
    %v1199 = vpop.xlane.xlu0 %1198
    %v1200 = vsel %vm466, %v1186, -inf
    %1201 = vmax.xlane.f32.xlu0 %v1200
    %v1202 = vpop.xlane.xlu0 %1201
    %v1203 = vsel %vm466, %v1187, -inf
    %1204 = vmax.xlane.f32.xlu0 %v1203
    %v1205 = vpop.xlane.xlu0 %1204
    %v1206 = vsub.f32 %v1182, %v1190
    %v1207 = vsub.f32 %v1183, %v1193
    %v1208 = vsub.f32 %v1184, %v1196
    %v1209 = vsub.f32 %v1185, %v1199
    %v1210 = vsub.f32 %v1186, %v1202
    %v1211 = vsub.f32 %v1187, %v1205
    %v1212 = vmul.f32 %v1206, 1.442695
    %v1213 = vpow.pop %v1212
    %v1214 = vmul.f32 %v1207, 1.442695
    %v1215 = vpow.pop %v1214
    %v1216 = vmul.f32 %v1208, 1.442695
    %v1217 = vpow.pop %v1216
    %v1218 = vmul.f32 %v1209, 1.442695
    %v1219 = vpow.pop %v1218
    %v1220 = vmul.f32 %v1210, 1.442695
    %v1221 = vpow.pop %v1220
    %v1222 = vmul.f32 %v1211, 1.442695
    %v1223 = vpow.pop %v1222
    %v1224 = vsel %vm466, %v1213, 0.0
    %1225 = vadd.xlane.f32.xlu0 %v1224
    %v1226 = vpop.xlane.xlu0 %1225
    %v1227 = vsel %vm466, %v1215, 0.0
    %1228 = vadd.xlane.f32.xlu0 %v1227
    %v1229 = vpop.xlane.xlu0 %1228
    %v1230 = vsel %vm466, %v1217, 0.0
    %1231 = vadd.xlane.f32.xlu0 %v1230
    %v1232 = vpop.xlane.xlu0 %1231
    %v1233 = vsel %vm466, %v1219, 0.0
    %1234 = vadd.xlane.f32.xlu0 %v1233
    %v1235 = vpop.xlane.xlu0 %1234
    %v1236 = vsel %vm466, %v1221, 0.0
    %1237 = vadd.xlane.f32.xlu0 %v1236
    %v1238 = vpop.xlane.xlu0 %1237
    %v1239 = vsel %vm466, %v1223, 0.0
    %1240 = vadd.xlane.f32.xlu0 %v1239
    %v1241 = vpop.xlane.xlu0 %1240
    %v1242 = vrcp.pop %v1226
    %v1243 = vrcp.pop %v1229
    %v1244 = vrcp.pop %v1232
    %v1245 = vrcp.pop %v1235
    %v1246 = vrcp.pop %v1238
    %v1247 = vrcp.pop %v1241
    %v1248 = vmul.f32 %v1213, %v1242
    %v1249 = vmul.f32 %v1215, %v1243
    %v1250 = vmul.f32 %v1217, %v1244
    %v1251 = vmul.f32 %v1219, %v1245
    %v1252 = vmul.f32 %v1221, %v1246
    %v1253 = vmul.f32 %v1223, %v1247
    %v1254 = vpack.c.bf16 %v1248, %v1248
    %v1255 = vpack.c.bf16 %v1249, %v1249
    %v1256 = vpack.c.bf16 %v1250, %v1250
    %v1257 = vpack.c.bf16 %v1251, %v1251
    %v1258 = vpack.c.bf16 %v1252, %v1252
    %v1259 = vpack.c.bf16 %v1253, %v1253
    %v1263 = vunpack.c.l.b16 %v1254
    %v1264 = vunpack.c.l.b16 %v1255
    %v1265 = vunpack.c.l.b16 %v1256
    %v1266 = vpack.c.b16 %v1264, %v1263
    %v1267 = vpack.c.b16 %v1265, %v1265
    %1268 = vrot.lane.b32.xlu0 %v373, 40
    %v1269 = vpop.permute.xlu0 %1268
    %1270 = vrot.lane.b32.xlu0 %v374, 40
    %v1271 = vpop.permute.xlu0 %1270
    %v1274 = vsel %vm466, %v1266, 0
    %v1277 = vsel %vm466, %v1267, 0
    %v1280 = vsel %vm558, %v1271, 0
    %1282 = vmatpush.bf16.msra.mxu0 0
    %1283 = vmatpush.bf16.msra.mxu0 0
    %1284 = vmatpush.bf16.msra.mxu0 0
    %1285 = vmatpush.bf16.msra.mxu0 0
    %1286 = vmatpush.bf16.msra.mxu0 0
    %1287 = vmatpush.bf16.msra.mxu0 0
    %1288 = vmatpush.bf16.msra.mxu0 %v1280
    %1289 = vmatpush.bf16.msra.mxu0 %v1269
    %1290 = vmatmul.bf16.gmra.mxu0 %v1274
    %v1291 = vpop.f32.mrf.mxu0
    %v1292 = vadd.f32 0.0, %v1291
    %v1293 = vpop.f32.mrf.mxu0
    %v1294 = vadd.f32 0.0, %v1293
    %1295 = vmatmul.bf16.gmra.mxu0 %v1277
    %v1296 = vpop.f32.mrf.mxu0
    %v1297 = vadd.f32 0.0, %v1296
    %v1298 = vpop.f32.mrf.mxu0
    %1299 = vdwg.mxu0
    %v1303 = vunpack.c.l.b16 %v1257
    %v1304 = vunpack.c.l.b16 %v1258
    %v1305 = vunpack.c.l.b16 %v1259
    %v1306 = vpack.c.b16 %v1304, %v1303
    %v1307 = vpack.c.b16 %v1305, %v1305
    %1308 = vrot.lane.b32.xlu0 %v416, 40
    %v1309 = vpop.permute.xlu0 %1308
    %1310 = vrot.lane.b32.xlu0 %v417, 40
    %v1311 = vpop.permute.xlu0 %1310
    %v1314 = vsel %vm466, %v1306, 0
    %v1317 = vsel %vm466, %v1307, 0
    %v1320 = vsel %vm558, %v1311, 0
    %1322 = vmatpush.bf16.msra.mxu0 0
    %1323 = vmatpush.bf16.msra.mxu0 0
    %1324 = vmatpush.bf16.msra.mxu0 0
    %1325 = vmatpush.bf16.msra.mxu0 0
    %1326 = vmatpush.bf16.msra.mxu0 0
    %1327 = vmatpush.bf16.msra.mxu0 0
    %1328 = vmatpush.bf16.msra.mxu0 %v1320
    %1329 = vmatpush.bf16.msra.mxu0 %v1309
    %1330 = vmatmul.bf16.gmra.mxu0 %v1314
    %v1331 = vpop.f32.mrf.mxu0
    %v1332 = vadd.f32 0.0, %v1331
    %v1333 = vpop.f32.mrf.mxu0
    %v1334 = vadd.f32 0.0, %v1333
    %1335 = vmatmul.bf16.gmra.mxu0 %v1317
    %v1336 = vpop.f32.mrf.mxu0
    %v1337 = vadd.f32 0.0, %v1336
    %v1338 = vpop.f32.mrf.mxu0
    %1339 = vdwg.mxu0
    %1346 = vrot.lane.b32.xlu0 %v812, 8
    %v1347 = vpop.permute.xlu0 %1346
    %1348 = vrot.lane.b32.xlu0 %v814, 8
    %v1349 = vpop.permute.xlu0 %1348
    %1350 = vrot.lane.b32.xlu0 %v817, 8
    %v1351 = vpop.permute.xlu0 %1350
    %1352 = vrot.lane.b32.xlu0 %v852, 8
    %v1353 = vpop.permute.xlu0 %1352
    %1354 = vrot.lane.b32.xlu0 %v854, 8
    %v1355 = vpop.permute.xlu0 %1354
    %1356 = vrot.lane.b32.xlu0 %v857, 8
    %v1357 = vpop.permute.xlu0 %1356
    %1370 = vrot.lane.b32.xlu0 %v1052, 16
    %v1371 = vpop.permute.xlu0 %1370
    %1372 = vrot.lane.b32.xlu0 %v1054, 16
    %v1373 = vpop.permute.xlu0 %1372
    %1374 = vrot.lane.b32.xlu0 %v1057, 16
    %v1375 = vpop.permute.xlu0 %1374
    %1376 = vrot.lane.b32.xlu0 %v1092, 16
    %v1377 = vpop.permute.xlu0 %1376
    %1378 = vrot.lane.b32.xlu0 %v1094, 16
    %v1379 = vpop.permute.xlu0 %1378
    %1380 = vrot.lane.b32.xlu0 %v1097, 16
    %v1381 = vpop.permute.xlu0 %1380
    %1394 = vrot.lane.b32.xlu0 %v1292, 24
    %v1395 = vpop.permute.xlu0 %1394
    %1396 = vrot.lane.b32.xlu0 %v1294, 24
    %v1397 = vpop.permute.xlu0 %1396
    %1398 = vrot.lane.b32.xlu0 %v1297, 24
    %v1399 = vpop.permute.xlu0 %1398
    %1400 = vrot.lane.b32.xlu0 %v1332, 24
    %v1401 = vpop.permute.xlu0 %1400
    %1402 = vrot.lane.b32.xlu0 %v1334, 24
    %v1403 = vpop.permute.xlu0 %1402
    %1404 = vrot.lane.b32.xlu0 %v1337, 24
    %v1405 = vpop.permute.xlu0 %1404
    %v1412 = vsel %vm379, %v572, %v1347
    %v1413 = vsel %vm379, %v574, %v1349
    %v1414 = vsel %vm379, %v577, %v1351
    %v1415 = vsel %vm379, %v612, %v1353
    %v1416 = vsel %vm379, %v614, %v1355
    %v1417 = vsel %vm379, %v617, %v1357
    %vm1418 = vcmask 130048
    %v1419 = vsel %vm1418, %v1412, %v1371
    %v1420 = vsel %vm1418, %v1413, %v1373
    %v1421 = vsel %vm1418, %v1414, %v1375
    %v1422 = vsel %vm1418, %v1415, %v1377
    %v1423 = vsel %vm1418, %v1416, %v1379
    %v1424 = vsel %vm1418, %v1417, %v1381
    %v1425 = vsel %vm466, %v1419, %v1395
    %v1426 = vsel %vm466, %v1420, %v1397
    %v1427 = vsel %vm466, %v1421, %v1399
    %v1428 = vsel %vm466, %v1422, %v1401
    %v1429 = vsel %vm466, %v1423, %v1403
    %v1430 = vsel %vm466, %v1424, %v1405
    %v1431 = vld [vmem:[%s6] sm:$0xf]
    %v1432 = vld [vmem:[%s6 + $0x4] sm:$0xf]
    %v1433 = vld [vmem:[%s6 + $0x8] sm:$0xf]
    %v1434 = vld [vmem:[%s6 + $0xc] sm:$0xf]
    %v1435 = vpack.c.bf16 %v1426, %v1425
    %v1436 = vpack.c.bf16 %v1428, %v1427
    %v1437 = vpack.c.bf16 %v1430, %v1429
    %v1442 = vunpack.c.l.b16 %v1431
    %v1443 = vunpack.c.l.b16 %v1432
    %v1444 = vunpack.c.l.b16 %v1433
    %v1445 = vunpack.c.l.b16 %v1434
    %v1446 = vpack.c.b16 %v1443, %v1442
    %v1447 = vpack.c.b16 %v1445, %v1444
    %v1451 = vsel %vm151, %v1435, 0
    %v1454 = vsel %vm151, %v1436, 0
    %v1457 = vsel %vm151, %v1437, 0
    %1459 = vmatpush.bf16.msra.mxu0 0
    %1460 = vmatpush.bf16.msra.mxu0 0
    %1461 = vmatpush.bf16.msra.mxu0 0
    %1462 = vmatpush.bf16.msra.mxu0 0
    %1463 = vmatpush.bf16.msra.mxu0 0
    %1464 = vmatpush.bf16.msra.mxu0 0
    %1465 = vmatpush.bf16.msra.mxu0 %v1447
    %1466 = vmatpush.bf16.msra.mxu0 %v1446
    %1467 = vmatmul.bf16.gmra.mxu0 %v1451
    %v1468 = vpop.f32.mrf.mxu0
    %v1469 = vadd.f32 0.0, %v1468
    %v1470 = vpop.f32.mrf.mxu0
    %v1471 = vadd.f32 0.0, %v1470
    %1472 = vmatmul.bf16.gmra.mxu0 %v1454
    %v1473 = vpop.f32.mrf.mxu0
    %v1474 = vadd.f32 0.0, %v1473
    %v1475 = vpop.f32.mrf.mxu0
    %v1476 = vadd.f32 0.0, %v1475
    %1477 = vmatmul.bf16.gmra.mxu0 %v1457
    %v1478 = vpop.f32.mrf.mxu0
    %v1479 = vadd.f32 0.0, %v1478
    %v1480 = vpop.f32.mrf.mxu0
    %v1481 = vadd.f32 0.0, %v1480
    %1482 = vdwg.mxu0
    %v1483 = vadd.f32 %v132, %v1469
    %v1484 = vadd.f32 %v134, %v1471
    %v1485 = vadd.f32 %v137, %v1474
    %v1486 = vadd.f32 %v139, %v1476
    %v1487 = vadd.f32 %v142, %v1479
    %v1488 = vadd.f32 %v144, %v1481
    %v1489 = vld [vmem:[%s7] sm:$0x1]
    %v1491 = vperm.slane %v1489, 0
    %v1493 = vadd.f32 %v1483, %v1491
    %v1494 = vadd.f32 %v1484, %v1491
    %v1495 = vadd.f32 %v1485, %v1491
    %v1496 = vadd.f32 %v1486, %v1491
    %v1497 = vadd.f32 %v1487, %v1491
    %v1498 = vadd.f32 %v1488, %v1491
    %v1499 = vld [vmem:[%s8] sm:$0x1]
    %v1500 = vld [vmem:[%s9] sm:$0x1]
    %v1501 = vsel %vm151, %v1493, 0.0
    %1502 = vadd.xlane.f32.xlu0 %v1501
    %v1503 = vpop.xlane.xlu0 %1502
    %v1504 = vsel %vm151, %v1494, 0.0
    %1505 = vadd.xlane.f32.xlu0 %v1504
    %v1506 = vpop.xlane.xlu0 %1505
    %v1507 = vsel %vm151, %v1495, 0.0
    %1508 = vadd.xlane.f32.xlu0 %v1507
    %v1509 = vpop.xlane.xlu0 %1508
    %v1510 = vsel %vm151, %v1496, 0.0
    %1511 = vadd.xlane.f32.xlu0 %v1510
    %v1512 = vpop.xlane.xlu0 %1511
    %v1513 = vsel %vm151, %v1497, 0.0
    %1514 = vadd.xlane.f32.xlu0 %v1513
    %v1515 = vpop.xlane.xlu0 %1514
    %v1516 = vsel %vm151, %v1498, 0.0
    %1517 = vadd.xlane.f32.xlu0 %v1516
    %v1518 = vpop.xlane.xlu0 %1517
    %v1519 = vmul.f32 %v1503, %v176
    %v1520 = vmul.f32 %v1506, %v176
    %v1521 = vmul.f32 %v1509, %v176
    %v1522 = vmul.f32 %v1512, %v176
    %v1523 = vmul.f32 %v1515, %v176
    %v1524 = vmul.f32 %v1518, %v176
    %v1525 = vsub.f32 %v1493, %v1519
    %v1526 = vsub.f32 %v1494, %v1520
    %v1527 = vsub.f32 %v1495, %v1521
    %v1528 = vsub.f32 %v1496, %v1522
    %v1529 = vsub.f32 %v1497, %v1523
    %v1530 = vsub.f32 %v1498, %v1524
    %v1531 = vmul.f32 %v1525, %v1525
    %v1532 = vmul.f32 %v1526, %v1526
    %v1533 = vmul.f32 %v1527, %v1527
    %v1534 = vmul.f32 %v1528, %v1528
    %v1535 = vmul.f32 %v1529, %v1529
    %v1536 = vmul.f32 %v1530, %v1530
    %v1537 = vsel %vm151, %v1531, 0.0
    %1538 = vadd.xlane.f32.xlu0 %v1537
    %v1539 = vpop.xlane.xlu0 %1538
    %v1540 = vsel %vm151, %v1532, 0.0
    %1541 = vadd.xlane.f32.xlu0 %v1540
    %v1542 = vpop.xlane.xlu0 %1541
    %v1543 = vsel %vm151, %v1533, 0.0
    %1544 = vadd.xlane.f32.xlu0 %v1543
    %v1545 = vpop.xlane.xlu0 %1544
    %v1546 = vsel %vm151, %v1534, 0.0
    %1547 = vadd.xlane.f32.xlu0 %v1546
    %v1548 = vpop.xlane.xlu0 %1547
    %v1549 = vsel %vm151, %v1535, 0.0
    %1550 = vadd.xlane.f32.xlu0 %v1549
    %v1551 = vpop.xlane.xlu0 %1550
    %v1552 = vsel %vm151, %v1536, 0.0
    %1553 = vadd.xlane.f32.xlu0 %v1552
    %v1554 = vpop.xlane.xlu0 %1553
    %v1555 = vmul.f32 %v1539, %v176
    %v1556 = vmul.f32 %v1542, %v176
    %v1557 = vmul.f32 %v1545, %v176
    %v1558 = vmul.f32 %v1548, %v176
    %v1559 = vmul.f32 %v1551, %v176
    %v1560 = vmul.f32 %v1554, %v176
    %v1561 = vadd.f32 %v1555, 1e-05
    %v1562 = vadd.f32 %v1556, 1e-05
    %v1563 = vadd.f32 %v1557, 1e-05
    %v1564 = vadd.f32 %v1558, 1e-05
    %v1565 = vadd.f32 %v1559, 1e-05
    %v1566 = vadd.f32 %v1560, 1e-05
    %v1567 = vrsqrt.pop %v1561
    %v1568 = vmul.f32 %v1567, %v1561
    %v1569 = vmul.f32 %v1568, %v1567
    %v1570 = vmul.f32 0.5, %v1569
    %v1571 = vsub.f32 1.5, %v1570
    %v1572 = vmul.f32 %v1567, %v1571
    %vm1573 = vweird.f32 %v1561
    %vm1574 = vweird.f32 %v1567
    %vm1575 = vmor %vm1573, %vm1574
    %v1576 = vsel %vm1575, %v1567, %v1572
    %v1577 = vrsqrt.pop %v1562
    %v1578 = vmul.f32 %v1577, %v1562
    %v1579 = vmul.f32 %v1578, %v1577
    %v1580 = vmul.f32 0.5, %v1579
    %v1581 = vsub.f32 1.5, %v1580
    %v1582 = vmul.f32 %v1577, %v1581
    %vm1583 = vweird.f32 %v1562
    %vm1584 = vweird.f32 %v1577
    %vm1585 = vmor %vm1583, %vm1584
    %v1586 = vsel %vm1585, %v1577, %v1582
    %v1587 = vrsqrt.pop %v1563
    %v1588 = vmul.f32 %v1587, %v1563
    %v1589 = vmul.f32 %v1588, %v1587
    %v1590 = vmul.f32 0.5, %v1589
    %v1591 = vsub.f32 1.5, %v1590
    %v1592 = vmul.f32 %v1587, %v1591
    %vm1593 = vweird.f32 %v1563
    %vm1594 = vweird.f32 %v1587
    %vm1595 = vmor %vm1593, %vm1594
    %v1596 = vsel %vm1595, %v1587, %v1592
    %v1597 = vrsqrt.pop %v1564
    %v1598 = vmul.f32 %v1597, %v1564
    %v1599 = vmul.f32 %v1598, %v1597
    %v1600 = vmul.f32 0.5, %v1599
    %v1601 = vsub.f32 1.5, %v1600
    %v1602 = vmul.f32 %v1597, %v1601
    %vm1603 = vweird.f32 %v1564
    %vm1604 = vweird.f32 %v1597
    %vm1605 = vmor %vm1603, %vm1604
    %v1606 = vsel %vm1605, %v1597, %v1602
    %v1607 = vrsqrt.pop %v1565
    %v1608 = vmul.f32 %v1607, %v1565
    %v1609 = vmul.f32 %v1608, %v1607
    %v1610 = vmul.f32 0.5, %v1609
    %v1611 = vsub.f32 1.5, %v1610
    %v1612 = vmul.f32 %v1607, %v1611
    %vm1613 = vweird.f32 %v1565
    %vm1614 = vweird.f32 %v1607
    %vm1615 = vmor %vm1613, %vm1614
    %v1616 = vsel %vm1615, %v1607, %v1612
    %v1617 = vrsqrt.pop %v1566
    %v1618 = vmul.f32 %v1617, %v1566
    %v1619 = vmul.f32 %v1618, %v1617
    %v1620 = vmul.f32 0.5, %v1619
    %v1621 = vsub.f32 1.5, %v1620
    %v1622 = vmul.f32 %v1617, %v1621
    %vm1623 = vweird.f32 %v1566
    %vm1624 = vweird.f32 %v1617
    %vm1625 = vmor %vm1623, %vm1624
    %v1626 = vsel %vm1625, %v1617, %v1622
    %v1627 = vmul.f32 %v1525, %v1576
    %v1628 = vmul.f32 %v1526, %v1586
    %v1629 = vmul.f32 %v1527, %v1596
    %v1630 = vmul.f32 %v1528, %v1606
    %v1631 = vmul.f32 %v1529, %v1616
    %v1632 = vmul.f32 %v1530, %v1626
    %v1634 = vperm.slane %v1499, 0
    %v1636 = vmul.f32 %v1627, %v1634
    %v1637 = vmul.f32 %v1628, %v1634
    %v1638 = vmul.f32 %v1629, %v1634
    %v1639 = vmul.f32 %v1630, %v1634
    %v1640 = vmul.f32 %v1631, %v1634
    %v1641 = vmul.f32 %v1632, %v1634
    %v1643 = vperm.slane %v1500, 0
    %v1645 = vadd.f32 %v1636, %v1643
    %v1646 = vadd.f32 %v1637, %v1643
    %v1647 = vadd.f32 %v1638, %v1643
    %v1648 = vadd.f32 %v1639, %v1643
    %v1649 = vadd.f32 %v1640, %v1643
    %v1650 = vadd.f32 %v1641, %v1643
    %v1651 = vld [vmem:[%s10] sm:$0xf]
    %v1652 = vld [vmem:[%s10 + $0x4] sm:$0xf]
    %v1653 = vld [vmem:[%s10 + $0x8] sm:$0xf]
    %v1654 = vld [vmem:[%s10 + $0xc] sm:$0xf]
    %v1655 = vpack.c.bf16 %v1646, %v1645
    %v1656 = vpack.c.bf16 %v1648, %v1647
    %v1657 = vpack.c.bf16 %v1650, %v1649
    %v1658 = vld [vmem:[%s11] sm:$0x1]
    %v1660 = vperm.slane %v1658, 0
    %v1666 = vunpack.c.l.b16 %v1651
    %v1667 = vunpack.c.l.b16 %v1652
    %v1668 = vunpack.c.l.b16 %v1653
    %v1669 = vunpack.c.l.b16 %v1654
    %v1670 = vpack.c.b16 %v1667, %v1666
    %v1671 = vpack.c.b16 %v1669, %v1668
    %v1675 = vsel %vm151, %v1655, 0
    %v1678 = vsel %vm151, %v1656, 0
    %v1681 = vsel %vm151, %v1657, 0
    %1683 = vmatpush.bf16.msra.mxu0 0
    %1684 = vmatpush.bf16.msra.mxu0 0
    %1685 = vmatpush.bf16.msra.mxu0 0
    %1686 = vmatpush.bf16.msra.mxu0 0
    %1687 = vmatpush.bf16.msra.mxu0 0
    %1688 = vmatpush.bf16.msra.mxu0 0
    %1689 = vmatpush.bf16.msra.mxu0 %v1671
    %1690 = vmatpush.bf16.msra.mxu0 %v1670
    %1691 = vmatmul.bf16.gmra.mxu0 %v1675
    %v1692 = vpop.f32.mrf.mxu0
    %v1693 = vadd.f32 %v1660, %v1692
    %v1694 = vpop.f32.mrf.mxu0
    %v1695 = vadd.f32 %v1660, %v1694
    %1696 = vmatmul.bf16.gmra.mxu0 %v1678
    %v1697 = vpop.f32.mrf.mxu0
    %v1698 = vadd.f32 %v1660, %v1697
    %v1699 = vpop.f32.mrf.mxu0
    %v1700 = vadd.f32 %v1660, %v1699
    %1701 = vmatmul.bf16.gmra.mxu0 %v1681
    %v1702 = vpop.f32.mrf.mxu0
    %v1703 = vadd.f32 %v1660, %v1702
    %v1704 = vpop.f32.mrf.mxu0
    %v1705 = vadd.f32 %v1660, %v1704
    %1706 = vdwg.mxu0
    %v1707 = vmul.f32 %v1693, 0.5
    %v1708 = vmul.f32 %v1695, 0.5
    %v1709 = vmul.f32 %v1698, 0.5
    %v1710 = vmul.f32 %v1700, 0.5
    %v1711 = vmul.f32 %v1703, 0.5
    %v1712 = vmul.f32 %v1705, 0.5
    %v1713 = vmul.f32 %v1693, 0.044715
    %v1714 = vmul.f32 %v1695, 0.044715
    %v1715 = vmul.f32 %v1698, 0.044715
    %v1716 = vmul.f32 %v1700, 0.044715
    %v1717 = vmul.f32 %v1703, 0.044715
    %v1718 = vmul.f32 %v1705, 0.044715
    %v1719 = vmul.f32 %v1713, %v1693
    %v1720 = vmul.f32 %v1714, %v1695
    %v1721 = vmul.f32 %v1715, %v1698
    %v1722 = vmul.f32 %v1716, %v1700
    %v1723 = vmul.f32 %v1717, %v1703
    %v1724 = vmul.f32 %v1718, %v1705
    %v1725 = vmul.f32 %v1719, %v1693
    %v1726 = vmul.f32 %v1720, %v1695
    %v1727 = vmul.f32 %v1721, %v1698
    %v1728 = vmul.f32 %v1722, %v1700
    %v1729 = vmul.f32 %v1723, %v1703
    %v1730 = vmul.f32 %v1724, %v1705
    %v1731 = vadd.f32 %v1693, %v1725
    %v1732 = vadd.f32 %v1695, %v1726
    %v1733 = vadd.f32 %v1698, %v1727
    %v1734 = vadd.f32 %v1700, %v1728
    %v1735 = vadd.f32 %v1703, %v1729
    %v1736 = vadd.f32 %v1705, %v1730
    %v1737 = vmul.f32 %v1731, 0.7978846
    %v1738 = vmul.f32 %v1732, 0.7978846
    %v1739 = vmul.f32 %v1733, 0.7978846
    %v1740 = vmul.f32 %v1734, 0.7978846
    %v1741 = vmul.f32 %v1735, 0.7978846
    %v1742 = vmul.f32 %v1736, 0.7978846
    %v1743 = vtanh.pop %v1737
    %v1744 = vtanh.pop %v1738
    %v1745 = vtanh.pop %v1739
    %v1746 = vtanh.pop %v1740
    %v1747 = vtanh.pop %v1741
    %v1748 = vtanh.pop %v1742
    %v1749 = vadd.f32 %v1743, 1.0
    %v1750 = vadd.f32 %v1744, 1.0
    %v1751 = vadd.f32 %v1745, 1.0
    %v1752 = vadd.f32 %v1746, 1.0
    %v1753 = vadd.f32 %v1747, 1.0
    %v1754 = vadd.f32 %v1748, 1.0
    %v1755 = vmul.f32 %v1707, %v1749
    %v1756 = vmul.f32 %v1708, %v1750
    %v1757 = vmul.f32 %v1709, %v1751
    %v1758 = vmul.f32 %v1710, %v1752
    %v1759 = vmul.f32 %v1711, %v1753
    %v1760 = vmul.f32 %v1712, %v1754
    %v1761 = vld [vmem:[%s12] sm:$0xf]
    %v1762 = vld [vmem:[%s12 + $0x4] sm:$0xf]
    %v1763 = vld [vmem:[%s12 + $0x8] sm:$0xf]
    %v1764 = vld [vmem:[%s12 + $0xc] sm:$0xf]
    %v1765 = vld [vmem:[%s12 + $0x10] sm:$0xf]
    %v1766 = vld [vmem:[%s12 + $0x14] sm:$0xf]
    %v1767 = vld [vmem:[%s12 + $0x18] sm:$0xf]
    %v1768 = vld [vmem:[%s12 + $0x1c] sm:$0xf]
    %v1769 = vpack.c.bf16 %v1756, %v1755
    %v1770 = vpack.c.bf16 %v1758, %v1757
    %v1771 = vpack.c.bf16 %v1760, %v1759
    %v1780 = vunpack.c.l.b16 %v1761
    %v1781 = vunpack.c.l.b16 %v1762
    %v1782 = vunpack.c.l.b16 %v1763
    %v1783 = vunpack.c.l.b16 %v1764
    %v1784 = vunpack.c.l.b16 %v1765
    %v1785 = vunpack.c.l.b16 %v1766
    %v1786 = vunpack.c.l.b16 %v1767
    %v1787 = vunpack.c.l.b16 %v1768
    %v1788 = vpack.c.b16 %v1781, %v1780
    %v1789 = vpack.c.b16 %v1783, %v1782
    %v1790 = vpack.c.b16 %v1785, %v1784
    %v1791 = vpack.c.b16 %v1787, %v1786
    %vm1796 = vcmask 523264
    %v1798 = vsel %vm1796, %v1769, 0
    %v1801 = vsel %vm1796, %v1770, 0
    %v1804 = vsel %vm1796, %v1771, 0
    %1806 = vmatpush.bf16.msra.mxu0 0
    %1807 = vmatpush.bf16.msra.mxu0 0
    %1808 = vmatpush.bf16.msra.mxu0 0
    %1809 = vmatpush.bf16.msra.mxu0 0
    %1810 = vmatpush.bf16.msra.mxu0 %v1791
    %1811 = vmatpush.bf16.msra.mxu0 %v1790
    %1812 = vmatpush.bf16.msra.mxu0 %v1789
    %1813 = vmatpush.bf16.msra.mxu0 %v1788
    %1814 = vmatmul.bf16.gmra.mxu0 %v1798
    %v1815 = vpop.f32.mrf.mxu0
    %v1816 = vadd.f32 0.0, %v1815
    %v1817 = vpop.f32.mrf.mxu0
    %v1818 = vadd.f32 0.0, %v1817
    %1819 = vmatmul.bf16.gmra.mxu0 %v1801
    %v1820 = vpop.f32.mrf.mxu0
    %v1821 = vadd.f32 0.0, %v1820
    %v1822 = vpop.f32.mrf.mxu0
    %v1823 = vadd.f32 0.0, %v1822
    %1824 = vmatmul.bf16.gmra.mxu0 %v1804
    %v1825 = vpop.f32.mrf.mxu0
    %v1826 = vadd.f32 0.0, %v1825
    %v1827 = vpop.f32.mrf.mxu0
    %v1828 = vadd.f32 0.0, %v1827
    %1829 = vdwg.mxu0
    %v1830 = vadd.f32 %v1493, %v1816
    %v1831 = vadd.f32 %v1494, %v1818
    %v1832 = vadd.f32 %v1495, %v1821
    %v1833 = vadd.f32 %v1496, %v1823
    %v1834 = vadd.f32 %v1497, %v1826
    %v1835 = vadd.f32 %v1498, %v1828
    %v1836 = vld [vmem:[%s13] sm:$0x1]
    %v1838 = vperm.slane %v1836, 0
    %v1840 = vadd.f32 %v1830, %v1838
    %v1841 = vadd.f32 %v1831, %v1838
    %v1842 = vadd.f32 %v1832, %v1838
    %v1843 = vadd.f32 %v1833, %v1838
    %v1844 = vadd.f32 %v1834, %v1838
    %v1845 = vadd.f32 %v1835, %v1838
    %s1846 = scalar_lea.vmem %s3, 1
    %v1847 = vld [vmem:[%s1846] sm:$0x1]
    %s1848 = scalar_lea.vmem %s4, 1
    %v1849 = vld [vmem:[%s1848] sm:$0x1]
    %v1850 = vsel %vm151, %v1840, 0.0
    %1851 = vadd.xlane.f32.xlu0 %v1850
    %v1852 = vpop.xlane.xlu0 %1851
    %v1853 = vsel %vm151, %v1841, 0.0
    %1854 = vadd.xlane.f32.xlu0 %v1853
    %v1855 = vpop.xlane.xlu0 %1854
    %v1856 = vsel %vm151, %v1842, 0.0
    %1857 = vadd.xlane.f32.xlu0 %v1856
    %v1858 = vpop.xlane.xlu0 %1857
    %v1859 = vsel %vm151, %v1843, 0.0
    %1860 = vadd.xlane.f32.xlu0 %v1859
    %v1861 = vpop.xlane.xlu0 %1860
    %v1862 = vsel %vm151, %v1844, 0.0
    %1863 = vadd.xlane.f32.xlu0 %v1862
    %v1864 = vpop.xlane.xlu0 %1863
    %v1865 = vsel %vm151, %v1845, 0.0
    %1866 = vadd.xlane.f32.xlu0 %v1865
    %v1867 = vpop.xlane.xlu0 %1866
    %v1868 = vmul.f32 %v1852, %v176
    %v1869 = vmul.f32 %v1855, %v176
    %v1870 = vmul.f32 %v1858, %v176
    %v1871 = vmul.f32 %v1861, %v176
    %v1872 = vmul.f32 %v1864, %v176
    %v1873 = vmul.f32 %v1867, %v176
    %v1874 = vsub.f32 %v1840, %v1868
    %v1875 = vsub.f32 %v1841, %v1869
    %v1876 = vsub.f32 %v1842, %v1870
    %v1877 = vsub.f32 %v1843, %v1871
    %v1878 = vsub.f32 %v1844, %v1872
    %v1879 = vsub.f32 %v1845, %v1873
    %v1880 = vmul.f32 %v1874, %v1874
    %v1881 = vmul.f32 %v1875, %v1875
    %v1882 = vmul.f32 %v1876, %v1876
    %v1883 = vmul.f32 %v1877, %v1877
    %v1884 = vmul.f32 %v1878, %v1878
    %v1885 = vmul.f32 %v1879, %v1879
    %v1886 = vsel %vm151, %v1880, 0.0
    %1887 = vadd.xlane.f32.xlu0 %v1886
    %v1888 = vpop.xlane.xlu0 %1887
    %v1889 = vsel %vm151, %v1881, 0.0
    %1890 = vadd.xlane.f32.xlu0 %v1889
    %v1891 = vpop.xlane.xlu0 %1890
    %v1892 = vsel %vm151, %v1882, 0.0
    %1893 = vadd.xlane.f32.xlu0 %v1892
    %v1894 = vpop.xlane.xlu0 %1893
    %v1895 = vsel %vm151, %v1883, 0.0
    %1896 = vadd.xlane.f32.xlu0 %v1895
    %v1897 = vpop.xlane.xlu0 %1896
    %v1898 = vsel %vm151, %v1884, 0.0
    %1899 = vadd.xlane.f32.xlu0 %v1898
    %v1900 = vpop.xlane.xlu0 %1899
    %v1901 = vsel %vm151, %v1885, 0.0
    %1902 = vadd.xlane.f32.xlu0 %v1901
    %v1903 = vpop.xlane.xlu0 %1902
    %v1904 = vmul.f32 %v1888, %v176
    %v1905 = vmul.f32 %v1891, %v176
    %v1906 = vmul.f32 %v1894, %v176
    %v1907 = vmul.f32 %v1897, %v176
    %v1908 = vmul.f32 %v1900, %v176
    %v1909 = vmul.f32 %v1903, %v176
    %v1910 = vadd.f32 %v1904, 1e-05
    %v1911 = vadd.f32 %v1905, 1e-05
    %v1912 = vadd.f32 %v1906, 1e-05
    %v1913 = vadd.f32 %v1907, 1e-05
    %v1914 = vadd.f32 %v1908, 1e-05
    %v1915 = vadd.f32 %v1909, 1e-05
    %v1916 = vrsqrt.pop %v1910
    %v1917 = vmul.f32 %v1916, %v1910
    %v1918 = vmul.f32 %v1917, %v1916
    %v1919 = vmul.f32 0.5, %v1918
    %v1920 = vsub.f32 1.5, %v1919
    %v1921 = vmul.f32 %v1916, %v1920
    %vm1922 = vweird.f32 %v1910
    %vm1923 = vweird.f32 %v1916
    %vm1924 = vmor %vm1922, %vm1923
    %v1925 = vsel %vm1924, %v1916, %v1921
    %v1926 = vrsqrt.pop %v1911
    %v1927 = vmul.f32 %v1926, %v1911
    %v1928 = vmul.f32 %v1927, %v1926
    %v1929 = vmul.f32 0.5, %v1928
    %v1930 = vsub.f32 1.5, %v1929
    %v1931 = vmul.f32 %v1926, %v1930
    %vm1932 = vweird.f32 %v1911
    %vm1933 = vweird.f32 %v1926
    %vm1934 = vmor %vm1932, %vm1933
    %v1935 = vsel %vm1934, %v1926, %v1931
    %v1936 = vrsqrt.pop %v1912
    %v1937 = vmul.f32 %v1936, %v1912
    %v1938 = vmul.f32 %v1937, %v1936
    %v1939 = vmul.f32 0.5, %v1938
    %v1940 = vsub.f32 1.5, %v1939
    %v1941 = vmul.f32 %v1936, %v1940
    %vm1942 = vweird.f32 %v1912
    %vm1943 = vweird.f32 %v1936
    %vm1944 = vmor %vm1942, %vm1943
    %v1945 = vsel %vm1944, %v1936, %v1941
    %v1946 = vrsqrt.pop %v1913
    %v1947 = vmul.f32 %v1946, %v1913
    %v1948 = vmul.f32 %v1947, %v1946
    %v1949 = vmul.f32 0.5, %v1948
    %v1950 = vsub.f32 1.5, %v1949
    %v1951 = vmul.f32 %v1946, %v1950
    %vm1952 = vweird.f32 %v1913
    %vm1953 = vweird.f32 %v1946
    %vm1954 = vmor %vm1952, %vm1953
    %v1955 = vsel %vm1954, %v1946, %v1951
    %v1956 = vrsqrt.pop %v1914
    %v1957 = vmul.f32 %v1956, %v1914
    %v1958 = vmul.f32 %v1957, %v1956
    %v1959 = vmul.f32 0.5, %v1958
    %v1960 = vsub.f32 1.5, %v1959
    %v1961 = vmul.f32 %v1956, %v1960
    %vm1962 = vweird.f32 %v1914
    %vm1963 = vweird.f32 %v1956
    %vm1964 = vmor %vm1962, %vm1963
    %v1965 = vsel %vm1964, %v1956, %v1961
    %v1966 = vrsqrt.pop %v1915
    %v1967 = vmul.f32 %v1966, %v1915
    %v1968 = vmul.f32 %v1967, %v1966
    %v1969 = vmul.f32 0.5, %v1968
    %v1970 = vsub.f32 1.5, %v1969
    %v1971 = vmul.f32 %v1966, %v1970
    %vm1972 = vweird.f32 %v1915
    %vm1973 = vweird.f32 %v1966
    %vm1974 = vmor %vm1972, %vm1973
    %v1975 = vsel %vm1974, %v1966, %v1971
    %v1976 = vmul.f32 %v1874, %v1925
    %v1977 = vmul.f32 %v1875, %v1935
    %v1978 = vmul.f32 %v1876, %v1945
    %v1979 = vmul.f32 %v1877, %v1955
    %v1980 = vmul.f32 %v1878, %v1965
    %v1981 = vmul.f32 %v1879, %v1975
    %v1983 = vperm.slane %v1847, 0
    %v1985 = vmul.f32 %v1976, %v1983
    %v1986 = vmul.f32 %v1977, %v1983
    %v1987 = vmul.f32 %v1978, %v1983
    %v1988 = vmul.f32 %v1979, %v1983
    %v1989 = vmul.f32 %v1980, %v1983
    %v1990 = vmul.f32 %v1981, %v1983
    %v1992 = vperm.slane %v1849, 0
    %v1994 = vadd.f32 %v1985, %v1992
    %v1995 = vadd.f32 %v1986, %v1992
    %v1996 = vadd.f32 %v1987, %v1992
    %v1997 = vadd.f32 %v1988, %v1992
    %v1998 = vadd.f32 %v1989, %v1992
    %v1999 = vadd.f32 %v1990, %v1992
    %s2000 = scalar_lea.vmem %s5, 16
    %v2001 = vld [vmem:[%s2000] sm:$0xf]
    %v2002 = vld [vmem:[%s2000 + $0x4] sm:$0xf]
    %v2003 = vld [vmem:[%s2000 + $0x8] sm:$0xf]
    %v2004 = vld [vmem:[%s2000 + $0xc] sm:$0xf]
    %v2005 = vpack.c.bf16 %v1995, %v1994
    %v2006 = vpack.c.bf16 %v1997, %v1996
    %v2007 = vpack.c.bf16 %v1999, %v1998
    %v2012 = vunpack.c.l.b16 %v2001
    %v2013 = vunpack.c.l.b16 %v2002
    %v2014 = vunpack.c.l.b16 %v2003
    %v2015 = vunpack.c.l.b16 %v2004
    %v2016 = vpack.c.b16 %v2013, %v2012
    %v2017 = vpack.c.b16 %v2015, %v2014
    %v2021 = vsel %vm151, %v2005, 0
    %v2024 = vsel %vm151, %v2006, 0
    %v2027 = vsel %vm151, %v2007, 0
    %2029 = vmatpush.bf16.msra.mxu0 0
    %2030 = vmatpush.bf16.msra.mxu0 0
    %2031 = vmatpush.bf16.msra.mxu0 0
    %2032 = vmatpush.bf16.msra.mxu0 0
    %2033 = vmatpush.bf16.msra.mxu0 0
    %2034 = vmatpush.bf16.msra.mxu0 0
    %2035 = vmatpush.bf16.msra.mxu0 %v2017
    %2036 = vmatpush.bf16.msra.mxu0 %v2016
    %2037 = vmatmul.bf16.gmra.mxu0 %v2021
    %v2038 = vpop.f32.mrf.mxu0
    %v2039 = vadd.f32 0.0, %v2038
    %v2040 = vpop.f32.mrf.mxu0
    %v2041 = vadd.f32 0.0, %v2040
    %2042 = vmatmul.bf16.gmra.mxu0 %v2024
    %v2043 = vpop.f32.mrf.mxu0
    %v2044 = vadd.f32 0.0, %v2043
    %v2045 = vpop.f32.mrf.mxu0
    %v2046 = vadd.f32 0.0, %v2045
    %2047 = vmatmul.bf16.gmra.mxu0 %v2027
    %v2048 = vpop.f32.mrf.mxu0
    %v2049 = vadd.f32 0.0, %v2048
    %v2050 = vpop.f32.mrf.mxu0
    %v2051 = vadd.f32 0.0, %v2050
    %2052 = vdwg.mxu0
    %v2053 = vpack.c.bf16 %v2039, %v2039
    %v2054 = vpack.c.bf16 %v2041, %v2041
    %v2055 = vpack.c.bf16 %v2044, %v2044
    %v2056 = vpack.c.bf16 %v2046, %v2046
    %v2057 = vpack.c.bf16 %v2049, %v2049
    %v2058 = vpack.c.bf16 %v2051, %v2051
    %v2062 = vunpack.c.l.b16 %v2053
    %v2063 = vunpack.c.l.b16 %v2054
    %v2064 = vunpack.c.l.b16 %v2055
    %v2065 = vpack.c.b16 %v2063, %v2062
    %v2066 = vpack.c.b16 %v2064, %v2064
    %2067 = vrot.lane.b32.xlu0 %v2065, 96
    %v2068 = vpop.permute.xlu0 %2067
    %2069 = vrot.lane.b32.xlu0 %v2066, 96
    %v2070 = vpop.permute.xlu0 %2069
    %v2072 = vsel %vm379, %v2065, 0
    %v2075 = vsel %vm379, %v2066, 0
    %v2078 = vsel %vm379, %v2068, 0
    %v2081 = vsel %vm379, %v2070, 0
    %2083 = vmatpush.bf16.xpose.msra.mxu0 0
    %2084 = vmatpush.bf16.xpose.msra.mxu0 0
    %2085 = vmatpush.bf16.xpose.msra.mxu0 0
    %2086 = vmatpush.bf16.xpose.msra.mxu0 0
    %2087 = vmatpush.bf16.xpose.msra.mxu0 0
    %2088 = vmatpush.bf16.xpose.msra.mxu0 0
    %2089 = vmatpush.bf16.xpose.msra.mxu0 %v2081
    %2090 = vmatpush.bf16.xpose.msra.mxu0 %v2078
    %2091 = vmatmul.bf16.gmra.mxu0 %v2072
    %v2092 = vpop.f32.mrf.mxu0
    %v2093 = vadd.f32 0.0, %v2092
    %v2094 = vpop.f32.mrf.mxu0
    %v2095 = vadd.f32 0.0, %v2094
    %2096 = vmatmul.bf16.gmra.mxu0 %v2075
    %v2097 = vpop.f32.mrf.mxu0
    %v2098 = vadd.f32 0.0, %v2097
    %v2099 = vpop.f32.mrf.mxu0
    %2100 = vdwg.mxu0
    %v2104 = vunpack.c.l.b16 %v2056
    %v2105 = vunpack.c.l.b16 %v2057
    %v2106 = vunpack.c.l.b16 %v2058
    %v2107 = vpack.c.b16 %v2105, %v2104
    %v2108 = vpack.c.b16 %v2106, %v2106
    %2109 = vrot.lane.b32.xlu0 %v2107, 96
    %v2110 = vpop.permute.xlu0 %2109
    %2111 = vrot.lane.b32.xlu0 %v2108, 96
    %v2112 = vpop.permute.xlu0 %2111
    %v2114 = vsel %vm379, %v2107, 0
    %v2117 = vsel %vm379, %v2108, 0
    %v2120 = vsel %vm379, %v2110, 0
    %v2123 = vsel %vm379, %v2112, 0
    %2125 = vmatpush.bf16.xpose.msra.mxu0 0
    %2126 = vmatpush.bf16.xpose.msra.mxu0 0
    %2127 = vmatpush.bf16.xpose.msra.mxu0 0
    %2128 = vmatpush.bf16.xpose.msra.mxu0 0
    %2129 = vmatpush.bf16.xpose.msra.mxu0 0
    %2130 = vmatpush.bf16.xpose.msra.mxu0 0
    %2131 = vmatpush.bf16.xpose.msra.mxu0 %v2123
    %2132 = vmatpush.bf16.xpose.msra.mxu0 %v2120
    %2133 = vmatmul.bf16.gmra.mxu0 %v2114
    %v2134 = vpop.f32.mrf.mxu0
    %v2135 = vadd.f32 0.0, %v2134
    %v2136 = vpop.f32.mrf.mxu0
    %v2137 = vadd.f32 0.0, %v2136
    %2138 = vmatmul.bf16.gmra.mxu0 %v2117
    %v2139 = vpop.f32.mrf.mxu0
    %v2140 = vadd.f32 0.0, %v2139
    %v2141 = vpop.f32.mrf.mxu0
    %2142 = vdwg.mxu0
    %v2143 = vmul.f32 %v2093, 0.35355338
    %v2144 = vmul.f32 %v2095, 0.35355338
    %v2145 = vmul.f32 %v2098, 0.35355338
    %v2146 = vmul.f32 %v2135, 0.35355338
    %v2147 = vmul.f32 %v2137, 0.35355338
    %v2148 = vmul.f32 %v2140, 0.35355338
    %v2149 = vsel %vm459, %v2143, -1e+30
    %v2150 = vsel %vm459, %v2144, -1e+30
    %v2151 = vsel %vm459, %v2145, -1e+30
    %v2152 = vsel %vm459, %v2146, -1e+30
    %v2153 = vsel %vm459, %v2147, -1e+30
    %v2154 = vsel %vm459, %v2148, -1e+30
    %v2155 = vsel %vm466, %v2149, -inf
    %2156 = vmax.xlane.f32.xlu0 %v2155
    %v2157 = vpop.xlane.xlu0 %2156
    %v2158 = vsel %vm466, %v2150, -inf
    %2159 = vmax.xlane.f32.xlu0 %v2158
    %v2160 = vpop.xlane.xlu0 %2159
    %v2161 = vsel %vm466, %v2151, -inf
    %2162 = vmax.xlane.f32.xlu0 %v2161
    %v2163 = vpop.xlane.xlu0 %2162
    %v2164 = vsel %vm466, %v2152, -inf
    %2165 = vmax.xlane.f32.xlu0 %v2164
    %v2166 = vpop.xlane.xlu0 %2165
    %v2167 = vsel %vm466, %v2153, -inf
    %2168 = vmax.xlane.f32.xlu0 %v2167
    %v2169 = vpop.xlane.xlu0 %2168
    %v2170 = vsel %vm466, %v2154, -inf
    %2171 = vmax.xlane.f32.xlu0 %v2170
    %v2172 = vpop.xlane.xlu0 %2171
    %v2173 = vsub.f32 %v2149, %v2157
    %v2174 = vsub.f32 %v2150, %v2160
    %v2175 = vsub.f32 %v2151, %v2163
    %v2176 = vsub.f32 %v2152, %v2166
    %v2177 = vsub.f32 %v2153, %v2169
    %v2178 = vsub.f32 %v2154, %v2172
    %v2179 = vmul.f32 %v2173, 1.442695
    %v2180 = vpow.pop %v2179
    %v2181 = vmul.f32 %v2174, 1.442695
    %v2182 = vpow.pop %v2181
    %v2183 = vmul.f32 %v2175, 1.442695
    %v2184 = vpow.pop %v2183
    %v2185 = vmul.f32 %v2176, 1.442695
    %v2186 = vpow.pop %v2185
    %v2187 = vmul.f32 %v2177, 1.442695
    %v2188 = vpow.pop %v2187
    %v2189 = vmul.f32 %v2178, 1.442695
    %v2190 = vpow.pop %v2189
    %v2191 = vsel %vm466, %v2180, 0.0
    %2192 = vadd.xlane.f32.xlu0 %v2191
    %v2193 = vpop.xlane.xlu0 %2192
    %v2194 = vsel %vm466, %v2182, 0.0
    %2195 = vadd.xlane.f32.xlu0 %v2194
    %v2196 = vpop.xlane.xlu0 %2195
    %v2197 = vsel %vm466, %v2184, 0.0
    %2198 = vadd.xlane.f32.xlu0 %v2197
    %v2199 = vpop.xlane.xlu0 %2198
    %v2200 = vsel %vm466, %v2186, 0.0
    %2201 = vadd.xlane.f32.xlu0 %v2200
    %v2202 = vpop.xlane.xlu0 %2201
    %v2203 = vsel %vm466, %v2188, 0.0
    %2204 = vadd.xlane.f32.xlu0 %v2203
    %v2205 = vpop.xlane.xlu0 %2204
    %v2206 = vsel %vm466, %v2190, 0.0
    %2207 = vadd.xlane.f32.xlu0 %v2206
    %v2208 = vpop.xlane.xlu0 %2207
    %v2209 = vrcp.pop %v2193
    %v2210 = vrcp.pop %v2196
    %v2211 = vrcp.pop %v2199
    %v2212 = vrcp.pop %v2202
    %v2213 = vrcp.pop %v2205
    %v2214 = vrcp.pop %v2208
    %v2215 = vmul.f32 %v2180, %v2209
    %v2216 = vmul.f32 %v2182, %v2210
    %v2217 = vmul.f32 %v2184, %v2211
    %v2218 = vmul.f32 %v2186, %v2212
    %v2219 = vmul.f32 %v2188, %v2213
    %v2220 = vmul.f32 %v2190, %v2214
    %v2221 = vpack.c.bf16 %v2215, %v2215
    %v2222 = vpack.c.bf16 %v2216, %v2216
    %v2223 = vpack.c.bf16 %v2217, %v2217
    %v2224 = vpack.c.bf16 %v2218, %v2218
    %v2225 = vpack.c.bf16 %v2219, %v2219
    %v2226 = vpack.c.bf16 %v2220, %v2220
    %v2230 = vunpack.c.l.b16 %v2221
    %v2231 = vunpack.c.l.b16 %v2222
    %v2232 = vunpack.c.l.b16 %v2223
    %v2233 = vpack.c.b16 %v2231, %v2230
    %v2234 = vpack.c.b16 %v2232, %v2232
    %2235 = vrot.lane.b32.xlu0 %v2065, 64
    %v2236 = vpop.permute.xlu0 %2235
    %2237 = vrot.lane.b32.xlu0 %v2066, 64
    %v2238 = vpop.permute.xlu0 %2237
    %v2241 = vsel %vm466, %v2233, 0
    %v2244 = vsel %vm466, %v2234, 0
    %v2247 = vsel %vm558, %v2238, 0
    %2249 = vmatpush.bf16.msra.mxu0 0
    %2250 = vmatpush.bf16.msra.mxu0 0
    %2251 = vmatpush.bf16.msra.mxu0 0
    %2252 = vmatpush.bf16.msra.mxu0 0
    %2253 = vmatpush.bf16.msra.mxu0 0
    %2254 = vmatpush.bf16.msra.mxu0 0
    %2255 = vmatpush.bf16.msra.mxu0 %v2247
    %2256 = vmatpush.bf16.msra.mxu0 %v2236
    %2257 = vmatmul.bf16.gmra.mxu0 %v2241
    %v2258 = vpop.f32.mrf.mxu0
    %v2259 = vadd.f32 0.0, %v2258
    %v2260 = vpop.f32.mrf.mxu0
    %v2261 = vadd.f32 0.0, %v2260
    %2262 = vmatmul.bf16.gmra.mxu0 %v2244
    %v2263 = vpop.f32.mrf.mxu0
    %v2264 = vadd.f32 0.0, %v2263
    %v2265 = vpop.f32.mrf.mxu0
    %2266 = vdwg.mxu0
    %v2270 = vunpack.c.l.b16 %v2224
    %v2271 = vunpack.c.l.b16 %v2225
    %v2272 = vunpack.c.l.b16 %v2226
    %v2273 = vpack.c.b16 %v2271, %v2270
    %v2274 = vpack.c.b16 %v2272, %v2272
    %2275 = vrot.lane.b32.xlu0 %v2107, 64
    %v2276 = vpop.permute.xlu0 %2275
    %2277 = vrot.lane.b32.xlu0 %v2108, 64
    %v2278 = vpop.permute.xlu0 %2277
    %v2281 = vsel %vm466, %v2273, 0
    %v2284 = vsel %vm466, %v2274, 0
    %v2287 = vsel %vm558, %v2278, 0
    %2289 = vmatpush.bf16.msra.mxu0 0
    %2290 = vmatpush.bf16.msra.mxu0 0
    %2291 = vmatpush.bf16.msra.mxu0 0
    %2292 = vmatpush.bf16.msra.mxu0 0
    %2293 = vmatpush.bf16.msra.mxu0 0
    %2294 = vmatpush.bf16.msra.mxu0 0
    %2295 = vmatpush.bf16.msra.mxu0 %v2287
    %2296 = vmatpush.bf16.msra.mxu0 %v2276
    %2297 = vmatmul.bf16.gmra.mxu0 %v2281
    %v2298 = vpop.f32.mrf.mxu0
    %v2299 = vadd.f32 0.0, %v2298
    %v2300 = vpop.f32.mrf.mxu0
    %v2301 = vadd.f32 0.0, %v2300
    %2302 = vmatmul.bf16.gmra.mxu0 %v2284
    %v2303 = vpop.f32.mrf.mxu0
    %v2304 = vadd.f32 0.0, %v2303
    %v2305 = vpop.f32.mrf.mxu0
    %2306 = vdwg.mxu0
    %2307 = vrot.lane.b32.xlu0 %v2065, 120
    %v2308 = vpop.permute.xlu0 %2307
    %2309 = vrot.lane.b32.xlu0 %v2066, 120
    %v2310 = vpop.permute.xlu0 %2309
    %2311 = vrot.lane.b32.xlu0 %v2065, 88
    %v2312 = vpop.permute.xlu0 %2311
    %2313 = vrot.lane.b32.xlu0 %v2066, 88
    %v2314 = vpop.permute.xlu0 %2313
    %v2316 = vsel %vm379, %v2308, 0
    %v2319 = vsel %vm379, %v2310, 0
    %v2322 = vsel %vm379, %v2312, 0
    %v2325 = vsel %vm379, %v2314, 0
    %2327 = vmatpush.bf16.xpose.msra.mxu0 0
    %2328 = vmatpush.bf16.xpose.msra.mxu0 0
    %2329 = vmatpush.bf16.xpose.msra.mxu0 0
    %2330 = vmatpush.bf16.xpose.msra.mxu0 0
    %2331 = vmatpush.bf16.xpose.msra.mxu0 0
    %2332 = vmatpush.bf16.xpose.msra.mxu0 0
    %2333 = vmatpush.bf16.xpose.msra.mxu0 %v2325
    %2334 = vmatpush.bf16.xpose.msra.mxu0 %v2322
    %2335 = vmatmul.bf16.gmra.mxu0 %v2316
    %v2336 = vpop.f32.mrf.mxu0
    %v2337 = vadd.f32 0.0, %v2336
    %v2338 = vpop.f32.mrf.mxu0
    %v2339 = vadd.f32 0.0, %v2338
    %2340 = vmatmul.bf16.gmra.mxu0 %v2319
    %v2341 = vpop.f32.mrf.mxu0
    %v2342 = vadd.f32 0.0, %v2341
    %v2343 = vpop.f32.mrf.mxu0
    %2344 = vdwg.mxu0
    %2345 = vrot.lane.b32.xlu0 %v2107, 120
    %v2346 = vpop.permute.xlu0 %2345
    %2347 = vrot.lane.b32.xlu0 %v2108, 120
    %v2348 = vpop.permute.xlu0 %2347
    %2349 = vrot.lane.b32.xlu0 %v2107, 88
    %v2350 = vpop.permute.xlu0 %2349
    %2351 = vrot.lane.b32.xlu0 %v2108, 88
    %v2352 = vpop.permute.xlu0 %2351
    %v2354 = vsel %vm379, %v2346, 0
    %v2357 = vsel %vm379, %v2348, 0
    %v2360 = vsel %vm379, %v2350, 0
    %v2363 = vsel %vm379, %v2352, 0
    %2365 = vmatpush.bf16.xpose.msra.mxu0 0
    %2366 = vmatpush.bf16.xpose.msra.mxu0 0
    %2367 = vmatpush.bf16.xpose.msra.mxu0 0
    %2368 = vmatpush.bf16.xpose.msra.mxu0 0
    %2369 = vmatpush.bf16.xpose.msra.mxu0 0
    %2370 = vmatpush.bf16.xpose.msra.mxu0 0
    %2371 = vmatpush.bf16.xpose.msra.mxu0 %v2363
    %2372 = vmatpush.bf16.xpose.msra.mxu0 %v2360
    %2373 = vmatmul.bf16.gmra.mxu0 %v2354
    %v2374 = vpop.f32.mrf.mxu0
    %v2375 = vadd.f32 0.0, %v2374
    %v2376 = vpop.f32.mrf.mxu0
    %v2377 = vadd.f32 0.0, %v2376
    %2378 = vmatmul.bf16.gmra.mxu0 %v2357
    %v2379 = vpop.f32.mrf.mxu0
    %v2380 = vadd.f32 0.0, %v2379
    %v2381 = vpop.f32.mrf.mxu0
    %2382 = vdwg.mxu0
    %v2383 = vmul.f32 %v2337, 0.35355338
    %v2384 = vmul.f32 %v2339, 0.35355338
    %v2385 = vmul.f32 %v2342, 0.35355338
    %v2386 = vmul.f32 %v2375, 0.35355338
    %v2387 = vmul.f32 %v2377, 0.35355338
    %v2388 = vmul.f32 %v2380, 0.35355338
    %v2389 = vsel %vm459, %v2383, -1e+30
    %v2390 = vsel %vm459, %v2384, -1e+30
    %v2391 = vsel %vm459, %v2385, -1e+30
    %v2392 = vsel %vm459, %v2386, -1e+30
    %v2393 = vsel %vm459, %v2387, -1e+30
    %v2394 = vsel %vm459, %v2388, -1e+30
    %v2395 = vsel %vm466, %v2389, -inf
    %2396 = vmax.xlane.f32.xlu0 %v2395
    %v2397 = vpop.xlane.xlu0 %2396
    %v2398 = vsel %vm466, %v2390, -inf
    %2399 = vmax.xlane.f32.xlu0 %v2398
    %v2400 = vpop.xlane.xlu0 %2399
    %v2401 = vsel %vm466, %v2391, -inf
    %2402 = vmax.xlane.f32.xlu0 %v2401
    %v2403 = vpop.xlane.xlu0 %2402
    %v2404 = vsel %vm466, %v2392, -inf
    %2405 = vmax.xlane.f32.xlu0 %v2404
    %v2406 = vpop.xlane.xlu0 %2405
    %v2407 = vsel %vm466, %v2393, -inf
    %2408 = vmax.xlane.f32.xlu0 %v2407
    %v2409 = vpop.xlane.xlu0 %2408
    %v2410 = vsel %vm466, %v2394, -inf
    %2411 = vmax.xlane.f32.xlu0 %v2410
    %v2412 = vpop.xlane.xlu0 %2411
    %v2413 = vsub.f32 %v2389, %v2397
    %v2414 = vsub.f32 %v2390, %v2400
    %v2415 = vsub.f32 %v2391, %v2403
    %v2416 = vsub.f32 %v2392, %v2406
    %v2417 = vsub.f32 %v2393, %v2409
    %v2418 = vsub.f32 %v2394, %v2412
    %v2419 = vmul.f32 %v2413, 1.442695
    %v2420 = vpow.pop %v2419
    %v2421 = vmul.f32 %v2414, 1.442695
    %v2422 = vpow.pop %v2421
    %v2423 = vmul.f32 %v2415, 1.442695
    %v2424 = vpow.pop %v2423
    %v2425 = vmul.f32 %v2416, 1.442695
    %v2426 = vpow.pop %v2425
    %v2427 = vmul.f32 %v2417, 1.442695
    %v2428 = vpow.pop %v2427
    %v2429 = vmul.f32 %v2418, 1.442695
    %v2430 = vpow.pop %v2429
    %v2431 = vsel %vm466, %v2420, 0.0
    %2432 = vadd.xlane.f32.xlu0 %v2431
    %v2433 = vpop.xlane.xlu0 %2432
    %v2434 = vsel %vm466, %v2422, 0.0
    %2435 = vadd.xlane.f32.xlu0 %v2434
    %v2436 = vpop.xlane.xlu0 %2435
    %v2437 = vsel %vm466, %v2424, 0.0
    %2438 = vadd.xlane.f32.xlu0 %v2437
    %v2439 = vpop.xlane.xlu0 %2438
    %v2440 = vsel %vm466, %v2426, 0.0
    %2441 = vadd.xlane.f32.xlu0 %v2440
    %v2442 = vpop.xlane.xlu0 %2441
    %v2443 = vsel %vm466, %v2428, 0.0
    %2444 = vadd.xlane.f32.xlu0 %v2443
    %v2445 = vpop.xlane.xlu0 %2444
    %v2446 = vsel %vm466, %v2430, 0.0
    %2447 = vadd.xlane.f32.xlu0 %v2446
    %v2448 = vpop.xlane.xlu0 %2447
    %v2449 = vrcp.pop %v2433
    %v2450 = vrcp.pop %v2436
    %v2451 = vrcp.pop %v2439
    %v2452 = vrcp.pop %v2442
    %v2453 = vrcp.pop %v2445
    %v2454 = vrcp.pop %v2448
    %v2455 = vmul.f32 %v2420, %v2449
    %v2456 = vmul.f32 %v2422, %v2450
    %v2457 = vmul.f32 %v2424, %v2451
    %v2458 = vmul.f32 %v2426, %v2452
    %v2459 = vmul.f32 %v2428, %v2453
    %v2460 = vmul.f32 %v2430, %v2454
    %v2461 = vpack.c.bf16 %v2455, %v2455
    %v2462 = vpack.c.bf16 %v2456, %v2456
    %v2463 = vpack.c.bf16 %v2457, %v2457
    %v2464 = vpack.c.bf16 %v2458, %v2458
    %v2465 = vpack.c.bf16 %v2459, %v2459
    %v2466 = vpack.c.bf16 %v2460, %v2460
    %v2470 = vunpack.c.l.b16 %v2461
    %v2471 = vunpack.c.l.b16 %v2462
    %v2472 = vunpack.c.l.b16 %v2463
    %v2473 = vpack.c.b16 %v2471, %v2470
    %v2474 = vpack.c.b16 %v2472, %v2472
    %2475 = vrot.lane.b32.xlu0 %v2065, 56
    %v2476 = vpop.permute.xlu0 %2475
    %2477 = vrot.lane.b32.xlu0 %v2066, 56
    %v2478 = vpop.permute.xlu0 %2477
    %v2481 = vsel %vm466, %v2473, 0
    %v2484 = vsel %vm466, %v2474, 0
    %v2487 = vsel %vm558, %v2478, 0
    %2489 = vmatpush.bf16.msra.mxu0 0
    %2490 = vmatpush.bf16.msra.mxu0 0
    %2491 = vmatpush.bf16.msra.mxu0 0
    %2492 = vmatpush.bf16.msra.mxu0 0
    %2493 = vmatpush.bf16.msra.mxu0 0
    %2494 = vmatpush.bf16.msra.mxu0 0
    %2495 = vmatpush.bf16.msra.mxu0 %v2487
    %2496 = vmatpush.bf16.msra.mxu0 %v2476
    %2497 = vmatmul.bf16.gmra.mxu0 %v2481
    %v2498 = vpop.f32.mrf.mxu0
    %v2499 = vadd.f32 0.0, %v2498
    %v2500 = vpop.f32.mrf.mxu0
    %v2501 = vadd.f32 0.0, %v2500
    %2502 = vmatmul.bf16.gmra.mxu0 %v2484
    %v2503 = vpop.f32.mrf.mxu0
    %v2504 = vadd.f32 0.0, %v2503
    %v2505 = vpop.f32.mrf.mxu0
    %2506 = vdwg.mxu0
    %v2510 = vunpack.c.l.b16 %v2464
    %v2511 = vunpack.c.l.b16 %v2465
    %v2512 = vunpack.c.l.b16 %v2466
    %v2513 = vpack.c.b16 %v2511, %v2510
    %v2514 = vpack.c.b16 %v2512, %v2512
    %2515 = vrot.lane.b32.xlu0 %v2107, 56
    %v2516 = vpop.permute.xlu0 %2515
    %2517 = vrot.lane.b32.xlu0 %v2108, 56
    %v2518 = vpop.permute.xlu0 %2517
    %v2521 = vsel %vm466, %v2513, 0
    %v2524 = vsel %vm466, %v2514, 0
    %v2527 = vsel %vm558, %v2518, 0
    %2529 = vmatpush.bf16.msra.mxu0 0
    %2530 = vmatpush.bf16.msra.mxu0 0
    %2531 = vmatpush.bf16.msra.mxu0 0
    %2532 = vmatpush.bf16.msra.mxu0 0
    %2533 = vmatpush.bf16.msra.mxu0 0
    %2534 = vmatpush.bf16.msra.mxu0 0
    %2535 = vmatpush.bf16.msra.mxu0 %v2527
    %2536 = vmatpush.bf16.msra.mxu0 %v2516
    %2537 = vmatmul.bf16.gmra.mxu0 %v2521
    %v2538 = vpop.f32.mrf.mxu0
    %v2539 = vadd.f32 0.0, %v2538
    %v2540 = vpop.f32.mrf.mxu0
    %v2541 = vadd.f32 0.0, %v2540
    %2542 = vmatmul.bf16.gmra.mxu0 %v2524
    %v2543 = vpop.f32.mrf.mxu0
    %v2544 = vadd.f32 0.0, %v2543
    %v2545 = vpop.f32.mrf.mxu0
    %2546 = vdwg.mxu0
    %2547 = vrot.lane.b32.xlu0 %v2065, 112
    %v2548 = vpop.permute.xlu0 %2547
    %2549 = vrot.lane.b32.xlu0 %v2066, 112
    %v2550 = vpop.permute.xlu0 %2549
    %2551 = vrot.lane.b32.xlu0 %v2065, 80
    %v2552 = vpop.permute.xlu0 %2551
    %2553 = vrot.lane.b32.xlu0 %v2066, 80
    %v2554 = vpop.permute.xlu0 %2553
    %v2556 = vsel %vm379, %v2548, 0
    %v2559 = vsel %vm379, %v2550, 0
    %v2562 = vsel %vm379, %v2552, 0
    %v2565 = vsel %vm379, %v2554, 0
    %2567 = vmatpush.bf16.xpose.msra.mxu0 0
    %2568 = vmatpush.bf16.xpose.msra.mxu0 0
    %2569 = vmatpush.bf16.xpose.msra.mxu0 0
    %2570 = vmatpush.bf16.xpose.msra.mxu0 0
    %2571 = vmatpush.bf16.xpose.msra.mxu0 0
    %2572 = vmatpush.bf16.xpose.msra.mxu0 0
    %2573 = vmatpush.bf16.xpose.msra.mxu0 %v2565
    %2574 = vmatpush.bf16.xpose.msra.mxu0 %v2562
    %2575 = vmatmul.bf16.gmra.mxu0 %v2556
    %v2576 = vpop.f32.mrf.mxu0
    %v2577 = vadd.f32 0.0, %v2576
    %v2578 = vpop.f32.mrf.mxu0
    %v2579 = vadd.f32 0.0, %v2578
    %2580 = vmatmul.bf16.gmra.mxu0 %v2559
    %v2581 = vpop.f32.mrf.mxu0
    %v2582 = vadd.f32 0.0, %v2581
    %v2583 = vpop.f32.mrf.mxu0
    %2584 = vdwg.mxu0
    %2585 = vrot.lane.b32.xlu0 %v2107, 112
    %v2586 = vpop.permute.xlu0 %2585
    %2587 = vrot.lane.b32.xlu0 %v2108, 112
    %v2588 = vpop.permute.xlu0 %2587
    %2589 = vrot.lane.b32.xlu0 %v2107, 80
    %v2590 = vpop.permute.xlu0 %2589
    %2591 = vrot.lane.b32.xlu0 %v2108, 80
    %v2592 = vpop.permute.xlu0 %2591
    %v2594 = vsel %vm379, %v2586, 0
    %v2597 = vsel %vm379, %v2588, 0
    %v2600 = vsel %vm379, %v2590, 0
    %v2603 = vsel %vm379, %v2592, 0
    %2605 = vmatpush.bf16.xpose.msra.mxu0 0
    %2606 = vmatpush.bf16.xpose.msra.mxu0 0
    %2607 = vmatpush.bf16.xpose.msra.mxu0 0
    %2608 = vmatpush.bf16.xpose.msra.mxu0 0
    %2609 = vmatpush.bf16.xpose.msra.mxu0 0
    %2610 = vmatpush.bf16.xpose.msra.mxu0 0
    %2611 = vmatpush.bf16.xpose.msra.mxu0 %v2603
    %2612 = vmatpush.bf16.xpose.msra.mxu0 %v2600
    %2613 = vmatmul.bf16.gmra.mxu0 %v2594
    %v2614 = vpop.f32.mrf.mxu0
    %v2615 = vadd.f32 0.0, %v2614
    %v2616 = vpop.f32.mrf.mxu0
    %v2617 = vadd.f32 0.0, %v2616
    %2618 = vmatmul.bf16.gmra.mxu0 %v2597
    %v2619 = vpop.f32.mrf.mxu0
    %v2620 = vadd.f32 0.0, %v2619
    %v2621 = vpop.f32.mrf.mxu0
    %2622 = vdwg.mxu0
    %v2623 = vmul.f32 %v2577, 0.35355338
    %v2624 = vmul.f32 %v2579, 0.35355338
    %v2625 = vmul.f32 %v2582, 0.35355338
    %v2626 = vmul.f32 %v2615, 0.35355338
    %v2627 = vmul.f32 %v2617, 0.35355338
    %v2628 = vmul.f32 %v2620, 0.35355338
    %v2629 = vsel %vm459, %v2623, -1e+30
    %v2630 = vsel %vm459, %v2624, -1e+30
    %v2631 = vsel %vm459, %v2625, -1e+30
    %v2632 = vsel %vm459, %v2626, -1e+30
    %v2633 = vsel %vm459, %v2627, -1e+30
    %v2634 = vsel %vm459, %v2628, -1e+30
    %v2635 = vsel %vm466, %v2629, -inf
    %2636 = vmax.xlane.f32.xlu0 %v2635
    %v2637 = vpop.xlane.xlu0 %2636
    %v2638 = vsel %vm466, %v2630, -inf
    %2639 = vmax.xlane.f32.xlu0 %v2638
    %v2640 = vpop.xlane.xlu0 %2639
    %v2641 = vsel %vm466, %v2631, -inf
    %2642 = vmax.xlane.f32.xlu0 %v2641
    %v2643 = vpop.xlane.xlu0 %2642
    %v2644 = vsel %vm466, %v2632, -inf
    %2645 = vmax.xlane.f32.xlu0 %v2644
    %v2646 = vpop.xlane.xlu0 %2645
    %v2647 = vsel %vm466, %v2633, -inf
    %2648 = vmax.xlane.f32.xlu0 %v2647
    %v2649 = vpop.xlane.xlu0 %2648
    %v2650 = vsel %vm466, %v2634, -inf
    %2651 = vmax.xlane.f32.xlu0 %v2650
    %v2652 = vpop.xlane.xlu0 %2651
    %v2653 = vsub.f32 %v2629, %v2637
    %v2654 = vsub.f32 %v2630, %v2640
    %v2655 = vsub.f32 %v2631, %v2643
    %v2656 = vsub.f32 %v2632, %v2646
    %v2657 = vsub.f32 %v2633, %v2649
    %v2658 = vsub.f32 %v2634, %v2652
    %v2659 = vmul.f32 %v2653, 1.442695
    %v2660 = vpow.pop %v2659
    %v2661 = vmul.f32 %v2654, 1.442695
    %v2662 = vpow.pop %v2661
    %v2663 = vmul.f32 %v2655, 1.442695
    %v2664 = vpow.pop %v2663
    %v2665 = vmul.f32 %v2656, 1.442695
    %v2666 = vpow.pop %v2665
    %v2667 = vmul.f32 %v2657, 1.442695
    %v2668 = vpow.pop %v2667
    %v2669 = vmul.f32 %v2658, 1.442695
    %v2670 = vpow.pop %v2669
    %v2671 = vsel %vm466, %v2660, 0.0
    %2672 = vadd.xlane.f32.xlu0 %v2671
    %v2673 = vpop.xlane.xlu0 %2672
    %v2674 = vsel %vm466, %v2662, 0.0
    %2675 = vadd.xlane.f32.xlu0 %v2674
    %v2676 = vpop.xlane.xlu0 %2675
    %v2677 = vsel %vm466, %v2664, 0.0
    %2678 = vadd.xlane.f32.xlu0 %v2677
    %v2679 = vpop.xlane.xlu0 %2678
    %v2680 = vsel %vm466, %v2666, 0.0
    %2681 = vadd.xlane.f32.xlu0 %v2680
    %v2682 = vpop.xlane.xlu0 %2681
    %v2683 = vsel %vm466, %v2668, 0.0
    %2684 = vadd.xlane.f32.xlu0 %v2683
    %v2685 = vpop.xlane.xlu0 %2684
    %v2686 = vsel %vm466, %v2670, 0.0
    %2687 = vadd.xlane.f32.xlu0 %v2686
    %v2688 = vpop.xlane.xlu0 %2687
    %v2689 = vrcp.pop %v2673
    %v2690 = vrcp.pop %v2676
    %v2691 = vrcp.pop %v2679
    %v2692 = vrcp.pop %v2682
    %v2693 = vrcp.pop %v2685
    %v2694 = vrcp.pop %v2688
    %v2695 = vmul.f32 %v2660, %v2689
    %v2696 = vmul.f32 %v2662, %v2690
    %v2697 = vmul.f32 %v2664, %v2691
    %v2698 = vmul.f32 %v2666, %v2692
    %v2699 = vmul.f32 %v2668, %v2693
    %v2700 = vmul.f32 %v2670, %v2694
    %v2701 = vpack.c.bf16 %v2695, %v2695
    %v2702 = vpack.c.bf16 %v2696, %v2696
    %v2703 = vpack.c.bf16 %v2697, %v2697
    %v2704 = vpack.c.bf16 %v2698, %v2698
    %v2705 = vpack.c.bf16 %v2699, %v2699
    %v2706 = vpack.c.bf16 %v2700, %v2700
    %v2710 = vunpack.c.l.b16 %v2701
    %v2711 = vunpack.c.l.b16 %v2702
    %v2712 = vunpack.c.l.b16 %v2703
    %v2713 = vpack.c.b16 %v2711, %v2710
    %v2714 = vpack.c.b16 %v2712, %v2712
    %2715 = vrot.lane.b32.xlu0 %v2065, 48
    %v2716 = vpop.permute.xlu0 %2715
    %2717 = vrot.lane.b32.xlu0 %v2066, 48
    %v2718 = vpop.permute.xlu0 %2717
    %v2721 = vsel %vm466, %v2713, 0
    %v2724 = vsel %vm466, %v2714, 0
    %v2727 = vsel %vm558, %v2718, 0
    %2729 = vmatpush.bf16.msra.mxu0 0
    %2730 = vmatpush.bf16.msra.mxu0 0
    %2731 = vmatpush.bf16.msra.mxu0 0
    %2732 = vmatpush.bf16.msra.mxu0 0
    %2733 = vmatpush.bf16.msra.mxu0 0
    %2734 = vmatpush.bf16.msra.mxu0 0
    %2735 = vmatpush.bf16.msra.mxu0 %v2727
    %2736 = vmatpush.bf16.msra.mxu0 %v2716
    %2737 = vmatmul.bf16.gmra.mxu0 %v2721
    %v2738 = vpop.f32.mrf.mxu0
    %v2739 = vadd.f32 0.0, %v2738
    %v2740 = vpop.f32.mrf.mxu0
    %v2741 = vadd.f32 0.0, %v2740
    %2742 = vmatmul.bf16.gmra.mxu0 %v2724
    %v2743 = vpop.f32.mrf.mxu0
    %v2744 = vadd.f32 0.0, %v2743
    %v2745 = vpop.f32.mrf.mxu0
    %2746 = vdwg.mxu0
    %v2750 = vunpack.c.l.b16 %v2704
    %v2751 = vunpack.c.l.b16 %v2705
    %v2752 = vunpack.c.l.b16 %v2706
    %v2753 = vpack.c.b16 %v2751, %v2750
    %v2754 = vpack.c.b16 %v2752, %v2752
    %2755 = vrot.lane.b32.xlu0 %v2107, 48
    %v2756 = vpop.permute.xlu0 %2755
    %2757 = vrot.lane.b32.xlu0 %v2108, 48
    %v2758 = vpop.permute.xlu0 %2757
    %v2761 = vsel %vm466, %v2753, 0
    %v2764 = vsel %vm466, %v2754, 0
    %v2767 = vsel %vm558, %v2758, 0
    %2769 = vmatpush.bf16.msra.mxu0 0
    %2770 = vmatpush.bf16.msra.mxu0 0
    %2771 = vmatpush.bf16.msra.mxu0 0
    %2772 = vmatpush.bf16.msra.mxu0 0
    %2773 = vmatpush.bf16.msra.mxu0 0
    %2774 = vmatpush.bf16.msra.mxu0 0
    %2775 = vmatpush.bf16.msra.mxu0 %v2767
    %2776 = vmatpush.bf16.msra.mxu0 %v2756
    %2777 = vmatmul.bf16.gmra.mxu0 %v2761
    %v2778 = vpop.f32.mrf.mxu0
    %v2779 = vadd.f32 0.0, %v2778
    %v2780 = vpop.f32.mrf.mxu0
    %v2781 = vadd.f32 0.0, %v2780
    %2782 = vmatmul.bf16.gmra.mxu0 %v2764
    %v2783 = vpop.f32.mrf.mxu0
    %v2784 = vadd.f32 0.0, %v2783
    %v2785 = vpop.f32.mrf.mxu0
    %2786 = vdwg.mxu0
    %2787 = vrot.lane.b32.xlu0 %v2065, 104
    %v2788 = vpop.permute.xlu0 %2787
    %2789 = vrot.lane.b32.xlu0 %v2066, 104
    %v2790 = vpop.permute.xlu0 %2789
    %2791 = vrot.lane.b32.xlu0 %v2065, 72
    %v2792 = vpop.permute.xlu0 %2791
    %2793 = vrot.lane.b32.xlu0 %v2066, 72
    %v2794 = vpop.permute.xlu0 %2793
    %v2796 = vsel %vm379, %v2788, 0
    %v2799 = vsel %vm379, %v2790, 0
    %v2802 = vsel %vm379, %v2792, 0
    %v2805 = vsel %vm379, %v2794, 0
    %2807 = vmatpush.bf16.xpose.msra.mxu0 0
    %2808 = vmatpush.bf16.xpose.msra.mxu0 0
    %2809 = vmatpush.bf16.xpose.msra.mxu0 0
    %2810 = vmatpush.bf16.xpose.msra.mxu0 0
    %2811 = vmatpush.bf16.xpose.msra.mxu0 0
    %2812 = vmatpush.bf16.xpose.msra.mxu0 0
    %2813 = vmatpush.bf16.xpose.msra.mxu0 %v2805
    %2814 = vmatpush.bf16.xpose.msra.mxu0 %v2802
    %2815 = vmatmul.bf16.gmra.mxu0 %v2796
    %v2816 = vpop.f32.mrf.mxu0
    %v2817 = vadd.f32 0.0, %v2816
    %v2818 = vpop.f32.mrf.mxu0
    %v2819 = vadd.f32 0.0, %v2818
    %2820 = vmatmul.bf16.gmra.mxu0 %v2799
    %v2821 = vpop.f32.mrf.mxu0
    %v2822 = vadd.f32 0.0, %v2821
    %v2823 = vpop.f32.mrf.mxu0
    %2824 = vdwg.mxu0
    %2825 = vrot.lane.b32.xlu0 %v2107, 104
    %v2826 = vpop.permute.xlu0 %2825
    %2827 = vrot.lane.b32.xlu0 %v2108, 104
    %v2828 = vpop.permute.xlu0 %2827
    %2829 = vrot.lane.b32.xlu0 %v2107, 72
    %v2830 = vpop.permute.xlu0 %2829
    %2831 = vrot.lane.b32.xlu0 %v2108, 72
    %v2832 = vpop.permute.xlu0 %2831
    %v2834 = vsel %vm379, %v2826, 0
    %v2837 = vsel %vm379, %v2828, 0
    %v2840 = vsel %vm379, %v2830, 0
    %v2843 = vsel %vm379, %v2832, 0
    %2845 = vmatpush.bf16.xpose.msra.mxu0 0
    %2846 = vmatpush.bf16.xpose.msra.mxu0 0
    %2847 = vmatpush.bf16.xpose.msra.mxu0 0
    %2848 = vmatpush.bf16.xpose.msra.mxu0 0
    %2849 = vmatpush.bf16.xpose.msra.mxu0 0
    %2850 = vmatpush.bf16.xpose.msra.mxu0 0
    %2851 = vmatpush.bf16.xpose.msra.mxu0 %v2843
    %2852 = vmatpush.bf16.xpose.msra.mxu0 %v2840
    %2853 = vmatmul.bf16.gmra.mxu0 %v2834
    %v2854 = vpop.f32.mrf.mxu0
    %v2855 = vadd.f32 0.0, %v2854
    %v2856 = vpop.f32.mrf.mxu0
    %v2857 = vadd.f32 0.0, %v2856
    %2858 = vmatmul.bf16.gmra.mxu0 %v2837
    %v2859 = vpop.f32.mrf.mxu0
    %v2860 = vadd.f32 0.0, %v2859
    %v2861 = vpop.f32.mrf.mxu0
    %2862 = vdwg.mxu0
    %v2863 = vmul.f32 %v2817, 0.35355338
    %v2864 = vmul.f32 %v2819, 0.35355338
    %v2865 = vmul.f32 %v2822, 0.35355338
    %v2866 = vmul.f32 %v2855, 0.35355338
    %v2867 = vmul.f32 %v2857, 0.35355338
    %v2868 = vmul.f32 %v2860, 0.35355338
    %v2869 = vsel %vm459, %v2863, -1e+30
    %v2870 = vsel %vm459, %v2864, -1e+30
    %v2871 = vsel %vm459, %v2865, -1e+30
    %v2872 = vsel %vm459, %v2866, -1e+30
    %v2873 = vsel %vm459, %v2867, -1e+30
    %v2874 = vsel %vm459, %v2868, -1e+30
    %v2875 = vsel %vm466, %v2869, -inf
    %2876 = vmax.xlane.f32.xlu0 %v2875
    %v2877 = vpop.xlane.xlu0 %2876
    %v2878 = vsel %vm466, %v2870, -inf
    %2879 = vmax.xlane.f32.xlu0 %v2878
    %v2880 = vpop.xlane.xlu0 %2879
    %v2881 = vsel %vm466, %v2871, -inf
    %2882 = vmax.xlane.f32.xlu0 %v2881
    %v2883 = vpop.xlane.xlu0 %2882
    %v2884 = vsel %vm466, %v2872, -inf
    %2885 = vmax.xlane.f32.xlu0 %v2884
    %v2886 = vpop.xlane.xlu0 %2885
    %v2887 = vsel %vm466, %v2873, -inf
    %2888 = vmax.xlane.f32.xlu0 %v2887
    %v2889 = vpop.xlane.xlu0 %2888
    %v2890 = vsel %vm466, %v2874, -inf
    %2891 = vmax.xlane.f32.xlu0 %v2890
    %v2892 = vpop.xlane.xlu0 %2891
    %v2893 = vsub.f32 %v2869, %v2877
    %v2894 = vsub.f32 %v2870, %v2880
    %v2895 = vsub.f32 %v2871, %v2883
    %v2896 = vsub.f32 %v2872, %v2886
    %v2897 = vsub.f32 %v2873, %v2889
    %v2898 = vsub.f32 %v2874, %v2892
    %v2899 = vmul.f32 %v2893, 1.442695
    %v2900 = vpow.pop %v2899
    %v2901 = vmul.f32 %v2894, 1.442695
    %v2902 = vpow.pop %v2901
    %v2903 = vmul.f32 %v2895, 1.442695
    %v2904 = vpow.pop %v2903
    %v2905 = vmul.f32 %v2896, 1.442695
    %v2906 = vpow.pop %v2905
    %v2907 = vmul.f32 %v2897, 1.442695
    %v2908 = vpow.pop %v2907
    %v2909 = vmul.f32 %v2898, 1.442695
    %v2910 = vpow.pop %v2909
    %v2911 = vsel %vm466, %v2900, 0.0
    %2912 = vadd.xlane.f32.xlu0 %v2911
    %v2913 = vpop.xlane.xlu0 %2912
    %v2914 = vsel %vm466, %v2902, 0.0
    %2915 = vadd.xlane.f32.xlu0 %v2914
    %v2916 = vpop.xlane.xlu0 %2915
    %v2917 = vsel %vm466, %v2904, 0.0
    %2918 = vadd.xlane.f32.xlu0 %v2917
    %v2919 = vpop.xlane.xlu0 %2918
    %v2920 = vsel %vm466, %v2906, 0.0
    %2921 = vadd.xlane.f32.xlu0 %v2920
    %v2922 = vpop.xlane.xlu0 %2921
    %v2923 = vsel %vm466, %v2908, 0.0
    %2924 = vadd.xlane.f32.xlu0 %v2923
    %v2925 = vpop.xlane.xlu0 %2924
    %v2926 = vsel %vm466, %v2910, 0.0
    %2927 = vadd.xlane.f32.xlu0 %v2926
    %v2928 = vpop.xlane.xlu0 %2927
    %v2929 = vrcp.pop %v2913
    %v2930 = vrcp.pop %v2916
    %v2931 = vrcp.pop %v2919
    %v2932 = vrcp.pop %v2922
    %v2933 = vrcp.pop %v2925
    %v2934 = vrcp.pop %v2928
    %v2935 = vmul.f32 %v2900, %v2929
    %v2936 = vmul.f32 %v2902, %v2930
    %v2937 = vmul.f32 %v2904, %v2931
    %v2938 = vmul.f32 %v2906, %v2932
    %v2939 = vmul.f32 %v2908, %v2933
    %v2940 = vmul.f32 %v2910, %v2934
    %v2941 = vpack.c.bf16 %v2935, %v2935
    %v2942 = vpack.c.bf16 %v2936, %v2936
    %v2943 = vpack.c.bf16 %v2937, %v2937
    %v2944 = vpack.c.bf16 %v2938, %v2938
    %v2945 = vpack.c.bf16 %v2939, %v2939
    %v2946 = vpack.c.bf16 %v2940, %v2940
    %v2950 = vunpack.c.l.b16 %v2941
    %v2951 = vunpack.c.l.b16 %v2942
    %v2952 = vunpack.c.l.b16 %v2943
    %v2953 = vpack.c.b16 %v2951, %v2950
    %v2954 = vpack.c.b16 %v2952, %v2952
    %2955 = vrot.lane.b32.xlu0 %v2065, 40
    %v2956 = vpop.permute.xlu0 %2955
    %2957 = vrot.lane.b32.xlu0 %v2066, 40
    %v2958 = vpop.permute.xlu0 %2957
    %v2961 = vsel %vm466, %v2953, 0
    %v2964 = vsel %vm466, %v2954, 0
    %v2967 = vsel %vm558, %v2958, 0
    %2969 = vmatpush.bf16.msra.mxu0 0
    %2970 = vmatpush.bf16.msra.mxu0 0
    %2971 = vmatpush.bf16.msra.mxu0 0
    %2972 = vmatpush.bf16.msra.mxu0 0
    %2973 = vmatpush.bf16.msra.mxu0 0
    %2974 = vmatpush.bf16.msra.mxu0 0
    %2975 = vmatpush.bf16.msra.mxu0 %v2967
    %2976 = vmatpush.bf16.msra.mxu0 %v2956
    %2977 = vmatmul.bf16.gmra.mxu0 %v2961
    %v2978 = vpop.f32.mrf.mxu0
    %v2979 = vadd.f32 0.0, %v2978
    %v2980 = vpop.f32.mrf.mxu0
    %v2981 = vadd.f32 0.0, %v2980
    %2982 = vmatmul.bf16.gmra.mxu0 %v2964
    %v2983 = vpop.f32.mrf.mxu0
    %v2984 = vadd.f32 0.0, %v2983
    %v2985 = vpop.f32.mrf.mxu0
    %2986 = vdwg.mxu0
    %v2990 = vunpack.c.l.b16 %v2944
    %v2991 = vunpack.c.l.b16 %v2945
    %v2992 = vunpack.c.l.b16 %v2946
    %v2993 = vpack.c.b16 %v2991, %v2990
    %v2994 = vpack.c.b16 %v2992, %v2992
    %2995 = vrot.lane.b32.xlu0 %v2107, 40
    %v2996 = vpop.permute.xlu0 %2995
    %2997 = vrot.lane.b32.xlu0 %v2108, 40
    %v2998 = vpop.permute.xlu0 %2997
    %v3001 = vsel %vm466, %v2993, 0
    %v3004 = vsel %vm466, %v2994, 0
    %v3007 = vsel %vm558, %v2998, 0
    %3009 = vmatpush.bf16.msra.mxu0 0
    %3010 = vmatpush.bf16.msra.mxu0 0
    %3011 = vmatpush.bf16.msra.mxu0 0
    %3012 = vmatpush.bf16.msra.mxu0 0
    %3013 = vmatpush.bf16.msra.mxu0 0
    %3014 = vmatpush.bf16.msra.mxu0 0
    %3015 = vmatpush.bf16.msra.mxu0 %v3007
    %3016 = vmatpush.bf16.msra.mxu0 %v2996
    %3017 = vmatmul.bf16.gmra.mxu0 %v3001
    %v3018 = vpop.f32.mrf.mxu0
    %v3019 = vadd.f32 0.0, %v3018
    %v3020 = vpop.f32.mrf.mxu0
    %v3021 = vadd.f32 0.0, %v3020
    %3022 = vmatmul.bf16.gmra.mxu0 %v3004
    %v3023 = vpop.f32.mrf.mxu0
    %v3024 = vadd.f32 0.0, %v3023
    %v3025 = vpop.f32.mrf.mxu0
    %3026 = vdwg.mxu0
    %3033 = vrot.lane.b32.xlu0 %v2499, 8
    %v3034 = vpop.permute.xlu0 %3033
    %3035 = vrot.lane.b32.xlu0 %v2501, 8
    %v3036 = vpop.permute.xlu0 %3035
    %3037 = vrot.lane.b32.xlu0 %v2504, 8
    %v3038 = vpop.permute.xlu0 %3037
    %3039 = vrot.lane.b32.xlu0 %v2539, 8
    %v3040 = vpop.permute.xlu0 %3039
    %3041 = vrot.lane.b32.xlu0 %v2541, 8
    %v3042 = vpop.permute.xlu0 %3041
    %3043 = vrot.lane.b32.xlu0 %v2544, 8
    %v3044 = vpop.permute.xlu0 %3043
    %3057 = vrot.lane.b32.xlu0 %v2739, 16
    %v3058 = vpop.permute.xlu0 %3057
    %3059 = vrot.lane.b32.xlu0 %v2741, 16
    %v3060 = vpop.permute.xlu0 %3059
    %3061 = vrot.lane.b32.xlu0 %v2744, 16
    %v3062 = vpop.permute.xlu0 %3061
    %3063 = vrot.lane.b32.xlu0 %v2779, 16
    %v3064 = vpop.permute.xlu0 %3063
    %3065 = vrot.lane.b32.xlu0 %v2781, 16
    %v3066 = vpop.permute.xlu0 %3065
    %3067 = vrot.lane.b32.xlu0 %v2784, 16
    %v3068 = vpop.permute.xlu0 %3067
    %3081 = vrot.lane.b32.xlu0 %v2979, 24
    %v3082 = vpop.permute.xlu0 %3081
    %3083 = vrot.lane.b32.xlu0 %v2981, 24
    %v3084 = vpop.permute.xlu0 %3083
    %3085 = vrot.lane.b32.xlu0 %v2984, 24
    %v3086 = vpop.permute.xlu0 %3085
    %3087 = vrot.lane.b32.xlu0 %v3019, 24
    %v3088 = vpop.permute.xlu0 %3087
    %3089 = vrot.lane.b32.xlu0 %v3021, 24
    %v3090 = vpop.permute.xlu0 %3089
    %3091 = vrot.lane.b32.xlu0 %v3024, 24
    %v3092 = vpop.permute.xlu0 %3091
    %v3099 = vsel %vm379, %v2259, %v3034
    %v3100 = vsel %vm379, %v2261, %v3036
    %v3101 = vsel %vm379, %v2264, %v3038
    %v3102 = vsel %vm379, %v2299, %v3040
    %v3103 = vsel %vm379, %v2301, %v3042
    %v3104 = vsel %vm379, %v2304, %v3044
    %v3105 = vsel %vm1418, %v3099, %v3058
    %v3106 = vsel %vm1418, %v3100, %v3060
    %v3107 = vsel %vm1418, %v3101, %v3062
    %v3108 = vsel %vm1418, %v3102, %v3064
    %v3109 = vsel %vm1418, %v3103, %v3066
    %v3110 = vsel %vm1418, %v3104, %v3068
    %v3111 = vsel %vm466, %v3105, %v3082
    %v3112 = vsel %vm466, %v3106, %v3084
    %v3113 = vsel %vm466, %v3107, %v3086
    %v3114 = vsel %vm466, %v3108, %v3088
    %v3115 = vsel %vm466, %v3109, %v3090
    %v3116 = vsel %vm466, %v3110, %v3092
    %s3117 = scalar_lea.vmem %s6, 16
    %v3118 = vld [vmem:[%s3117] sm:$0xf]
    %v3119 = vld [vmem:[%s3117 + $0x4] sm:$0xf]
    %v3120 = vld [vmem:[%s3117 + $0x8] sm:$0xf]
    %v3121 = vld [vmem:[%s3117 + $0xc] sm:$0xf]
    %v3122 = vpack.c.bf16 %v3112, %v3111
    %v3123 = vpack.c.bf16 %v3114, %v3113
    %v3124 = vpack.c.bf16 %v3116, %v3115
    %v3129 = vunpack.c.l.b16 %v3118
    %v3130 = vunpack.c.l.b16 %v3119
    %v3131 = vunpack.c.l.b16 %v3120
    %v3132 = vunpack.c.l.b16 %v3121
    %v3133 = vpack.c.b16 %v3130, %v3129
    %v3134 = vpack.c.b16 %v3132, %v3131
    %v3138 = vsel %vm151, %v3122, 0
    %v3141 = vsel %vm151, %v3123, 0
    %v3144 = vsel %vm151, %v3124, 0
    %3146 = vmatpush.bf16.msra.mxu0 0
    %3147 = vmatpush.bf16.msra.mxu0 0
    %3148 = vmatpush.bf16.msra.mxu0 0
    %3149 = vmatpush.bf16.msra.mxu0 0
    %3150 = vmatpush.bf16.msra.mxu0 0
    %3151 = vmatpush.bf16.msra.mxu0 0
    %3152 = vmatpush.bf16.msra.mxu0 %v3134
    %3153 = vmatpush.bf16.msra.mxu0 %v3133
    %3154 = vmatmul.bf16.gmra.mxu0 %v3138
    %v3155 = vpop.f32.mrf.mxu0
    %v3156 = vadd.f32 0.0, %v3155
    %v3157 = vpop.f32.mrf.mxu0
    %v3158 = vadd.f32 0.0, %v3157
    %3159 = vmatmul.bf16.gmra.mxu0 %v3141
    %v3160 = vpop.f32.mrf.mxu0
    %v3161 = vadd.f32 0.0, %v3160
    %v3162 = vpop.f32.mrf.mxu0
    %v3163 = vadd.f32 0.0, %v3162
    %3164 = vmatmul.bf16.gmra.mxu0 %v3144
    %v3165 = vpop.f32.mrf.mxu0
    %v3166 = vadd.f32 0.0, %v3165
    %v3167 = vpop.f32.mrf.mxu0
    %v3168 = vadd.f32 0.0, %v3167
    %3169 = vdwg.mxu0
    %v3170 = vadd.f32 %v1840, %v3156
    %v3171 = vadd.f32 %v1841, %v3158
    %v3172 = vadd.f32 %v1842, %v3161
    %v3173 = vadd.f32 %v1843, %v3163
    %v3174 = vadd.f32 %v1844, %v3166
    %v3175 = vadd.f32 %v1845, %v3168
    %s3176 = scalar_lea.vmem %s7, 1
    %v3177 = vld [vmem:[%s3176] sm:$0x1]
    %v3179 = vperm.slane %v3177, 0
    %v3181 = vadd.f32 %v3170, %v3179
    %v3182 = vadd.f32 %v3171, %v3179
    %v3183 = vadd.f32 %v3172, %v3179
    %v3184 = vadd.f32 %v3173, %v3179
    %v3185 = vadd.f32 %v3174, %v3179
    %v3186 = vadd.f32 %v3175, %v3179
    %s3187 = scalar_lea.vmem %s8, 1
    %v3188 = vld [vmem:[%s3187] sm:$0x1]
    %s3189 = scalar_lea.vmem %s9, 1
    %v3190 = vld [vmem:[%s3189] sm:$0x1]
    %v3191 = vsel %vm151, %v3181, 0.0
    %3192 = vadd.xlane.f32.xlu0 %v3191
    %v3193 = vpop.xlane.xlu0 %3192
    %v3194 = vsel %vm151, %v3182, 0.0
    %3195 = vadd.xlane.f32.xlu0 %v3194
    %v3196 = vpop.xlane.xlu0 %3195
    %v3197 = vsel %vm151, %v3183, 0.0
    %3198 = vadd.xlane.f32.xlu0 %v3197
    %v3199 = vpop.xlane.xlu0 %3198
    %v3200 = vsel %vm151, %v3184, 0.0
    %3201 = vadd.xlane.f32.xlu0 %v3200
    %v3202 = vpop.xlane.xlu0 %3201
    %v3203 = vsel %vm151, %v3185, 0.0
    %3204 = vadd.xlane.f32.xlu0 %v3203
    %v3205 = vpop.xlane.xlu0 %3204
    %v3206 = vsel %vm151, %v3186, 0.0
    %3207 = vadd.xlane.f32.xlu0 %v3206
    %v3208 = vpop.xlane.xlu0 %3207
    %v3209 = vmul.f32 %v3193, %v176
    %v3210 = vmul.f32 %v3196, %v176
    %v3211 = vmul.f32 %v3199, %v176
    %v3212 = vmul.f32 %v3202, %v176
    %v3213 = vmul.f32 %v3205, %v176
    %v3214 = vmul.f32 %v3208, %v176
    %v3215 = vsub.f32 %v3181, %v3209
    %v3216 = vsub.f32 %v3182, %v3210
    %v3217 = vsub.f32 %v3183, %v3211
    %v3218 = vsub.f32 %v3184, %v3212
    %v3219 = vsub.f32 %v3185, %v3213
    %v3220 = vsub.f32 %v3186, %v3214
    %v3221 = vmul.f32 %v3215, %v3215
    %v3222 = vmul.f32 %v3216, %v3216
    %v3223 = vmul.f32 %v3217, %v3217
    %v3224 = vmul.f32 %v3218, %v3218
    %v3225 = vmul.f32 %v3219, %v3219
    %v3226 = vmul.f32 %v3220, %v3220
    %v3227 = vsel %vm151, %v3221, 0.0
    %3228 = vadd.xlane.f32.xlu0 %v3227
    %v3229 = vpop.xlane.xlu0 %3228
    %v3230 = vsel %vm151, %v3222, 0.0
    %3231 = vadd.xlane.f32.xlu0 %v3230
    %v3232 = vpop.xlane.xlu0 %3231
    %v3233 = vsel %vm151, %v3223, 0.0
    %3234 = vadd.xlane.f32.xlu0 %v3233
    %v3235 = vpop.xlane.xlu0 %3234
    %v3236 = vsel %vm151, %v3224, 0.0
    %3237 = vadd.xlane.f32.xlu0 %v3236
    %v3238 = vpop.xlane.xlu0 %3237
    %v3239 = vsel %vm151, %v3225, 0.0
    %3240 = vadd.xlane.f32.xlu0 %v3239
    %v3241 = vpop.xlane.xlu0 %3240
    %v3242 = vsel %vm151, %v3226, 0.0
    %3243 = vadd.xlane.f32.xlu0 %v3242
    %v3244 = vpop.xlane.xlu0 %3243
    %v3245 = vmul.f32 %v3229, %v176
    %v3246 = vmul.f32 %v3232, %v176
    %v3247 = vmul.f32 %v3235, %v176
    %v3248 = vmul.f32 %v3238, %v176
    %v3249 = vmul.f32 %v3241, %v176
    %v3250 = vmul.f32 %v3244, %v176
    %v3251 = vadd.f32 %v3245, 1e-05
    %v3252 = vadd.f32 %v3246, 1e-05
    %v3253 = vadd.f32 %v3247, 1e-05
    %v3254 = vadd.f32 %v3248, 1e-05
    %v3255 = vadd.f32 %v3249, 1e-05
    %v3256 = vadd.f32 %v3250, 1e-05
    %v3257 = vrsqrt.pop %v3251
    %v3258 = vmul.f32 %v3257, %v3251
    %v3259 = vmul.f32 %v3258, %v3257
    %v3260 = vmul.f32 0.5, %v3259
    %v3261 = vsub.f32 1.5, %v3260
    %v3262 = vmul.f32 %v3257, %v3261
    %vm3263 = vweird.f32 %v3251
    %vm3264 = vweird.f32 %v3257
    %vm3265 = vmor %vm3263, %vm3264
    %v3266 = vsel %vm3265, %v3257, %v3262
    %v3267 = vrsqrt.pop %v3252
    %v3268 = vmul.f32 %v3267, %v3252
    %v3269 = vmul.f32 %v3268, %v3267
    %v3270 = vmul.f32 0.5, %v3269
    %v3271 = vsub.f32 1.5, %v3270
    %v3272 = vmul.f32 %v3267, %v3271
    %vm3273 = vweird.f32 %v3252
    %vm3274 = vweird.f32 %v3267
    %vm3275 = vmor %vm3273, %vm3274
    %v3276 = vsel %vm3275, %v3267, %v3272
    %v3277 = vrsqrt.pop %v3253
    %v3278 = vmul.f32 %v3277, %v3253
    %v3279 = vmul.f32 %v3278, %v3277
    %v3280 = vmul.f32 0.5, %v3279
    %v3281 = vsub.f32 1.5, %v3280
    %v3282 = vmul.f32 %v3277, %v3281
    %vm3283 = vweird.f32 %v3253
    %vm3284 = vweird.f32 %v3277
    %vm3285 = vmor %vm3283, %vm3284
    %v3286 = vsel %vm3285, %v3277, %v3282
    %v3287 = vrsqrt.pop %v3254
    %v3288 = vmul.f32 %v3287, %v3254
    %v3289 = vmul.f32 %v3288, %v3287
    %v3290 = vmul.f32 0.5, %v3289
    %v3291 = vsub.f32 1.5, %v3290
    %v3292 = vmul.f32 %v3287, %v3291
    %vm3293 = vweird.f32 %v3254
    %vm3294 = vweird.f32 %v3287
    %vm3295 = vmor %vm3293, %vm3294
    %v3296 = vsel %vm3295, %v3287, %v3292
    %v3297 = vrsqrt.pop %v3255
    %v3298 = vmul.f32 %v3297, %v3255
    %v3299 = vmul.f32 %v3298, %v3297
    %v3300 = vmul.f32 0.5, %v3299
    %v3301 = vsub.f32 1.5, %v3300
    %v3302 = vmul.f32 %v3297, %v3301
    %vm3303 = vweird.f32 %v3255
    %vm3304 = vweird.f32 %v3297
    %vm3305 = vmor %vm3303, %vm3304
    %v3306 = vsel %vm3305, %v3297, %v3302
    %v3307 = vrsqrt.pop %v3256
    %v3308 = vmul.f32 %v3307, %v3256
    %v3309 = vmul.f32 %v3308, %v3307
    %v3310 = vmul.f32 0.5, %v3309
    %v3311 = vsub.f32 1.5, %v3310
    %v3312 = vmul.f32 %v3307, %v3311
    %vm3313 = vweird.f32 %v3256
    %vm3314 = vweird.f32 %v3307
    %vm3315 = vmor %vm3313, %vm3314
    %v3316 = vsel %vm3315, %v3307, %v3312
    %v3317 = vmul.f32 %v3215, %v3266
    %v3318 = vmul.f32 %v3216, %v3276
    %v3319 = vmul.f32 %v3217, %v3286
    %v3320 = vmul.f32 %v3218, %v3296
    %v3321 = vmul.f32 %v3219, %v3306
    %v3322 = vmul.f32 %v3220, %v3316
    %v3324 = vperm.slane %v3188, 0
    %v3326 = vmul.f32 %v3317, %v3324
    %v3327 = vmul.f32 %v3318, %v3324
    %v3328 = vmul.f32 %v3319, %v3324
    %v3329 = vmul.f32 %v3320, %v3324
    %v3330 = vmul.f32 %v3321, %v3324
    %v3331 = vmul.f32 %v3322, %v3324
    %v3333 = vperm.slane %v3190, 0
    %v3335 = vadd.f32 %v3326, %v3333
    %v3336 = vadd.f32 %v3327, %v3333
    %v3337 = vadd.f32 %v3328, %v3333
    %v3338 = vadd.f32 %v3329, %v3333
    %v3339 = vadd.f32 %v3330, %v3333
    %v3340 = vadd.f32 %v3331, %v3333
    %s3341 = scalar_lea.vmem %s10, 16
    %v3342 = vld [vmem:[%s3341] sm:$0xf]
    %v3343 = vld [vmem:[%s3341 + $0x4] sm:$0xf]
    %v3344 = vld [vmem:[%s3341 + $0x8] sm:$0xf]
    %v3345 = vld [vmem:[%s3341 + $0xc] sm:$0xf]
    %v3346 = vpack.c.bf16 %v3336, %v3335
    %v3347 = vpack.c.bf16 %v3338, %v3337
    %v3348 = vpack.c.bf16 %v3340, %v3339
    %s3349 = scalar_lea.vmem %s11, 1
    %v3350 = vld [vmem:[%s3349] sm:$0x1]
    %v3352 = vperm.slane %v3350, 0
    %v3358 = vunpack.c.l.b16 %v3342
    %v3359 = vunpack.c.l.b16 %v3343
    %v3360 = vunpack.c.l.b16 %v3344
    %v3361 = vunpack.c.l.b16 %v3345
    %v3362 = vpack.c.b16 %v3359, %v3358
    %v3363 = vpack.c.b16 %v3361, %v3360
    %v3367 = vsel %vm151, %v3346, 0
    %v3370 = vsel %vm151, %v3347, 0
    %v3373 = vsel %vm151, %v3348, 0
    %3375 = vmatpush.bf16.msra.mxu0 0
    %3376 = vmatpush.bf16.msra.mxu0 0
    %3377 = vmatpush.bf16.msra.mxu0 0
    %3378 = vmatpush.bf16.msra.mxu0 0
    %3379 = vmatpush.bf16.msra.mxu0 0
    %3380 = vmatpush.bf16.msra.mxu0 0
    %3381 = vmatpush.bf16.msra.mxu0 %v3363
    %3382 = vmatpush.bf16.msra.mxu0 %v3362
    %3383 = vmatmul.bf16.gmra.mxu0 %v3367
    %v3384 = vpop.f32.mrf.mxu0
    %v3385 = vadd.f32 %v3352, %v3384
    %v3386 = vpop.f32.mrf.mxu0
    %v3387 = vadd.f32 %v3352, %v3386
    %3388 = vmatmul.bf16.gmra.mxu0 %v3370
    %v3389 = vpop.f32.mrf.mxu0
    %v3390 = vadd.f32 %v3352, %v3389
    %v3391 = vpop.f32.mrf.mxu0
    %v3392 = vadd.f32 %v3352, %v3391
    %3393 = vmatmul.bf16.gmra.mxu0 %v3373
    %v3394 = vpop.f32.mrf.mxu0
    %v3395 = vadd.f32 %v3352, %v3394
    %v3396 = vpop.f32.mrf.mxu0
    %v3397 = vadd.f32 %v3352, %v3396
    %3398 = vdwg.mxu0
    %v3399 = vmul.f32 %v3385, 0.5
    %v3400 = vmul.f32 %v3387, 0.5
    %v3401 = vmul.f32 %v3390, 0.5
    %v3402 = vmul.f32 %v3392, 0.5
    %v3403 = vmul.f32 %v3395, 0.5
    %v3404 = vmul.f32 %v3397, 0.5
    %v3405 = vmul.f32 %v3385, 0.044715
    %v3406 = vmul.f32 %v3387, 0.044715
    %v3407 = vmul.f32 %v3390, 0.044715
    %v3408 = vmul.f32 %v3392, 0.044715
    %v3409 = vmul.f32 %v3395, 0.044715
    %v3410 = vmul.f32 %v3397, 0.044715
    %v3411 = vmul.f32 %v3405, %v3385
    %v3412 = vmul.f32 %v3406, %v3387
    %v3413 = vmul.f32 %v3407, %v3390
    %v3414 = vmul.f32 %v3408, %v3392
    %v3415 = vmul.f32 %v3409, %v3395
    %v3416 = vmul.f32 %v3410, %v3397
    %v3417 = vmul.f32 %v3411, %v3385
    %v3418 = vmul.f32 %v3412, %v3387
    %v3419 = vmul.f32 %v3413, %v3390
    %v3420 = vmul.f32 %v3414, %v3392
    %v3421 = vmul.f32 %v3415, %v3395
    %v3422 = vmul.f32 %v3416, %v3397
    %v3423 = vadd.f32 %v3385, %v3417
    %v3424 = vadd.f32 %v3387, %v3418
    %v3425 = vadd.f32 %v3390, %v3419
    %v3426 = vadd.f32 %v3392, %v3420
    %v3427 = vadd.f32 %v3395, %v3421
    %v3428 = vadd.f32 %v3397, %v3422
    %v3429 = vmul.f32 %v3423, 0.7978846
    %v3430 = vmul.f32 %v3424, 0.7978846
    %v3431 = vmul.f32 %v3425, 0.7978846
    %v3432 = vmul.f32 %v3426, 0.7978846
    %v3433 = vmul.f32 %v3427, 0.7978846
    %v3434 = vmul.f32 %v3428, 0.7978846
    %v3435 = vtanh.pop %v3429
    %v3436 = vtanh.pop %v3430
    %v3437 = vtanh.pop %v3431
    %v3438 = vtanh.pop %v3432
    %v3439 = vtanh.pop %v3433
    %v3440 = vtanh.pop %v3434
    %v3441 = vadd.f32 %v3435, 1.0
    %v3442 = vadd.f32 %v3436, 1.0
    %v3443 = vadd.f32 %v3437, 1.0
    %v3444 = vadd.f32 %v3438, 1.0
    %v3445 = vadd.f32 %v3439, 1.0
    %v3446 = vadd.f32 %v3440, 1.0
    %v3447 = vmul.f32 %v3399, %v3441
    %v3448 = vmul.f32 %v3400, %v3442
    %v3449 = vmul.f32 %v3401, %v3443
    %v3450 = vmul.f32 %v3402, %v3444
    %v3451 = vmul.f32 %v3403, %v3445
    %v3452 = vmul.f32 %v3404, %v3446
    %s3453 = scalar_lea.vmem %s12, 32
    %v3454 = vld [vmem:[%s3453] sm:$0xf]
    %v3455 = vld [vmem:[%s3453 + $0x4] sm:$0xf]
    %v3456 = vld [vmem:[%s3453 + $0x8] sm:$0xf]
    %v3457 = vld [vmem:[%s3453 + $0xc] sm:$0xf]
    %v3458 = vld [vmem:[%s3453 + $0x10] sm:$0xf]
    %v3459 = vld [vmem:[%s3453 + $0x14] sm:$0xf]
    %v3460 = vld [vmem:[%s3453 + $0x18] sm:$0xf]
    %v3461 = vld [vmem:[%s3453 + $0x1c] sm:$0xf]
    %v3462 = vpack.c.bf16 %v3448, %v3447
    %v3463 = vpack.c.bf16 %v3450, %v3449
    %v3464 = vpack.c.bf16 %v3452, %v3451
    %v3473 = vunpack.c.l.b16 %v3454
    %v3474 = vunpack.c.l.b16 %v3455
    %v3475 = vunpack.c.l.b16 %v3456
    %v3476 = vunpack.c.l.b16 %v3457
    %v3477 = vunpack.c.l.b16 %v3458
    %v3478 = vunpack.c.l.b16 %v3459
    %v3479 = vunpack.c.l.b16 %v3460
    %v3480 = vunpack.c.l.b16 %v3461
    %v3481 = vpack.c.b16 %v3474, %v3473
    %v3482 = vpack.c.b16 %v3476, %v3475
    %v3483 = vpack.c.b16 %v3478, %v3477
    %v3484 = vpack.c.b16 %v3480, %v3479
    %v3490 = vsel %vm1796, %v3462, 0
    %v3493 = vsel %vm1796, %v3463, 0
    %v3496 = vsel %vm1796, %v3464, 0
    %3498 = vmatpush.bf16.msra.mxu0 0
    %3499 = vmatpush.bf16.msra.mxu0 0
    %3500 = vmatpush.bf16.msra.mxu0 0
    %3501 = vmatpush.bf16.msra.mxu0 0
    %3502 = vmatpush.bf16.msra.mxu0 %v3484
    %3503 = vmatpush.bf16.msra.mxu0 %v3483
    %3504 = vmatpush.bf16.msra.mxu0 %v3482
    %3505 = vmatpush.bf16.msra.mxu0 %v3481
    %3506 = vmatmul.bf16.gmra.mxu0 %v3490
    %v3507 = vpop.f32.mrf.mxu0
    %v3508 = vadd.f32 0.0, %v3507
    %v3509 = vpop.f32.mrf.mxu0
    %3510 = vmatmul.bf16.gmra.mxu0 %v3493
    %v3511 = vpop.f32.mrf.mxu0
    %v3512 = vpop.f32.mrf.mxu0
    %v3513 = vadd.f32 0.0, %v3512
    %3514 = vmatmul.bf16.gmra.mxu0 %v3496
    %v3515 = vpop.f32.mrf.mxu0
    %v3516 = vpop.f32.mrf.mxu0
    %3517 = vdwg.mxu0
    %v3518 = vadd.f32 %v3181, %v3508
    %v3519 = vadd.f32 %v3184, %v3513
    %s3520 = scalar_lea.vmem %s13, 1
    %v3521 = vld [vmem:[%s3520] sm:$0x1]
    %v3523 = vperm.slane %v3521, 0
    %v3525 = vadd.f32 %v3518, %v3523
    %v3526 = vadd.f32 %v3519, %v3523
    %v3528 = vrot.slane %v3526, 7
    %vm3530 = vcmask 1040384
    %v3531 = vsel %vm3530, %v3525, %v3528
    %v3532 = vld [vmem:[%s14] sm:$0x1]
    %v3533 = vld [vmem:[%s15] sm:$0x1]
    %vm3534 = vcmask 254976
    %v3535 = vsel %vm3534, %v3531, 0.0
    %3536 = vadd.xlane.f32.xlu0 %v3535
    %v3537 = vpop.xlane.xlu0 %3536
    %v3538 = vmul.f32 %v3537, %v176
    %v3539 = vsub.f32 %v3531, %v3538
    %v3540 = vmul.f32 %v3539, %v3539
    %v3541 = vsel %vm3534, %v3540, 0.0
    %3542 = vadd.xlane.f32.xlu0 %v3541
    %v3543 = vpop.xlane.xlu0 %3542
    %v3544 = vmul.f32 %v3543, %v176
    %v3545 = vadd.f32 %v3544, 1e-05
    %v3546 = vrsqrt.pop %v3545
    %v3547 = vmul.f32 %v3546, %v3545
    %v3548 = vmul.f32 %v3547, %v3546
    %v3549 = vmul.f32 0.5, %v3548
    %v3550 = vsub.f32 1.5, %v3549
    %v3551 = vmul.f32 %v3546, %v3550
    %vm3552 = vweird.f32 %v3545
    %vm3553 = vweird.f32 %v3546
    %vm3554 = vmor %vm3552, %vm3553
    %v3555 = vsel %vm3554, %v3546, %v3551
    %v3556 = vmul.f32 %v3539, %v3555
    %v3558 = vperm.slane %v3532, 0
    %v3560 = vmul.f32 %v3556, %v3558
    %v3562 = vperm.slane %v3533, 0
    %v3564 = vadd.f32 %v3560, %v3562
    %v3565 = vld [vmem:[%s16] sm:$0xf]
    %v3566 = vld [vmem:[%s16 + $0x4] sm:$0xf]
    %v3567 = vld [vmem:[%s16 + $0x8] sm:$0xf]
    %v3568 = vld [vmem:[%s16 + $0xc] sm:$0xf]
    %v3569 = vpack.c.bf16 %v3564, %v3564
    %v3570 = vld [vmem:[%s17] sm:$0x1]
    %v3572 = vperm.slane %v3570, 0
    %v3578 = vunpack.c.l.b16 %v3565
    %v3579 = vunpack.c.l.b16 %v3566
    %v3580 = vunpack.c.l.b16 %v3567
    %v3581 = vunpack.c.l.b16 %v3568
    %v3582 = vpack.c.b16 %v3579, %v3578
    %v3583 = vpack.c.b16 %v3581, %v3580
    %v3587 = vsel %vm151, %v3569, 0
    %3589 = vmatpush.bf16.msra.mxu0 0
    %3590 = vmatpush.bf16.msra.mxu0 0
    %3591 = vmatpush.bf16.msra.mxu0 0
    %3592 = vmatpush.bf16.msra.mxu0 0
    %3593 = vmatpush.bf16.msra.mxu0 0
    %3594 = vmatpush.bf16.msra.mxu0 0
    %3595 = vmatpush.bf16.msra.mxu0 %v3583
    %3596 = vmatpush.bf16.msra.mxu0 %v3582
    %3597 = vmatmul.bf16.gmra.mxu0 %v3587
    %v3598 = vpop.f32.mrf.mxu0
    %v3599 = vadd.f32 %v3572, %v3598
    %v3600 = vpop.f32.mrf.mxu0
    %3601 = vdwg.mxu0
    %vm3602 = vcmask 74752
    %3603 = vst.msk [vmem:[#allocation2] sm:$0x3] %vm3602, %v3599
    // Predicated region
    $region74: #{vit_forward.1} parent=1 // pred_check
      _
    $region75: #{vit_forward.1} parent=1 // pred_check_branch
      %3605 = sbr.rel (0) target = $region77
    $region76: #{vit_forward.1} parent=1 // pred_region
      %3607 = vsyncadd [#allocation3], 0
      %s3609 = sshll.u32 [#allocation2], 4
      %s3610 = int_to_ptr.vmem [resolvable:$true] %s3609
      %s3611 = sshll.u32 %s18, 4
      %s3612 = int_to_ptr.hbm [resolvable:$true] %s3611
      %3614 = dma.vmem_to_hbm [thread:$0]  %s3610, 32, %s3612, [#allocation3]
    $region77: #{vit_forward.1} parent=1 // pred_fallthru
      _
    // Predicated region
    $region78: #{vit_forward.1} parent=1 // pred_check
      _
    $region79: #{vit_forward.1} parent=1 // pred_check_branch
      %3616 = sbr.rel (0) target = $region81
    $region80: #{vit_forward.1} parent=1 // pred_region
      %3618 = dma.done [#allocation3], 32
    $region81: #{vit_forward.1} parent=1 // pred_fallthru
      _
    %3619 = vsyncpa [#allocation3], 1

</llo_original>
